<compile_context>
chip_gen: v7x
topology: tpu7x:2x2x1
jax: 0.10.0
libtpu: 0.0.40
codegen_flags: <defaults>
</compile_context>

<pallas_src>
import jax
import jax.numpy as jnp
from jax import lax
from jax.experimental import pallas as pl
from jax.experimental.pallas import tpu as pltpu


# ------------------------------------------------------------------ kernels
def _conv_affine_relu_kernel(p_ref, w_ref, shift_ref, o_ref):
    # p_ref    : (K, TM)  bf16   im2col patches (batch folded into lanes)
    # w_ref    : (OC, K)  bf16   conv weights with BN scale folded in
    # shift_ref: (OC, 1)  f32    conv bias + folded BN shift (per out-channel)
    # o_ref    : (OC, TM) bf16   relu((w @ p) + shift)
    acc = jnp.dot(w_ref[...], p_ref[...], preferred_element_type=jnp.float32)
    o_ref[...] = jnp.maximum(acc + shift_ref[...], 0.0).astype(o_ref.dtype)


def _tail_kernel(p5_ref, w5_ref, s5_ref, w6_ref, b6_ref, o_ref):
    # Fused layers 5 (conv+BN+ReLU) and 6 (conv) + lastReLU for one batch element.
    # p5_ref: (1, K5, M5) bf16   im2col patches for layer 5
    # w5_ref: (OC5, K5)   bf16 ; s5_ref: (OC5, 1) f32
    # w6_ref: (OC6, OC5, M5) f32 (layer-6 conv sees exactly one full window)
    # b6_ref: (OC6, 1) f32 ; o_ref: (1, OC6, 1) f32
    act5 = jnp.maximum(
        jnp.dot(w5_ref[...], p5_ref[0], preferred_element_type=jnp.float32)
        + s5_ref[...], 0.0)                                        # (OC5, M5) f32
    oc6 = o_ref.shape[1]
    rows = [jnp.sum(w6_ref[p] * act5, axis=0, keepdims=True)       # (1, M5)
            for p in range(oc6)]
    v = jnp.sum(jnp.concatenate(rows, axis=0), axis=1, keepdims=True)  # (OC6, 1)
    o_ref[0] = jnp.maximum(v + b6_ref[...], 0.0)                   # lastReLU


# ------------------------------------------------------------------ pallas wrappers
def _lane_tile(nm):
    """Lane-tile width: multiple of 128, <=2048 (keeps the f32 acc small),
    and >=2 grid programs whenever the width allows (v7x dual TensorCores)."""
    if nm % 256 != 0:
        return nm                      # tiny layer: single full-width block
    tm = nm // 2
    while tm > 2048 and tm % 256 == 0:
        tm //= 2
    return tm


def fused_conv_bn_relu(patches_t, w_mat, shift):
    """relu(w_mat @ patches_t + shift) with batch folded into the lane axis."""
    K, NM = patches_t.shape
    OC = w_mat.shape[0]
    TM = _lane_tile(NM)
    return pl.pallas_call(
        _conv_affine_relu_kernel,
        out_shape=jax.ShapeDtypeStruct((OC, NM), jnp.bfloat16),
        grid_spec=pltpu.PrefetchScalarGridSpec(
            num_scalar_prefetch=0,
            grid=(NM // TM,),
            in_specs=[
                pl.BlockSpec((K, TM), lambda m: (0, m)),
                pl.BlockSpec((OC, K), lambda m: (0, 0)),
                pl.BlockSpec((OC, 1), lambda m: (0, 0)),
            ],
            out_specs=pl.BlockSpec((OC, TM), lambda m: (0, m)),
        ),
        compiler_params=pltpu.CompilerParams(
            dimension_semantics=("parallel",)),
    )(patches_t, w_mat, shift)


def fused_tail(patches5, w5_mat, s5, w6_k, b6_c):
    """Layers 5+6 + lastReLU in one call, grid over batch (2 parallel programs)."""
    N, K5, M5 = patches5.shape
    OC5 = w5_mat.shape[0]
    OC6 = w6_k.shape[0]
    out = pl.pallas_call(
        _tail_kernel,
        out_shape=jax.ShapeDtypeStruct((N, OC6, 1), jnp.float32),
        grid_spec=pltpu.PrefetchScalarGridSpec(
            num_scalar_prefetch=0,
            grid=(N,),
            in_specs=[
                pl.BlockSpec((1, K5, M5), lambda n: (n, 0, 0)),
                pl.BlockSpec((OC5, K5), lambda n: (0, 0)),
                pl.BlockSpec((OC5, 1), lambda n: (0, 0)),
                pl.BlockSpec((OC6, OC5, M5), lambda n: (0, 0, 0)),
                pl.BlockSpec((OC6, 1), lambda n: (0, 0)),
            ],
            out_specs=pl.BlockSpec((1, OC6, 1), lambda n: (n, 0, 0)),
        ),
        compiler_params=pltpu.CompilerParams(
            dimension_semantics=("parallel",)),
    )(patches5, w5_mat, s5, w6_k, b6_c)
    return out.reshape(N, OC6)


# ------------------------------------------------------------------ JAX glue
def _im2col(x_bf, kh, kw, stride, pad):
    # (N,C,H,W) -> (N, C*kh*kw, OH, OW); feature order (c,di,dj) == torch OIHW flatten.
    return lax.conv_general_dilated_patches(
        x_bf, (kh, kw), (stride, stride), [(pad, pad), (pad, pad)],
        dimension_numbers=('NCHW', 'OIHW', 'NCHW'))


def _fold_bn(w, b, bn):
    """Fold BatchNorm (running stats) into the weight matrix + an additive shift."""
    OC = w.shape[0]
    K = w.shape[1] * w.shape[2] * w.shape[3]
    if bn is not None:
        gamma, beta, mean, var, eps = bn
        inv = gamma / jnp.sqrt(var + eps)
        w_mat = w.reshape(OC, K) * inv[:, None]
        shift = (b - mean) * inv + beta
    else:
        w_mat = w.reshape(OC, K)
        shift = b
    return w_mat.astype(jnp.bfloat16), shift.reshape(OC, 1).astype(jnp.float32)


def conv_bn_relu_layer(x_bf, p):
    """One Conv(+BN)+ReLU layer.  Input/output are NCHW bf16."""
    w, stride, pad = p['w'], p['stride'], p['pad']
    OC, IC, KH, KW = w.shape
    N, _, H, W = x_bf.shape
    OH = (H + 2 * pad - KH) // stride + 1
    OW = (W + 2 * pad - KW) // stride + 1
    K, M = IC * KH * KW, OH * OW

    patches = _im2col(x_bf, KH, KW, stride, pad)                      # (N, K, OH, OW)
    patches_t = patches.reshape(N, K, M).transpose(1, 0, 2).reshape(K, N * M)

    w_mat, shift = _fold_bn(w, p['b'], p['bn'])
    out = fused_conv_bn_relu(patches_t, w_mat, shift)                 # (OC, N*M) bf16
    return out.reshape(OC, N, OH, OW).transpose(1, 0, 2, 3)           # (N, OC, OH, OW)


def tail_layers(act4_bf, p5, p6):
    """Fused layers 5 and 6 (+ lastReLU).  Returns (N, 2) f32."""
    N, _, H4, W4 = act4_bf.shape
    w5 = p5['w']
    OC5, IC5, KH5, KW5 = w5.shape
    s, pad = p5['stride'], p5['pad']
    OH5 = (H4 + 2 * pad - KH5) // s + 1
    OW5 = (W4 + 2 * pad - KW5) // s + 1
    K5, M5 = IC5 * KH5 * KW5, OH5 * OW5

    w6, b6 = p6['w'], p6['b']
    OC6, _, KH6, KW6 = w6.shape
    assert (KH6, KW6) == (OH5, OW5), "last conv must see exactly one full window"

    patches5 = _im2col(act4_bf, KH5, KW5, s, pad).reshape(N, K5, M5)
    w5_mat, s5 = _fold_bn(w5, p5['b'], p5['bn'])
    w6_k = w6.reshape(OC6, OC5, M5).astype(jnp.float32)
    b6_c = b6.reshape(OC6, 1).astype(jnp.float32)
    return fused_tail(patches5, w5_mat, s5, w6_k, b6_c)


def discriminator_forward(x_nchw, params, *, training=False):
    if training:
        # TODO(synk): training path (stochastic Dropout + Softmax head) not implemented.
        raise NotImplementedError("only the eval-mode forward path is implemented")
    x = x_nchw.astype(jnp.bfloat16)        # single up-front cast; layers run bf16
    for p in params[:4]:
        x = conv_bn_relu_layer(x, p)
    out = tail_layers(x, params[4], params[5])                        # (N, 2) f32
    n, c = out.shape
    # NOTE: like torch .squeeze(), this drops the batch dim if N == 1.
    return jnp.squeeze(out.reshape(n, c, 1, 1))


# ------------------------------------------------------------------ params
def init_params(key, nc, ndf):
    layer_defs = [
        # (in_ch, out_ch, k, stride, pad, has_bn)
        (nc,       ndf,     5, 1, 0, False),
        (ndf,      ndf,     4, 2, 1, True),
        (ndf,      ndf * 2, 4, 2, 1, True),
        (ndf * 2,  ndf * 4, 4, 2, 1, True),
        (ndf * 4,  ndf * 8, 4, 2, 1, True),
        (ndf * 8,  2,       4, 1, 0, False),
    ]
    params = []
    for (ic, oc, k, s, p, has_bn) in layer_defs:
        key, kw_, kb_, kg, kbt, km, kv = jax.random.split(key, 7)
        w = 0.05 * jax.random.normal(kw_, (oc, ic, k, k), jnp.float32)
        b = 0.05 * jax.random.normal(kb_, (oc,), jnp.float32)
        bn = None
        if has_bn:
            bn = (1.0 + 0.1 * jax.random.normal(kg, (oc,), jnp.float32),   # gamma
                  0.1 * jax.random.normal(kbt, (oc,), jnp.float32),        # beta
                  0.1 * jax.random.normal(km, (oc,), jnp.float32),         # running_mean
                  1.0 + 0.1 * jax.random.uniform(kv, (oc,), jnp.float32),  # running_var
                  1e-5)
        params.append(dict(w=w, b=b, stride=s, pad=p, bn=bn))
    return params


# ------------------------------------------------------------------ reference
def reference_forward(x_nchw, params):
    x = x_nchw
    for p in params:
        x = lax.conv_general_dilated(
            x, p['w'], (p['stride'],) * 2, [(p['pad'], p['pad'])] * 2,
            dimension_numbers=('NCHW', 'OIHW', 'NCHW'))
        x = x + p['b'][None, :, None, None]
        if p['bn'] is not None:
            gamma, beta, mean, var, eps = p['bn']
            inv = (gamma / jnp.sqrt(var + eps))[None, :, None, None]
            x = (x - mean[None, :, None, None]) * inv + beta[None, :, None, None]
        x = jnp.maximum(x, 0.0)
    return jnp.squeeze(x)


if __name__ == "__main__":
    key = jax.random.PRNGKey(0)
    kx, kp = jax.random.split(key)
    # 68x68 input is the smallest size that reaches 1x1 after the conv stack.
    N, nc, ndf, H = 2, 3, 8, 68
    x = jax.random.normal(kx, (N, nc, H, H), jnp.float32)
    params = init_params(kp, nc, ndf)

    fwd = jax.jit(lambda xx: discriminator_forward(xx, params))
    out = jax.block_until_ready(fwd(x))

    ref = reference_forward(x, params)
    assert out.shape == (N, 2), out.shape
    # bf16 MXU operands / bf16 inter-layer activations (vs f32 reference).
    assert jnp.allclose(out, ref, atol=5e-2, rtol=5e-2), (out, ref)
    print("KERNEL_OK")
</pallas_src>

<mosaic_0001>
module attributes {stable_mosaic.version = 11 : i64} {
  func.func @_conv_affine_relu_kernel(%arg0: i32, %arg1: memref<75x2048xbf16, #tpu.memory_space<vmem>>, %arg2: memref<8x75xbf16, #tpu.memory_space<vmem>>, %arg3: memref<8x1xf32, #tpu.memory_space<vmem>>, %arg4: memref<8x2048xbf16, #tpu.memory_space<vmem>>) attributes {dimension_semantics = [#tpu.dimension_semantics<parallel>], iteration_bounds = array<i64: 4>, scalar_prefetch = 0 : i64, scratch_operands = 0 : i64, tpu.core_type = #tpu.core_type<tc>, window_params = [{transform_indices = @transform_0, window_bounds = array<i64: 75, 2048>}, {pipeline_mode = #tpu.pipeline_mode<synchronous>, transform_indices = @transform_1, window_bounds = array<i64: 8, 75>}, {pipeline_mode = #tpu.pipeline_mode<synchronous>, transform_indices = @transform_2, window_bounds = array<i64: 8, 1>}, {transform_indices = @transform_3, window_bounds = array<i64: 8, 2048>}]} {
    %c0 = arith.constant 0 : index
    %c0_0 = arith.constant 0 : index
    %0 = vector.load %arg2[%c0, %c0_0] : memref<8x75xbf16, #tpu.memory_space<vmem>>, vector<8x75xbf16>
    %c0_1 = arith.constant 0 : index
    %c0_2 = arith.constant 0 : index
    %1 = vector.load %arg1[%c0_1, %c0_2] : memref<75x2048xbf16, #tpu.memory_space<vmem>>, vector<75x2048xbf16>
    %cst = arith.constant dense<0.000000e+00> : vector<8x2048xf32>
    %2 = tpu.matmul %0, %1, %cst {dimension_numbers = #tpu.dot_dimension_numbers<[1], [0], [0], [1], [0, 0, 1, 1], [], []>} : vector<8x75xbf16>, vector<75x2048xbf16>, vector<8x2048xf32> -> vector<8x2048xf32>
    %c0_3 = arith.constant 0 : index
    %c0_4 = arith.constant 0 : index
    %3 = vector.load %arg3[%c0_3, %c0_4] : memref<8x1xf32, #tpu.memory_space<vmem>>, vector<8x1xf32>
    %4 = vector.broadcast %3 : vector<8x1xf32> to vector<8x2048xf32>
    %5 = arith.addf %2, %4 : vector<8x2048xf32>
    %cst_5 = arith.constant 0.000000e+00 : f32
    %6 = vector.broadcast %cst_5 : f32 to vector<8x2048xf32>
    %7 = arith.maximumf %5, %6 : vector<8x2048xf32>
    %8 = arith.truncf %7 : vector<8x2048xf32> to vector<8x2048xbf16>
    %c0_6 = arith.constant 0 : index
    %c0_7 = arith.constant 0 : index
    %9 = vector.load %arg4[%c0_6, %c0_7] : memref<8x2048xbf16, #tpu.memory_space<vmem>>, vector<8x2048xbf16>
    tpu.vector_store %arg4[%c0_6, %c0_7], %8 {strides = array<i32>} : memref<8x2048xbf16, #tpu.memory_space<vmem>>, vector<8x2048xbf16>,
    return
  }
  func.func @transform_0(%arg0: i32) -> (i32, i32) {
    %c0_i32 = arith.constant 0 : i32
    %c0_i32_0 = arith.constant 0 : i32
    return %c0_i32, %arg0 : i32, i32
  }
  func.func @transform_1(%arg0: i32) -> (i32, i32) {
    %c0_i32 = arith.constant 0 : i32
    %c0_i32_0 = arith.constant 0 : i32
    %c0_i32_1 = arith.constant 0 : i32
    return %c0_i32, %c0_i32_0 : i32, i32
  }
  func.func @transform_2(%arg0: i32) -> (i32, i32) {
    %c0_i32 = arith.constant 0 : i32
    %c0_i32_0 = arith.constant 0 : i32
    %c0_i32_1 = arith.constant 0 : i32
    return %c0_i32, %c0_i32_0 : i32, i32
  }
  func.func @transform_3(%arg0: i32) -> (i32, i32) {
    %c0_i32 = arith.constant 0 : i32
    %c0_i32_0 = arith.constant 0 : i32
    return %c0_i32, %arg0 : i32, i32
  }
}

module attributes {stable_mosaic.version = 11 : i64} {
  func.func @_conv_affine_relu_kernel(%arg0: i32, %arg1: memref<128x1024xbf16, #tpu.memory_space<vmem>>, %arg2: memref<8x128xbf16, #tpu.memory_space<vmem>>, %arg3: memref<8x1xf32, #tpu.memory_space<vmem>>, %arg4: memref<8x1024xbf16, #tpu.memory_space<vmem>>) attributes {dimension_semantics = [#tpu.dimension_semantics<parallel>], iteration_bounds = array<i64: 2>, scalar_prefetch = 0 : i64, scratch_operands = 0 : i64, tpu.core_type = #tpu.core_type<tc>, window_params = [{transform_indices = @transform_0, window_bounds = array<i64: 128, 1024>}, {pipeline_mode = #tpu.pipeline_mode<synchronous>, transform_indices = @transform_1, window_bounds = array<i64: 8, 128>}, {pipeline_mode = #tpu.pipeline_mode<synchronous>, transform_indices = @transform_2, window_bounds = array<i64: 8, 1>}, {transform_indices = @transform_3, window_bounds = array<i64: 8, 1024>}]} {
    %c0 = arith.constant 0 : index
    %c0_0 = arith.constant 0 : index
    %0 = vector.load %arg2[%c0, %c0_0] : memref<8x128xbf16, #tpu.memory_space<vmem>>, vector<8x128xbf16>
    %c0_1 = arith.constant 0 : index
    %c0_2 = arith.constant 0 : index
    %1 = vector.load %arg1[%c0_1, %c0_2] : memref<128x1024xbf16, #tpu.memory_space<vmem>>, vector<128x1024xbf16>
    %cst = arith.constant dense<0.000000e+00> : vector<8x1024xf32>
    %2 = tpu.matmul %0, %1, %cst {dimension_numbers = #tpu.dot_dimension_numbers<[1], [0], [0], [1], [0, 0, 1, 1], [], []>} : vector<8x128xbf16>, vector<128x1024xbf16>, vector<8x1024xf32> -> vector<8x1024xf32>
    %c0_3 = arith.constant 0 : index
    %c0_4 = arith.constant 0 : index
    %3 = vector.load %arg3[%c0_3, %c0_4] : memref<8x1xf32, #tpu.memory_space<vmem>>, vector<8x1xf32>
    %4 = vector.broadcast %3 : vector<8x1xf32> to vector<8x1024xf32>
    %5 = arith.addf %2, %4 : vector<8x1024xf32>
    %cst_5 = arith.constant 0.000000e+00 : f32
    %6 = vector.broadcast %cst_5 : f32 to vector<8x1024xf32>
    %7 = arith.maximumf %5, %6 : vector<8x1024xf32>
    %8 = arith.truncf %7 : vector<8x1024xf32> to vector<8x1024xbf16>
    %c0_6 = arith.constant 0 : index
    %c0_7 = arith.constant 0 : index
    %9 = vector.load %arg4[%c0_6, %c0_7] : memref<8x1024xbf16, #tpu.memory_space<vmem>>, vector<8x1024xbf16>
    tpu.vector_store %arg4[%c0_6, %c0_7], %8 {strides = array<i32>} : memref<8x1024xbf16, #tpu.memory_space<vmem>>, vector<8x1024xbf16>,
    return
  }
  func.func @transform_0(%arg0: i32) -> (i32, i32) {
    %c0_i32 = arith.constant 0 : i32
    %c0_i32_0 = arith.constant 0 : i32
    return %c0_i32, %arg0 : i32, i32
  }
  func.func @transform_1(%arg0: i32) -> (i32, i32) {
    %c0_i32 = arith.constant 0 : i32
    %c0_i32_0 = arith.constant 0 : i32
    %c0_i32_1 = arith.constant 0 : i32
    return %c0_i32, %c0_i32_0 : i32, i32
  }
  func.func @transform_2(%arg0: i32) -> (i32, i32) {
    %c0_i32 = arith.constant 0 : i32
    %c0_i32_0 = arith.constant 0 : i32
    %c0_i32_1 = arith.constant 0 : i32
    return %c0_i32, %c0_i32_0 : i32, i32
  }
  func.func @transform_3(%arg0: i32) -> (i32, i32) {
    %c0_i32 = arith.constant 0 : i32
    %c0_i32_0 = arith.constant 0 : i32
    return %c0_i32, %arg0 : i32, i32
  }
}

module attributes {stable_mosaic.version = 11 : i64} {
  func.func @_conv_affine_relu_kernel(%arg0: i32, %arg1: memref<128x256xbf16, #tpu.memory_space<vmem>>, %arg2: memref<16x128xbf16, #tpu.memory_space<vmem>>, %arg3: memref<16x1xf32, #tpu.memory_space<vmem>>, %arg4: memref<16x256xbf16, #tpu.memory_space<vmem>>) attributes {dimension_semantics = [#tpu.dimension_semantics<parallel>], iteration_bounds = array<i64: 2>, scalar_prefetch = 0 : i64, scratch_operands = 0 : i64, tpu.core_type = #tpu.core_type<tc>, window_params = [{transform_indices = @transform_0, window_bounds = array<i64: 128, 256>}, {pipeline_mode = #tpu.pipeline_mode<synchronous>, transform_indices = @transform_1, window_bounds = array<i64: 16, 128>}, {pipeline_mode = #tpu.pipeline_mode<synchronous>, transform_indices = @transform_2, window_bounds = array<i64: 16, 1>}, {transform_indices = @transform_3, window_bounds = array<i64: 16, 256>}]} {
    %c0 = arith.constant 0 : index
    %c0_0 = arith.constant 0 : index
    %0 = vector.load %arg2[%c0, %c0_0] : memref<16x128xbf16, #tpu.memory_space<vmem>>, vector<16x128xbf16>
    %c0_1 = arith.constant 0 : index
    %c0_2 = arith.constant 0 : index
    %1 = vector.load %arg1[%c0_1, %c0_2] : memref<128x256xbf16, #tpu.memory_space<vmem>>, vector<128x256xbf16>
    %cst = arith.constant dense<0.000000e+00> : vector<16x256xf32>
    %2 = tpu.matmul %0, %1, %cst {dimension_numbers = #tpu.dot_dimension_numbers<[1], [0], [0], [1], [0, 0, 1, 1], [], []>} : vector<16x128xbf16>, vector<128x256xbf16>, vector<16x256xf32> -> vector<16x256xf32>
    %c0_3 = arith.constant 0 : index
    %c0_4 = arith.constant 0 : index
    %3 = vector.load %arg3[%c0_3, %c0_4] : memref<16x1xf32, #tpu.memory_space<vmem>>, vector<16x1xf32>
    %4 = vector.broadcast %3 : vector<16x1xf32> to vector<16x256xf32>
    %5 = arith.addf %2, %4 : vector<16x256xf32>
    %cst_5 = arith.constant 0.000000e+00 : f32
    %6 = vector.broadcast %cst_5 : f32 to vector<16x256xf32>
    %7 = arith.maximumf %5, %6 : vector<16x256xf32>
    %8 = arith.truncf %7 : vector<16x256xf32> to vector<16x256xbf16>
    %c0_6 = arith.constant 0 : index
    %c0_7 = arith.constant 0 : index
    %9 = vector.load %arg4[%c0_6, %c0_7] : memref<16x256xbf16, #tpu.memory_space<vmem>>, vector<16x256xbf16>
    tpu.vector_store %arg4[%c0_6, %c0_7], %8 {strides = array<i32>} : memref<16x256xbf16, #tpu.memory_space<vmem>>, vector<16x256xbf16>,
    return
  }
  func.func @transform_0(%arg0: i32) -> (i32, i32) {
    %c0_i32 = arith.constant 0 : i32
    %c0_i32_0 = arith.constant 0 : i32
    return %c0_i32, %arg0 : i32, i32
  }
  func.func @transform_1(%arg0: i32) -> (i32, i32) {
    %c0_i32 = arith.constant 0 : i32
    %c0_i32_0 = arith.constant 0 : i32
    %c0_i32_1 = arith.constant 0 : i32
    return %c0_i32, %c0_i32_0 : i32, i32
  }
  func.func @transform_2(%arg0: i32) -> (i32, i32) {
    %c0_i32 = arith.constant 0 : i32
    %c0_i32_0 = arith.constant 0 : i32
    %c0_i32_1 = arith.constant 0 : i32
    return %c0_i32, %c0_i32_0 : i32, i32
  }
  func.func @transform_3(%arg0: i32) -> (i32, i32) {
    %c0_i32 = arith.constant 0 : i32
    %c0_i32_0 = arith.constant 0 : i32
    return %c0_i32, %arg0 : i32, i32
  }
}

module attributes {stable_mosaic.version = 11 : i64} {
  func.func @_conv_affine_relu_kernel(%arg0: i32, %arg1: memref<256x128xbf16, #tpu.memory_space<vmem>>, %arg2: memref<32x256xbf16, #tpu.memory_space<vmem>>, %arg3: memref<32x1xf32, #tpu.memory_space<vmem>>, %arg4: memref<32x128xbf16, #tpu.memory_space<vmem>>) attributes {dimension_semantics = [#tpu.dimension_semantics<parallel>], iteration_bounds = array<i64: 1>, scalar_prefetch = 0 : i64, scratch_operands = 0 : i64, tpu.core_type = #tpu.core_type<tc>, window_params = [{transform_indices = @transform_0, window_bounds = array<i64: 256, 128>}, {pipeline_mode = #tpu.pipeline_mode<synchronous>, transform_indices = @transform_1, window_bounds = array<i64: 32, 256>}, {pipeline_mode = #tpu.pipeline_mode<synchronous>, transform_indices = @transform_2, window_bounds = array<i64: 32, 1>}, {transform_indices = @transform_3, window_bounds = array<i64: 32, 128>}]} {
    %c0 = arith.constant 0 : index
    %c0_0 = arith.constant 0 : index
    %0 = vector.load %arg2[%c0, %c0_0] : memref<32x256xbf16, #tpu.memory_space<vmem>>, vector<32x256xbf16>
    %c0_1 = arith.constant 0 : index
    %c0_2 = arith.constant 0 : index
    %1 = vector.load %arg1[%c0_1, %c0_2] : memref<256x128xbf16, #tpu.memory_space<vmem>>, vector<256x128xbf16>
    %cst = arith.constant dense<0.000000e+00> : vector<32x128xf32>
    %2 = tpu.matmul %0, %1, %cst {dimension_numbers = #tpu.dot_dimension_numbers<[1], [0], [0], [1], [0, 0, 1, 1], [], []>} : vector<32x256xbf16>, vector<256x128xbf16>, vector<32x128xf32> -> vector<32x128xf32>
    %c0_3 = arith.constant 0 : index
    %c0_4 = arith.constant 0 : index
    %3 = vector.load %arg3[%c0_3, %c0_4] : memref<32x1xf32, #tpu.memory_space<vmem>>, vector<32x1xf32>
    %4 = vector.broadcast %3 : vector<32x1xf32> to vector<32x128xf32>
    %5 = arith.addf %2, %4 : vector<32x128xf32>
    %cst_5 = arith.constant 0.000000e+00 : f32
    %6 = vector.broadcast %cst_5 : f32 to vector<32x128xf32>
    %7 = arith.maximumf %5, %6 : vector<32x128xf32>
    %8 = arith.truncf %7 : vector<32x128xf32> to vector<32x128xbf16>
    %c0_6 = arith.constant 0 : index
    %c0_7 = arith.constant 0 : index
    %9 = vector.load %arg4[%c0_6, %c0_7] : memref<32x128xbf16, #tpu.memory_space<vmem>>, vector<32x128xbf16>
    tpu.vector_store %arg4[%c0_6, %c0_7], %8 {strides = array<i32>} : memref<32x128xbf16, #tpu.memory_space<vmem>>, vector<32x128xbf16>,
    return
  }
  func.func @transform_0(%arg0: i32) -> (i32, i32) {
    %c0_i32 = arith.constant 0 : i32
    %c0_i32_0 = arith.constant 0 : i32
    return %c0_i32, %arg0 : i32, i32
  }
  func.func @transform_1(%arg0: i32) -> (i32, i32) {
    %c0_i32 = arith.constant 0 : i32
    %c0_i32_0 = arith.constant 0 : i32
    %c0_i32_1 = arith.constant 0 : i32
    return %c0_i32, %c0_i32_0 : i32, i32
  }
  func.func @transform_2(%arg0: i32) -> (i32, i32) {
    %c0_i32 = arith.constant 0 : i32
    %c0_i32_0 = arith.constant 0 : i32
    %c0_i32_1 = arith.constant 0 : i32
    return %c0_i32, %c0_i32_0 : i32, i32
  }
  func.func @transform_3(%arg0: i32) -> (i32, i32) {
    %c0_i32 = arith.constant 0 : i32
    %c0_i32_0 = arith.constant 0 : i32
    return %c0_i32, %arg0 : i32, i32
  }
}

module attributes {stable_mosaic.version = 11 : i64} {
  func.func @_tail_kernel(%arg0: i32, %arg1: memref<1x512x16xbf16, #tpu.memory_space<vmem>>, %arg2: memref<64x512xbf16, #tpu.memory_space<vmem>>, %arg3: memref<64x1xf32, #tpu.memory_space<vmem>>, %arg4: memref<2x64x16xf32, #tpu.memory_space<vmem>>, %arg5: memref<2x1xf32, #tpu.memory_space<vmem>>, %arg6: memref<1x2x1xf32, #tpu.memory_space<vmem>>) attributes {dimension_semantics = [#tpu.dimension_semantics<parallel>], iteration_bounds = array<i64: 2>, scalar_prefetch = 0 : i64, scratch_operands = 0 : i64, tpu.core_type = #tpu.core_type<tc>, window_params = [{transform_indices = @transform_0, window_bounds = array<i64: 1, 512, 16>}, {pipeline_mode = #tpu.pipeline_mode<synchronous>, transform_indices = @transform_1, window_bounds = array<i64: 64, 512>}, {pipeline_mode = #tpu.pipeline_mode<synchronous>, transform_indices = @transform_2, window_bounds = array<i64: 64, 1>}, {pipeline_mode = #tpu.pipeline_mode<synchronous>, transform_indices = @transform_3, window_bounds = array<i64: 2, 64, 16>}, {pipeline_mode = #tpu.pipeline_mode<synchronous>, transform_indices = @transform_4, window_bounds = array<i64: 2, 1>}, {transform_indices = @transform_5, window_bounds = array<i64: 1, 2, 1>}]} {
    %c0 = arith.constant 0 : index
    %c0_0 = arith.constant 0 : index
    %0 = vector.load %arg2[%c0, %c0_0] : memref<64x512xbf16, #tpu.memory_space<vmem>>, vector<64x512xbf16>
    %c0_1 = arith.constant 0 : index
    %c0_2 = arith.constant 0 : index
    %c0_3 = arith.constant 0 : index
    %1 = vector.load %arg1[%c0_1, %c0_2, %c0_3] : memref<1x512x16xbf16, #tpu.memory_space<vmem>>, vector<1x512x16xbf16>
    %2 = vector.shape_cast %1 : vector<1x512x16xbf16> to vector<512x16xbf16>
    %cst = arith.constant dense<0.000000e+00> : vector<64x16xf32>
    %3 = tpu.matmul %0, %2, %cst {dimension_numbers = #tpu.dot_dimension_numbers<[1], [0], [0], [1], [0, 0, 1, 1], [], []>} : vector<64x512xbf16>, vector<512x16xbf16>, vector<64x16xf32> -> vector<64x16xf32>
    %c0_4 = arith.constant 0 : index
    %c0_5 = arith.constant 0 : index
    %4 = vector.load %arg3[%c0_4, %c0_5] : memref<64x1xf32, #tpu.memory_space<vmem>>, vector<64x1xf32>
    %5 = vector.broadcast %4 : vector<64x1xf32> to vector<64x16xf32>
    %6 = arith.addf %3, %5 : vector<64x16xf32>
    %cst_6 = arith.constant 0.000000e+00 : f32
    %7 = vector.broadcast %cst_6 : f32 to vector<64x16xf32>
    %8 = arith.maximumf %6, %7 : vector<64x16xf32>
    %c0_7 = arith.constant 0 : index
    %c0_8 = arith.constant 0 : index
    %c0_9 = arith.constant 0 : index
    %9 = vector.load %arg4[%c0_7, %c0_8, %c0_9] : memref<2x64x16xf32, #tpu.memory_space<vmem>>, vector<1x64x16xf32>
    %10 = vector.shape_cast %9 : vector<1x64x16xf32> to vector<64x16xf32>
    %11 = arith.mulf %10, %8 : vector<64x16xf32>
    %cst_10 = arith.constant dense<0.000000e+00> : vector<16xf32>
    %12 = vector.multi_reduction <add>, %11, %cst_10 [0] : vector<64x16xf32> to vector<16xf32>
    %13 = vector.shape_cast %12 : vector<16xf32> to vector<1x16xf32>
    %c1 = arith.constant 1 : index
    %c0_11 = arith.constant 0 : index
    %c0_12 = arith.constant 0 : index
    %14 = vector.load %arg4[%c1, %c0_11, %c0_12] : memref<2x64x16xf32, #tpu.memory_space<vmem>>, vector<1x64x16xf32>
    %15 = vector.shape_cast %14 : vector<1x64x16xf32> to vector<64x16xf32>
    %16 = arith.mulf %15, %8 : vector<64x16xf32>
    %cst_13 = arith.constant dense<0.000000e+00> : vector<16xf32>
    %17 = vector.multi_reduction <add>, %16, %cst_13 [0] : vector<64x16xf32> to vector<16xf32>
    %18 = vector.shape_cast %17 : vector<16xf32> to vector<1x16xf32>
    %19 = tpu.concatenate %13, %18 in 0 : vector<1x16xf32>, vector<1x16xf32> -> vector<2x16xf32>
    %cst_14 = arith.constant dense<0.000000e+00> : vector<2xf32>
    %20 = vector.multi_reduction <add>, %19, %cst_14 [1] : vector<2x16xf32> to vector<2xf32>
    %21 = vector.shape_cast %20 : vector<2xf32> to vector<2x1xf32>
    %c0_15 = arith.constant 0 : index
    %c0_16 = arith.constant 0 : index
    %22 = vector.load %arg5[%c0_15, %c0_16] : memref<2x1xf32, #tpu.memory_space<vmem>>, vector<2x1xf32>
    %23 = arith.addf %21, %22 : vector<2x1xf32>
    %cst_17 = arith.constant 0.000000e+00 : f32
    %24 = vector.broadcast %cst_17 : f32 to vector<2x1xf32>
    %25 = arith.maximumf %23, %24 : vector<2x1xf32>
    %c0_18 = arith.constant 0 : index
    %c0_19 = arith.constant 0 : index
    %c0_20 = arith.constant 0 : index
    %26 = vector.load %arg6[%c0_18, %c0_19, %c0_20] : memref<1x2x1xf32, #tpu.memory_space<vmem>>, vector<1x2x1xf32>
    %27 = vector.shape_cast %26 : vector<1x2x1xf32> to vector<2x1xf32>
    %28 = vector.shape_cast %25 : vector<2x1xf32> to vector<1x2x1xf32>
    tpu.vector_store %arg6[%c0_18, %c0_19, %c0_20], %28 {strides = array<i32>} : memref<1x2x1xf32, #tpu.memory_space<vmem>>, vector<1x2x1xf32>,
    return
  }
  func.func @transform_0(%arg0: i32) -> (i32, i32, i32) {
    %c0_i32 = arith.constant 0 : i32
    %c0_i32_0 = arith.constant 0 : i32
    %c0_i32_1 = arith.constant 0 : i32
    return %arg0, %c0_i32, %c0_i32_0 : i32, i32, i32
  }
  func.func @transform_1(%arg0: i32) -> (i32, i32) {
    %c0_i32 = arith.constant 0 : i32
    %c0_i32_0 = arith.constant 0 : i32
    %c0_i32_1 = arith.constant 0 : i32
    return %c0_i32, %c0_i32_0 : i32, i32
  }
  func.func @transform_2(%arg0: i32) -> (i32, i32) {
    %c0_i32 = arith.constant 0 : i32
    %c0_i32_0 = arith.constant 0 : i32
    %c0_i32_1 = arith.constant 0 : i32
    return %c0_i32, %c0_i32_0 : i32, i32
  }
  func.func @transform_3(%arg0: i32) -> (i32, i32, i32) {
    %c0_i32 = arith.constant 0 : i32
    %c0_i32_0 = arith.constant 0 : i32
    %c0_i32_1 = arith.constant 0 : i32
    %c0_i32_2 = arith.constant 0 : i32
    return %c0_i32, %c0_i32_0, %c0_i32_1 : i32, i32, i32
  }
  func.func @transform_4(%arg0: i32) -> (i32, i32) {
    %c0_i32 = arith.constant 0 : i32
    %c0_i32_0 = arith.constant 0 : i32
    %c0_i32_1 = arith.constant 0 : i32
    return %c0_i32, %c0_i32_0 : i32, i32
  }
  func.func @transform_5(%arg0: i32) -> (i32, i32, i32) {
    %c0_i32 = arith.constant 0 : i32
    %c0_i32_0 = arith.constant 0 : i32
    %c0_i32_1 = arith.constant 0 : i32
    return %arg0, %c0_i32, %c0_i32_0 : i32, i32, i32
  }
}

</mosaic_0001>

<llo_original>
// kernel: _lambda_.5
$region0: #{_lambda_.5}
  #allocation0 [shape = 'u32[]', space=smem, size = 0x4, offset = 0x4, fixed_abs, tag = 'smem constant byte address 0x4 - core index']
  #allocation1 [shape = 'u32[144,128]{1,0:T(1,128)}', space=vmem, size = 0x12000, scoped, tag = 'internal scratch']
  %s0 = inlined_call_operand.vmem [shape: bf16[75,8192], index: 0, kind: input, shape index: {}]
  %s1 = inlined_call_operand.vmem [shape: bf16[8,75], index: 1, kind: input, shape index: {}]
  %s2 = inlined_call_operand.vmem [shape: f32[8,1], index: 2, kind: input, shape index: {}]
  %s3 = inlined_call_operand.vmem [shape: bf16[8,8192], index: 3, kind: output, shape index: {}]
  %s4 = sld [smem:[#allocation0]]
  $region68: #{_lambda_.5} parent=0
    _
  %s6 = ssub.s32 1, %s4
  %s7 = scalar_select 0, %s6, %s4
  $region1: #{_lambda_.5} parent=0
    #allocation2 [shape = 'u8[655360]{0}', space=vmem, size = 0xa0000, scoped, tag = 'input window, operand 0']
    loop: start=0, step=1, limit=6
    $region2: #{_lambda_.5} parent=1 // loop_pre_header
      _
    $region3: #{_lambda_.5} parent=1 // loop_header
      %s9 = sphi 0, %s13
      %p10 = scmp.ge.s32.totalorder %s9, 6
      %s19 = sphi 0, %s21
      %s22 = sphi 0, %s19
      %s23 = sphi 0, %s22
      %s39 = sphi 0, %s23
      %s43 = sphi 0, %s43
      %s45 = sphi 0, %s43
      %s46 = sphi 0, %s45
      %s60 = sphi 0, %s46
      %s64 = sphi 0, %s64
      %s66 = sphi 0, %s64
      %s67 = sphi 0, %s66
      %s81 = sphi 0, %s67
      %s87 = sphi 0, %s89
      %s90 = sphi 0, %s87
      %s91 = sphi 0, %s90
      %s107 = sphi 0, %s91
    $region4: #{_lambda_.5} parent=1 // loop_header_branch
      %12 = sbr.rel (%p10) target = $region8
    $region5: #{_lambda_.5} parent=1 // loop_body
      %s14 = ssub.s32 %s9, 1
      %s15 = ssub.s32 %s9, 2
      %s16 = sadd.s32 %s9, 1
      %s17 = ssub.s32 %s9, %s16
      %p18 = scmp.eq.s32.totalorder %s17, 0
      %s20 = sadd.s32 %s19, 1
      %s21 = scalar_select %p18, %s19, %s20
      %p24 = pneg %p18
      %p25 = scmp.eq.s32.totalorder %s9, 3
      %p26 = por %p24, %p25
      %p27 = scmp.ne.s32.totalorder %s19, %s22
      %p28 = scmp.eq.s32.totalorder %s9, 0
      %p29 = por %p27, %p28
      %p30 = scmp.ne.s32.totalorder %s19, %s22
      %p31 = scmp.eq.s32.totalorder %s14, 3
      %p32 = por %p30, %p31
      %p33 = scmp.ne.s32.totalorder %s22, %s23
      %p34 = scmp.eq.s32.totalorder %s14, 0
      %p35 = por %p33, %p34
      %p36 = scmp.ne.s32.totalorder %s22, %s23
      %p37 = scmp.eq.s32.totalorder %s15, 3
      %p38 = por %p36, %p37
      %p40 = scmp.ne.s32.totalorder %s23, %s39
      %p41 = scmp.eq.s32.totalorder %s15, 0
      %p42 = por %p40, %p41
      %s44 = sadd.s32 %s43, 1
      %p47 = scmp.eq.s32.totalorder %s9, 3
      %p48 = scmp.ne.s32.totalorder %s43, %s45
      %p49 = scmp.eq.s32.totalorder %s9, 0
      %p50 = por %p48, %p49
      %p51 = scmp.ne.s32.totalorder %s43, %s45
      %p52 = scmp.eq.s32.totalorder %s14, 3
      %p53 = por %p51, %p52
      %p54 = scmp.ne.s32.totalorder %s45, %s46
      %p55 = scmp.eq.s32.totalorder %s14, 0
      %p56 = por %p54, %p55
      %p57 = scmp.ne.s32.totalorder %s45, %s46
      %p58 = scmp.eq.s32.totalorder %s15, 3
      %p59 = por %p57, %p58
      %p61 = scmp.ne.s32.totalorder %s46, %s60
      %p62 = scmp.eq.s32.totalorder %s15, 0
      %p63 = por %p61, %p62
      %s65 = sadd.s32 %s64, 1
      %p68 = scmp.eq.s32.totalorder %s9, 3
      %p69 = scmp.ne.s32.totalorder %s64, %s66
      %p70 = scmp.eq.s32.totalorder %s9, 0
      %p71 = por %p69, %p70
      %p72 = scmp.ne.s32.totalorder %s64, %s66
      %p73 = scmp.eq.s32.totalorder %s14, 3
      %p74 = por %p72, %p73
      %p75 = scmp.ne.s32.totalorder %s66, %s67
      %p76 = scmp.eq.s32.totalorder %s14, 0
      %p77 = por %p75, %p76
      %p78 = scmp.ne.s32.totalorder %s66, %s67
      %p79 = scmp.eq.s32.totalorder %s15, 3
      %p80 = por %p78, %p79
      %p82 = scmp.ne.s32.totalorder %s67, %s81
      %p83 = scmp.eq.s32.totalorder %s15, 0
      %p84 = por %p82, %p83
      %s85 = ssub.s32 %s9, %s16
      %p86 = scmp.eq.s32.totalorder %s85, 0
      %s88 = sadd.s32 %s87, 1
      %s89 = scalar_select %p86, %s87, %s88
      %p92 = pneg %p86
      %p93 = scmp.eq.s32.totalorder %s9, 3
      %p94 = por %p92, %p93
      %p95 = scmp.ne.s32.totalorder %s87, %s90
      %p96 = scmp.eq.s32.totalorder %s9, 0
      %p97 = por %p95, %p96
      %p98 = scmp.ne.s32.totalorder %s87, %s90
      %p99 = scmp.eq.s32.totalorder %s14, 3
      %p100 = por %p98, %p99
      %p101 = scmp.ne.s32.totalorder %s90, %s91
      %p102 = scmp.eq.s32.totalorder %s14, 0
      %p103 = por %p101, %p102
      %p104 = scmp.ne.s32.totalorder %s90, %s91
      %p105 = scmp.eq.s32.totalorder %s15, 3
      %p106 = por %p104, %p105
      %p108 = scmp.ne.s32.totalorder %s91, %s107
      %p109 = scmp.eq.s32.totalorder %s15, 0
      %p110 = por %p108, %p109
      %p111 = scmp.le.s32.totalorder 1, %s9
      %p112 = scmp.lt.s32.totalorder %s9, 5
      %p113 = pnand %p111, %p112
      %p114 = pneg %p113
      // Predicated region
      $region9: #{_lambda_.5} parent=5 // pred_check
        _
      $region10: #{_lambda_.5} parent=5 // pred_check_branch
        %116 = sbr.rel (%p113) target = $region12
      $region11: #{_lambda_.5} parent=5 // pred_region
        %s117 = ssub.s32 %s9, 1
        // Predicated region
        $region13: #{_lambda_.5} parent=11 // pred_check
          %p118 = pneg %p56
        $region14: #{_lambda_.5} parent=11 // pred_check_branch
          %120 = sbr.rel (%p118) target = $region16
        $region15: #{_lambda_.5} parent=11 // pred_region
          _
        $region16: #{_lambda_.5} parent=11 // pred_fallthru
          _
        // Predicated region
        $region17: #{_lambda_.5} parent=11 // pred_check
          %p121 = pneg %p77
        $region18: #{_lambda_.5} parent=11 // pred_check_branch
          %123 = sbr.rel (%p121) target = $region20
        $region19: #{_lambda_.5} parent=11 // pred_region
          _
        $region20: #{_lambda_.5} parent=11 // pred_fallthru
          _
      $region12: #{_lambda_.5} parent=5 // pred_fallthru
        _
      %p124 = scmp.lt.s32.totalorder %s9, 4
      // Predicated region
      $region21: #{_lambda_.5} parent=5 // pred_check
        %p125 = pneg %p124
      $region22: #{_lambda_.5} parent=5 // pred_check_branch
        %127 = sbr.rel (%p125) target = $region24
      $region23: #{_lambda_.5} parent=5 // pred_region
        // Predicated region
        $region25: #{_lambda_.5} parent=23 // pred_check
          %p128 = pneg %p29
        $region26: #{_lambda_.5} parent=23 // pred_check_branch
          %130 = sbr.rel (%p128) target = $region28
        $region27: #{_lambda_.5} parent=23 // pred_region
          %s131 = sand.u32 %s19, 1
          %s132 = sand.u32 %s19, 1
          %s133 = smul.addr %s132, 640
          %s134 = scalar_lea.vmem [#allocation2], %s133
          %s135 = smul.u32 16, %s9
          %s136 = smul.addr %s135, 4
          %s137 = scalar_lea.vmem %s0, %s136
          // Predicated region
          $region29: #{_lambda_.5} parent=27 // pred_check
            _
          $region30: #{_lambda_.5} parent=27 // pred_check_branch
            %139 = sbr.rel (0) target = $region32
          $region31: #{_lambda_.5} parent=27 // pred_region
            // Predicated region
            $region33: #{_lambda_.5} parent=31 // pred_check
              _
            $region34: #{_lambda_.5} parent=31 // pred_check_branch
              %141 = sbr.rel (0) target = $region36
            $region35: #{_lambda_.5} parent=31 // pred_region
              loop: start=0, step=1, limit=1
              $region37: #{_lambda_.5} parent=35 // loop_pre_header
                _
              $region38: #{_lambda_.5} parent=35 // loop_header
                %s143 = sphi 0, %s147
                %p144 = scmp.ge.s32.totalorder %s143, 1
                %s148 = sphi %s137, %s137
                %s149 = sphi %s134, %s134
              $region39: #{_lambda_.5} parent=35 // loop_header_branch
                %146 = sbr.rel (%p144) target = $region43
              $region40: #{_lambda_.5} parent=35 // loop_body
                %v150 = vld [vmem:[%s148] sm:$0xff]
                %151 = vst [vmem:[%s149] sm:$0xff] %v150
                %v152 = vld [vmem:[%s148 + $0x8] sm:$0xff]
                %153 = vst [vmem:[%s149 + $0x8] sm:$0xff] %v152
                %v154 = vld [vmem:[%s148 + $0x10] sm:$0xff]
                %155 = vst [vmem:[%s149 + $0x10] sm:$0xff] %v154
                %v156 = vld [vmem:[%s148 + $0x18] sm:$0xff]
                %157 = vst [vmem:[%s149 + $0x18] sm:$0xff] %v156
                %v158 = vld [vmem:[%s148 + $0x20] sm:$0xff]
                %159 = vst [vmem:[%s149 + $0x20] sm:$0xff] %v158
                %v160 = vld [vmem:[%s148 + $0x28] sm:$0xff]
                %161 = vst [vmem:[%s149 + $0x28] sm:$0xff] %v160
                %v162 = vld [vmem:[%s148 + $0x30] sm:$0xff]
                %163 = vst [vmem:[%s149 + $0x30] sm:$0xff] %v162
                %v164 = vld [vmem:[%s148 + $0x38] sm:$0xff]
                %165 = vst [vmem:[%s149 + $0x38] sm:$0xff] %v164
                %v166 = vld [vmem:[%s148 + $0x100] sm:$0xff]
                %167 = vst [vmem:[%s149 + $0x40] sm:$0xff] %v166
                %v168 = vld [vmem:[%s148 + $0x108] sm:$0xff]
                %169 = vst [vmem:[%s149 + $0x48] sm:$0xff] %v168
                %v170 = vld [vmem:[%s148 + $0x110] sm:$0xff]
                %171 = vst [vmem:[%s149 + $0x50] sm:$0xff] %v170
                %v172 = vld [vmem:[%s148 + $0x118] sm:$0xff]
                %173 = vst [vmem:[%s149 + $0x58] sm:$0xff] %v172
                %v174 = vld [vmem:[%s148 + $0x120] sm:$0xff]
                %175 = vst [vmem:[%s149 + $0x60] sm:$0xff] %v174
                %v176 = vld [vmem:[%s148 + $0x128] sm:$0xff]
                %177 = vst [vmem:[%s149 + $0x68] sm:$0xff] %v176
                %v178 = vld [vmem:[%s148 + $0x130] sm:$0xff]
                %179 = vst [vmem:[%s149 + $0x70] sm:$0xff] %v178
                %v180 = vld [vmem:[%s148 + $0x138] sm:$0xff]
                %181 = vst [vmem:[%s149 + $0x78] sm:$0xff] %v180
                %v182 = vld [vmem:[%s148 + $0x200] sm:$0xff]
                %183 = vst [vmem:[%s149 + $0x80] sm:$0xff] %v182
                %v184 = vld [vmem:[%s148 + $0x208] sm:$0xff]
                %185 = vst [vmem:[%s149 + $0x88] sm:$0xff] %v184
                %v186 = vld [vmem:[%s148 + $0x210] sm:$0xff]
                %187 = vst [vmem:[%s149 + $0x90] sm:$0xff] %v186
                %v188 = vld [vmem:[%s148 + $0x218] sm:$0xff]
                %189 = vst [vmem:[%s149 + $0x98] sm:$0xff] %v188
                %v190 = vld [vmem:[%s148 + $0x220] sm:$0xff]
                %191 = vst [vmem:[%s149 + $0xa0] sm:$0xff] %v190
                %v192 = vld [vmem:[%s148 + $0x228] sm:$0xff]
                %193 = vst [vmem:[%s149 + $0xa8] sm:$0xff] %v192
                %v194 = vld [vmem:[%s148 + $0x230] sm:$0xff]
                %195 = vst [vmem:[%s149 + $0xb0] sm:$0xff] %v194
                %v196 = vld [vmem:[%s148 + $0x238] sm:$0xff]
                %197 = vst [vmem:[%s149 + $0xb8] sm:$0xff] %v196
                %v198 = vld [vmem:[%s148 + $0x300] sm:$0xff]
                %199 = vst [vmem:[%s149 + $0xc0] sm:$0xff] %v198
                %v200 = vld [vmem:[%s148 + $0x308] sm:$0xff]
                %201 = vst [vmem:[%s149 + $0xc8] sm:$0xff] %v200
                %v202 = vld [vmem:[%s148 + $0x310] sm:$0xff]
                %203 = vst [vmem:[%s149 + $0xd0] sm:$0xff] %v202
                %v204 = vld [vmem:[%s148 + $0x318] sm:$0xff]
                %205 = vst [vmem:[%s149 + $0xd8] sm:$0xff] %v204
                %v206 = vld [vmem:[%s148 + $0x320] sm:$0xff]
                %207 = vst [vmem:[%s149 + $0xe0] sm:$0xff] %v206
                %v208 = vld [vmem:[%s148 + $0x328] sm:$0xff]
                %209 = vst [vmem:[%s149 + $0xe8] sm:$0xff] %v208
                %v210 = vld [vmem:[%s148 + $0x330] sm:$0xff]
                %211 = vst [vmem:[%s149 + $0xf0] sm:$0xff] %v210
                %v212 = vld [vmem:[%s148 + $0x338] sm:$0xff]
                %213 = vst [vmem:[%s149 + $0xf8] sm:$0xff] %v212
                %v214 = vld [vmem:[%s148 + $0x400] sm:$0xff]
                %215 = vst [vmem:[%s149 + $0x100] sm:$0xff] %v214
                %v216 = vld [vmem:[%s148 + $0x408] sm:$0xff]
                %217 = vst [vmem:[%s149 + $0x108] sm:$0xff] %v216
                %v218 = vld [vmem:[%s148 + $0x410] sm:$0xff]
                %219 = vst [vmem:[%s149 + $0x110] sm:$0xff] %v218
                %v220 = vld [vmem:[%s148 + $0x418] sm:$0xff]
                %221 = vst [vmem:[%s149 + $0x118] sm:$0xff] %v220
                %v222 = vld [vmem:[%s148 + $0x420] sm:$0xff]
                %223 = vst [vmem:[%s149 + $0x120] sm:$0xff] %v222
                %v224 = vld [vmem:[%s148 + $0x428] sm:$0xff]
                %225 = vst [vmem:[%s149 + $0x128] sm:$0xff] %v224
                %v226 = vld [vmem:[%s148 + $0x430] sm:$0xff]
                %227 = vst [vmem:[%s149 + $0x130] sm:$0xff] %v226
                %v228 = vld [vmem:[%s148 + $0x438] sm:$0xff]
                %229 = vst [vmem:[%s149 + $0x138] sm:$0xff] %v228
                %v230 = vld [vmem:[%s148 + $0x500] sm:$0xff]
                %231 = vst [vmem:[%s149 + $0x140] sm:$0xff] %v230
                %v232 = vld [vmem:[%s148 + $0x508] sm:$0xff]
                %233 = vst [vmem:[%s149 + $0x148] sm:$0xff] %v232
                %v234 = vld [vmem:[%s148 + $0x510] sm:$0xff]
                %235 = vst [vmem:[%s149 + $0x150] sm:$0xff] %v234
                %v236 = vld [vmem:[%s148 + $0x518] sm:$0xff]
                %237 = vst [vmem:[%s149 + $0x158] sm:$0xff] %v236
                %v238 = vld [vmem:[%s148 + $0x520] sm:$0xff]
                %239 = vst [vmem:[%s149 + $0x160] sm:$0xff] %v238
                %v240 = vld [vmem:[%s148 + $0x528] sm:$0xff]
                %241 = vst [vmem:[%s149 + $0x168] sm:$0xff] %v240
                %v242 = vld [vmem:[%s148 + $0x530] sm:$0xff]
                %243 = vst [vmem:[%s149 + $0x170] sm:$0xff] %v242
                %v244 = vld [vmem:[%s148 + $0x538] sm:$0xff]
                %245 = vst [vmem:[%s149 + $0x178] sm:$0xff] %v244
                %v246 = vld [vmem:[%s148 + $0x600] sm:$0xff]
                %247 = vst [vmem:[%s149 + $0x180] sm:$0xff] %v246
                %v248 = vld [vmem:[%s148 + $0x608] sm:$0xff]
                %249 = vst [vmem:[%s149 + $0x188] sm:$0xff] %v248
                %v250 = vld [vmem:[%s148 + $0x610] sm:$0xff]
                %251 = vst [vmem:[%s149 + $0x190] sm:$0xff] %v250
                %v252 = vld [vmem:[%s148 + $0x618] sm:$0xff]
                %253 = vst [vmem:[%s149 + $0x198] sm:$0xff] %v252
                %v254 = vld [vmem:[%s148 + $0x620] sm:$0xff]
                %255 = vst [vmem:[%s149 + $0x1a0] sm:$0xff] %v254
                %v256 = vld [vmem:[%s148 + $0x628] sm:$0xff]
                %257 = vst [vmem:[%s149 + $0x1a8] sm:$0xff] %v256
                %v258 = vld [vmem:[%s148 + $0x630] sm:$0xff]
                %259 = vst [vmem:[%s149 + $0x1b0] sm:$0xff] %v258
                %v260 = vld [vmem:[%s148 + $0x638] sm:$0xff]
                %261 = vst [vmem:[%s149 + $0x1b8] sm:$0xff] %v260
                %v262 = vld [vmem:[%s148 + $0x700] sm:$0xff]
                %263 = vst [vmem:[%s149 + $0x1c0] sm:$0xff] %v262
                %v264 = vld [vmem:[%s148 + $0x708] sm:$0xff]
                %265 = vst [vmem:[%s149 + $0x1c8] sm:$0xff] %v264
                %v266 = vld [vmem:[%s148 + $0x710] sm:$0xff]
                %267 = vst [vmem:[%s149 + $0x1d0] sm:$0xff] %v266
                %v268 = vld [vmem:[%s148 + $0x718] sm:$0xff]
                %269 = vst [vmem:[%s149 + $0x1d8] sm:$0xff] %v268
                %v270 = vld [vmem:[%s148 + $0x720] sm:$0xff]
                %271 = vst [vmem:[%s149 + $0x1e0] sm:$0xff] %v270
                %v272 = vld [vmem:[%s148 + $0x728] sm:$0xff]
                %273 = vst [vmem:[%s149 + $0x1e8] sm:$0xff] %v272
                %v274 = vld [vmem:[%s148 + $0x730] sm:$0xff]
                %275 = vst [vmem:[%s149 + $0x1f0] sm:$0xff] %v274
                %v276 = vld [vmem:[%s148 + $0x738] sm:$0xff]
                %277 = vst [vmem:[%s149 + $0x1f8] sm:$0xff] %v276
                %v278 = vld [vmem:[%s148 + $0x800] sm:$0xff]
                %279 = vst [vmem:[%s149 + $0x200] sm:$0xff] %v278
                %v280 = vld [vmem:[%s148 + $0x808] sm:$0xff]
                %281 = vst [vmem:[%s149 + $0x208] sm:$0xff] %v280
                %v282 = vld [vmem:[%s148 + $0x810] sm:$0xff]
                %283 = vst [vmem:[%s149 + $0x210] sm:$0xff] %v282
                %v284 = vld [vmem:[%s148 + $0x818] sm:$0xff]
                %285 = vst [vmem:[%s149 + $0x218] sm:$0xff] %v284
                %v286 = vld [vmem:[%s148 + $0x820] sm:$0xff]
                %287 = vst [vmem:[%s149 + $0x220] sm:$0xff] %v286
                %v288 = vld [vmem:[%s148 + $0x828] sm:$0xff]
                %289 = vst [vmem:[%s149 + $0x228] sm:$0xff] %v288
                %v290 = vld [vmem:[%s148 + $0x830] sm:$0xff]
                %291 = vst [vmem:[%s149 + $0x230] sm:$0xff] %v290
                %v292 = vld [vmem:[%s148 + $0x838] sm:$0xff]
                %293 = vst [vmem:[%s149 + $0x238] sm:$0xff] %v292
                %v294 = vld [vmem:[%s148 + $0x900] sm:$0xff]
                %295 = vst [vmem:[%s149 + $0x240] sm:$0xff] %v294
                %v296 = vld [vmem:[%s148 + $0x908] sm:$0xff]
                %297 = vst [vmem:[%s149 + $0x248] sm:$0xff] %v296
                %v298 = vld [vmem:[%s148 + $0x910] sm:$0xff]
                %299 = vst [vmem:[%s149 + $0x250] sm:$0xff] %v298
                %v300 = vld [vmem:[%s148 + $0x918] sm:$0xff]
                %301 = vst [vmem:[%s149 + $0x258] sm:$0xff] %v300
                %v302 = vld [vmem:[%s148 + $0x920] sm:$0xff]
                %303 = vst [vmem:[%s149 + $0x260] sm:$0xff] %v302
                %v304 = vld [vmem:[%s148 + $0x928] sm:$0xff]
                %305 = vst [vmem:[%s149 + $0x268] sm:$0xff] %v304
                %v306 = vld [vmem:[%s148 + $0x930] sm:$0xff]
                %307 = vst [vmem:[%s149 + $0x270] sm:$0xff] %v306
                %v308 = vld [vmem:[%s148 + $0x938] sm:$0xff]
                %309 = vst [vmem:[%s149 + $0x278] sm:$0xff] %v308
              $region41: #{_lambda_.5} parent=35 // loop_footer
                %s147 = sadd.s32 1, %s143
              $region42: #{_lambda_.5} parent=35 // loop_footer_branch
                %142 = sbr.rel target = $region38
              $region43: #{_lambda_.5} parent=35 // loop_exit
                _
            $region36: #{_lambda_.5} parent=31 // pred_fallthru
              _
            // Predicated region
            $region44: #{_lambda_.5} parent=31 // pred_check
              _
            $region45: #{_lambda_.5} parent=31 // pred_check_branch
              %311 = sbr.rel target = $region47
            $region46: #{_lambda_.5} parent=31 // pred_region
              _
            $region47: #{_lambda_.5} parent=31 // pred_fallthru
              _
          $region32: #{_lambda_.5} parent=27 // pred_fallthru
            _
          %312 = vnop
        $region28: #{_lambda_.5} parent=23 // pred_fallthru
          _
      $region24: #{_lambda_.5} parent=5 // pred_fallthru
        _
      %p313 = scmp.le.s32.totalorder 1, %s9
      %p314 = scmp.lt.s32.totalorder %s9, 5
      %p315 = pnand %p313, %p314
      %p316 = pneg %p315
      // Predicated region
      $region48: #{_lambda_.5} parent=5 // pred_check
        _
      $region49: #{_lambda_.5} parent=5 // pred_check_branch
        %318 = sbr.rel (%p315) target = $region51
      $region50: #{_lambda_.5} parent=5 // pred_region
        %s319 = ssub.s32 %s9, 1
        %s320 = sand.u32 %s22, 1
        %s321 = sand.u32 %s22, 1
        %s322 = smul.addr %s321, 640
        %s323 = scalar_lea.vmem [#allocation2], %s322
        // Predicated region
        $region52: #{_lambda_.5} parent=50 // pred_check
          %p324 = pneg %p35
        $region53: #{_lambda_.5} parent=50 // pred_check_branch
          %326 = sbr.rel (%p324) target = $region55
        $region54: #{_lambda_.5} parent=50 // pred_region
          _
        $region55: #{_lambda_.5} parent=50 // pred_fallthru
          _
        %s327 = sand.u32 %s22, 1
        %s328 = sand.u32 %s22, 1
        %s329 = smul.addr %s328, 640
        %s330 = scalar_lea.vmem [#allocation2], %s329
        %p331 = pneg %p35
        %p332 = pneg %p32
        %p333 = pneg %p56
        %p334 = pneg %p53
        %p335 = pneg %p77
        %p336 = pneg %p74
        %p337 = pneg %p103
        %p338 = pneg %p100
        %s339 = smul.u32 16, %s14
        %p340 = scmp.lt.s32.totalorder %s339, 63
        %s341 = scalar_select %p340, %s339, 63
        %s342 = smul.addr %s341, 4
        %s343 = scalar_lea.vmem %s3, %s342
        %s344 = smul.u32 16, %s14
        %s345 = smul.u32 16, %s14
        %p346 = scmp.lt.s32.totalorder %s345, 63
        %s347 = scalar_select %p346, %s345, 63
        %s348 = smul.addr %s347, 4
        %s349 = scalar_lea.vmem %s3, %s348
        %s350 = smul.u32 16, %s14
        %v352 = vld [vmem:[%s1] sm:$0xf]
        %v353 = vld [vmem:[%s323] sm:$0xff]
        %v354 = vld [vmem:[%s323 + $0x8] sm:$0xff]
        %v355 = vld [vmem:[%s323 + $0x10] sm:$0xff]
        %v356 = vld [vmem:[%s323 + $0x18] sm:$0xff]
        %v357 = vld [vmem:[%s323 + $0x20] sm:$0xff]
        %v358 = vld [vmem:[%s323 + $0x28] sm:$0xff]
        %v359 = vld [vmem:[%s323 + $0x30] sm:$0xff]
        %v360 = vld [vmem:[%s323 + $0x38] sm:$0xff]
        %v361 = vld [vmem:[%s323 + $0x40] sm:$0xff]
        %v362 = vld [vmem:[%s323 + $0x48] sm:$0xff]
        %v363 = vld [vmem:[%s323 + $0x50] sm:$0xff]
        %v364 = vld [vmem:[%s323 + $0x58] sm:$0xff]
        %v365 = vld [vmem:[%s323 + $0x60] sm:$0xff]
        %v366 = vld [vmem:[%s323 + $0x68] sm:$0xff]
        %v367 = vld [vmem:[%s323 + $0x70] sm:$0xff]
        %v368 = vld [vmem:[%s323 + $0x78] sm:$0xff]
        %v369 = vld [vmem:[%s323 + $0x80] sm:$0xff]
        %v370 = vld [vmem:[%s323 + $0x88] sm:$0xff]
        %v371 = vld [vmem:[%s323 + $0x90] sm:$0xff]
        %v372 = vld [vmem:[%s323 + $0x98] sm:$0xff]
        %v373 = vld [vmem:[%s323 + $0xa0] sm:$0xff]
        %v374 = vld [vmem:[%s323 + $0xa8] sm:$0xff]
        %v375 = vld [vmem:[%s323 + $0xb0] sm:$0xff]
        %v376 = vld [vmem:[%s323 + $0xb8] sm:$0xff]
        %v377 = vld [vmem:[%s323 + $0xc0] sm:$0xff]
        %v378 = vld [vmem:[%s323 + $0xc8] sm:$0xff]
        %v379 = vld [vmem:[%s323 + $0xd0] sm:$0xff]
        %v380 = vld [vmem:[%s323 + $0xd8] sm:$0xff]
        %v381 = vld [vmem:[%s323 + $0xe0] sm:$0xff]
        %v382 = vld [vmem:[%s323 + $0xe8] sm:$0xff]
        %v383 = vld [vmem:[%s323 + $0xf0] sm:$0xff]
        %v384 = vld [vmem:[%s323 + $0xf8] sm:$0xff]
        %v385 = vld [vmem:[%s323 + $0x100] sm:$0xff]
        %v386 = vld [vmem:[%s323 + $0x108] sm:$0xff]
        %v387 = vld [vmem:[%s323 + $0x110] sm:$0xff]
        %v388 = vld [vmem:[%s323 + $0x118] sm:$0xff]
        %v389 = vld [vmem:[%s323 + $0x120] sm:$0xff]
        %v390 = vld [vmem:[%s323 + $0x128] sm:$0xff]
        %v391 = vld [vmem:[%s323 + $0x130] sm:$0xff]
        %v392 = vld [vmem:[%s323 + $0x138] sm:$0xff]
        %v393 = vld [vmem:[%s323 + $0x140] sm:$0xff]
        %v394 = vld [vmem:[%s323 + $0x148] sm:$0xff]
        %v395 = vld [vmem:[%s323 + $0x150] sm:$0xff]
        %v396 = vld [vmem:[%s323 + $0x158] sm:$0xff]
        %v397 = vld [vmem:[%s323 + $0x160] sm:$0xff]
        %v398 = vld [vmem:[%s323 + $0x168] sm:$0xff]
        %v399 = vld [vmem:[%s323 + $0x170] sm:$0xff]
        %v400 = vld [vmem:[%s323 + $0x178] sm:$0xff]
        %v401 = vld [vmem:[%s323 + $0x180] sm:$0xff]
        %v402 = vld [vmem:[%s323 + $0x188] sm:$0xff]
        %v403 = vld [vmem:[%s323 + $0x190] sm:$0xff]
        %v404 = vld [vmem:[%s323 + $0x198] sm:$0xff]
        %v405 = vld [vmem:[%s323 + $0x1a0] sm:$0xff]
        %v406 = vld [vmem:[%s323 + $0x1a8] sm:$0xff]
        %v407 = vld [vmem:[%s323 + $0x1b0] sm:$0xff]
        %v408 = vld [vmem:[%s323 + $0x1b8] sm:$0xff]
        %v409 = vld [vmem:[%s323 + $0x1c0] sm:$0xff]
        %v410 = vld [vmem:[%s323 + $0x1c8] sm:$0xff]
        %v411 = vld [vmem:[%s323 + $0x1d0] sm:$0xff]
        %v412 = vld [vmem:[%s323 + $0x1d8] sm:$0xff]
        %v413 = vld [vmem:[%s323 + $0x1e0] sm:$0xff]
        %v414 = vld [vmem:[%s323 + $0x1e8] sm:$0xff]
        %v415 = vld [vmem:[%s323 + $0x1f0] sm:$0xff]
        %v416 = vld [vmem:[%s323 + $0x1f8] sm:$0xff]
        %v417 = vld [vmem:[%s323 + $0x200] sm:$0xff]
        %v418 = vld [vmem:[%s323 + $0x208] sm:$0xff]
        %v419 = vld [vmem:[%s323 + $0x210] sm:$0xff]
        %v420 = vld [vmem:[%s323 + $0x218] sm:$0xff]
        %v421 = vld [vmem:[%s323 + $0x220] sm:$0xff]
        %v422 = vld [vmem:[%s323 + $0x228] sm:$0xff]
        %v423 = vld [vmem:[%s323 + $0x230] sm:$0xff]
        %v424 = vld [vmem:[%s323 + $0x238] sm:$0xff]
        %v425 = vld [vmem:[%s323 + $0x240] sm:$0x33]
        %v426 = vld [vmem:[%s323 + $0x248] sm:$0x33]
        %v427 = vld [vmem:[%s323 + $0x250] sm:$0x33]
        %v428 = vld [vmem:[%s323 + $0x258] sm:$0x33]
        %v429 = vld [vmem:[%s323 + $0x260] sm:$0x33]
        %v430 = vld [vmem:[%s323 + $0x268] sm:$0x33]
        %v431 = vld [vmem:[%s323 + $0x270] sm:$0x33]
        %v432 = vld [vmem:[%s323 + $0x278] sm:$0x33]
        %v433 = vld [vmem:[%s2] sm:$0xff]
        %435 = vset.pattern.permute.xlu0 0
        %436 = vperm.xlu0 %435, %v433
        %v437 = vpop.permute.xlu0 %436
        %v519 = vunpack.c.l.b16 %v353
        %v520 = vunpack.c.h.b16 %v353
        %v521 = vunpack.c.l.b16 %v354
        %v522 = vunpack.c.h.b16 %v354
        %v523 = vunpack.c.l.b16 %v355
        %v524 = vunpack.c.h.b16 %v355
        %v525 = vunpack.c.l.b16 %v356
        %v526 = vunpack.c.h.b16 %v356
        %v527 = vunpack.c.l.b16 %v357
        %v528 = vunpack.c.h.b16 %v357
        %v529 = vunpack.c.l.b16 %v358
        %v530 = vunpack.c.h.b16 %v358
        %v531 = vunpack.c.l.b16 %v359
        %v532 = vunpack.c.h.b16 %v359
        %v533 = vunpack.c.l.b16 %v360
        %v534 = vunpack.c.h.b16 %v360
        %v535 = vunpack.c.l.b16 %v361
        %v536 = vunpack.c.h.b16 %v361
        %v537 = vunpack.c.l.b16 %v362
        %v538 = vunpack.c.h.b16 %v362
        %v539 = vunpack.c.l.b16 %v363
        %v540 = vunpack.c.h.b16 %v363
        %v541 = vunpack.c.l.b16 %v364
        %v542 = vunpack.c.h.b16 %v364
        %v543 = vunpack.c.l.b16 %v365
        %v544 = vunpack.c.h.b16 %v365
        %v545 = vunpack.c.l.b16 %v366
        %v546 = vunpack.c.h.b16 %v366
        %v547 = vunpack.c.l.b16 %v367
        %v548 = vunpack.c.h.b16 %v367
        %v549 = vunpack.c.l.b16 %v368
        %v550 = vunpack.c.h.b16 %v368
        %v551 = vunpack.c.l.b16 %v369
        %v552 = vunpack.c.h.b16 %v369
        %v553 = vunpack.c.l.b16 %v370
        %v554 = vunpack.c.h.b16 %v370
        %v555 = vunpack.c.l.b16 %v371
        %v556 = vunpack.c.h.b16 %v371
        %v557 = vunpack.c.l.b16 %v372
        %v558 = vunpack.c.h.b16 %v372
        %v559 = vunpack.c.l.b16 %v373
        %v560 = vunpack.c.h.b16 %v373
        %v561 = vunpack.c.l.b16 %v374
        %v562 = vunpack.c.h.b16 %v374
        %v563 = vunpack.c.l.b16 %v375
        %v564 = vunpack.c.h.b16 %v375
        %v565 = vunpack.c.l.b16 %v376
        %v566 = vunpack.c.h.b16 %v376
        %v567 = vunpack.c.l.b16 %v377
        %v568 = vunpack.c.h.b16 %v377
        %v569 = vunpack.c.l.b16 %v378
        %v570 = vunpack.c.h.b16 %v378
        %v571 = vunpack.c.l.b16 %v379
        %v572 = vunpack.c.h.b16 %v379
        %v573 = vunpack.c.l.b16 %v380
        %v574 = vunpack.c.h.b16 %v380
        %v575 = vunpack.c.l.b16 %v381
        %v576 = vunpack.c.h.b16 %v381
        %v577 = vunpack.c.l.b16 %v382
        %v578 = vunpack.c.h.b16 %v382
        %v579 = vunpack.c.l.b16 %v383
        %v580 = vunpack.c.h.b16 %v383
        %v581 = vunpack.c.l.b16 %v384
        %v582 = vunpack.c.h.b16 %v384
        %v583 = vunpack.c.l.b16 %v385
        %v584 = vunpack.c.h.b16 %v385
        %v585 = vunpack.c.l.b16 %v386
        %v586 = vunpack.c.h.b16 %v386
        %v587 = vunpack.c.l.b16 %v387
        %v588 = vunpack.c.h.b16 %v387
        %v589 = vunpack.c.l.b16 %v388
        %v590 = vunpack.c.h.b16 %v388
        %v591 = vunpack.c.l.b16 %v389
        %v592 = vunpack.c.h.b16 %v389
        %v593 = vunpack.c.l.b16 %v390
        %v594 = vunpack.c.h.b16 %v390
        %v595 = vunpack.c.l.b16 %v391
        %v596 = vunpack.c.h.b16 %v391
        %v597 = vunpack.c.l.b16 %v392
        %v598 = vunpack.c.h.b16 %v392
        %v599 = vunpack.c.l.b16 %v393
        %v600 = vunpack.c.h.b16 %v393
        %v601 = vunpack.c.l.b16 %v394
        %v602 = vunpack.c.h.b16 %v394
        %v603 = vunpack.c.l.b16 %v395
        %v604 = vunpack.c.h.b16 %v395
        %v605 = vunpack.c.l.b16 %v396
        %v606 = vunpack.c.h.b16 %v396
        %v607 = vunpack.c.l.b16 %v397
        %v608 = vunpack.c.h.b16 %v397
        %v609 = vunpack.c.l.b16 %v398
        %v610 = vunpack.c.h.b16 %v398
        %v611 = vunpack.c.l.b16 %v399
        %v612 = vunpack.c.h.b16 %v399
        %v613 = vunpack.c.l.b16 %v400
        %v614 = vunpack.c.h.b16 %v400
        %v615 = vunpack.c.l.b16 %v401
        %v616 = vunpack.c.h.b16 %v401
        %v617 = vunpack.c.l.b16 %v402
        %v618 = vunpack.c.h.b16 %v402
        %v619 = vunpack.c.l.b16 %v403
        %v620 = vunpack.c.h.b16 %v403
        %v621 = vunpack.c.l.b16 %v404
        %v622 = vunpack.c.h.b16 %v404
        %v623 = vunpack.c.l.b16 %v405
        %v624 = vunpack.c.h.b16 %v405
        %v625 = vunpack.c.l.b16 %v406
        %v626 = vunpack.c.h.b16 %v406
        %v627 = vunpack.c.l.b16 %v407
        %v628 = vunpack.c.h.b16 %v407
        %v629 = vunpack.c.l.b16 %v408
        %v630 = vunpack.c.h.b16 %v408
        %v631 = vunpack.c.l.b16 %v409
        %v632 = vunpack.c.h.b16 %v409
        %v633 = vunpack.c.l.b16 %v410
        %v634 = vunpack.c.h.b16 %v410
        %v635 = vunpack.c.l.b16 %v411
        %v636 = vunpack.c.h.b16 %v411
        %v637 = vunpack.c.l.b16 %v412
        %v638 = vunpack.c.h.b16 %v412
        %v639 = vunpack.c.l.b16 %v413
        %v640 = vunpack.c.h.b16 %v413
        %v641 = vunpack.c.l.b16 %v414
        %v642 = vunpack.c.h.b16 %v414
        %v643 = vunpack.c.l.b16 %v415
        %v644 = vunpack.c.h.b16 %v415
        %v645 = vunpack.c.l.b16 %v416
        %v646 = vunpack.c.h.b16 %v416
        %v647 = vunpack.c.l.b16 %v417
        %v648 = vunpack.c.h.b16 %v417
        %v649 = vunpack.c.l.b16 %v418
        %v650 = vunpack.c.h.b16 %v418
        %v651 = vunpack.c.l.b16 %v419
        %v652 = vunpack.c.h.b16 %v419
        %v653 = vunpack.c.l.b16 %v420
        %v654 = vunpack.c.h.b16 %v420
        %v655 = vunpack.c.l.b16 %v421
        %v656 = vunpack.c.h.b16 %v421
        %v657 = vunpack.c.l.b16 %v422
        %v658 = vunpack.c.h.b16 %v422
        %v659 = vunpack.c.l.b16 %v423
        %v660 = vunpack.c.h.b16 %v423
        %v661 = vunpack.c.l.b16 %v424
        %v662 = vunpack.c.h.b16 %v424
        %v663 = vunpack.c.l.b16 %v425
        %v664 = vunpack.c.h.b16 %v425
        %v665 = vunpack.c.l.b16 %v426
        %v666 = vunpack.c.h.b16 %v426
        %v667 = vunpack.c.l.b16 %v427
        %v668 = vunpack.c.h.b16 %v427
        %v669 = vunpack.c.l.b16 %v428
        %v670 = vunpack.c.h.b16 %v428
        %v671 = vunpack.c.l.b16 %v429
        %v672 = vunpack.c.h.b16 %v429
        %v673 = vunpack.c.l.b16 %v430
        %v674 = vunpack.c.h.b16 %v430
        %v675 = vunpack.c.l.b16 %v431
        %v676 = vunpack.c.h.b16 %v431
        %v677 = vunpack.c.l.b16 %v432
        %v678 = vunpack.c.h.b16 %v432
        %v679 = vpack.c.b16 %v535, %v519
        %v680 = vpack.c.b16 %v536, %v520
        %v681 = vpack.c.b16 %v537, %v521
        %v682 = vpack.c.b16 %v538, %v522
        %v683 = vpack.c.b16 %v539, %v523
        %v684 = vpack.c.b16 %v540, %v524
        %v685 = vpack.c.b16 %v541, %v525
        %v686 = vpack.c.b16 %v542, %v526
        %v687 = vpack.c.b16 %v543, %v527
        %v688 = vpack.c.b16 %v544, %v528
        %v689 = vpack.c.b16 %v545, %v529
        %v690 = vpack.c.b16 %v546, %v530
        %v691 = vpack.c.b16 %v547, %v531
        %v692 = vpack.c.b16 %v548, %v532
        %v693 = vpack.c.b16 %v549, %v533
        %v694 = vpack.c.b16 %v550, %v534
        %v695 = vpack.c.b16 %v567, %v551
        %v696 = vpack.c.b16 %v568, %v552
        %v697 = vpack.c.b16 %v569, %v553
        %v698 = vpack.c.b16 %v570, %v554
        %v699 = vpack.c.b16 %v571, %v555
        %v700 = vpack.c.b16 %v572, %v556
        %v701 = vpack.c.b16 %v573, %v557
        %v702 = vpack.c.b16 %v574, %v558
        %v703 = vpack.c.b16 %v575, %v559
        %v704 = vpack.c.b16 %v576, %v560
        %v705 = vpack.c.b16 %v577, %v561
        %v706 = vpack.c.b16 %v578, %v562
        %v707 = vpack.c.b16 %v579, %v563
        %v708 = vpack.c.b16 %v580, %v564
        %v709 = vpack.c.b16 %v581, %v565
        %v710 = vpack.c.b16 %v582, %v566
        %v711 = vpack.c.b16 %v599, %v583
        %v712 = vpack.c.b16 %v600, %v584
        %v713 = vpack.c.b16 %v601, %v585
        %v714 = vpack.c.b16 %v602, %v586
        %v715 = vpack.c.b16 %v603, %v587
        %v716 = vpack.c.b16 %v604, %v588
        %v717 = vpack.c.b16 %v605, %v589
        %v718 = vpack.c.b16 %v606, %v590
        %v719 = vpack.c.b16 %v607, %v591
        %v720 = vpack.c.b16 %v608, %v592
        %v721 = vpack.c.b16 %v609, %v593
        %v722 = vpack.c.b16 %v610, %v594
        %v723 = vpack.c.b16 %v611, %v595
        %v724 = vpack.c.b16 %v612, %v596
        %v725 = vpack.c.b16 %v613, %v597
        %v726 = vpack.c.b16 %v614, %v598
        %v727 = vpack.c.b16 %v631, %v615
        %v728 = vpack.c.b16 %v632, %v616
        %v729 = vpack.c.b16 %v633, %v617
        %v730 = vpack.c.b16 %v634, %v618
        %v731 = vpack.c.b16 %v635, %v619
        %v732 = vpack.c.b16 %v636, %v620
        %v733 = vpack.c.b16 %v637, %v621
        %v734 = vpack.c.b16 %v638, %v622
        %v735 = vpack.c.b16 %v639, %v623
        %v736 = vpack.c.b16 %v640, %v624
        %v737 = vpack.c.b16 %v641, %v625
        %v738 = vpack.c.b16 %v642, %v626
        %v739 = vpack.c.b16 %v643, %v627
        %v740 = vpack.c.b16 %v644, %v628
        %v741 = vpack.c.b16 %v645, %v629
        %v742 = vpack.c.b16 %v646, %v630
        %v743 = vpack.c.b16 %v663, %v647
        %v744 = vpack.c.b16 %v664, %v648
        %v745 = vpack.c.b16 %v665, %v649
        %v746 = vpack.c.b16 %v666, %v650
        %v747 = vpack.c.b16 %v667, %v651
        %v748 = vpack.c.b16 %v668, %v652
        %v749 = vpack.c.b16 %v669, %v653
        %v750 = vpack.c.b16 %v670, %v654
        %v751 = vpack.c.b16 %v671, %v655
        %v752 = vpack.c.b16 %v672, %v656
        %v753 = vpack.c.b16 %v673, %v657
        %v754 = vpack.c.b16 %v674, %v658
        %v755 = vpack.c.b16 %v675, %v659
        %v756 = vpack.c.b16 %v676, %v660
        %v757 = vpack.c.b16 %v677, %v661
        %v758 = vpack.c.b16 %v678, %v662
        %vm823 = vcmask 613376
        %v825 = vsel %vm823, %v352, 0
        %vm827 = vcmask 1044480
        %vm828 = vcmask 1045504
        %v829 = vsel %vm827, 4294967295, 65535
        %v830 = vsel %vm828, %v829, 0
        %v832 = vand.u32 %v743, %v830
        %v835 = vand.u32 %v744, %v830
        %v838 = vand.u32 %v745, %v830
        %v841 = vand.u32 %v746, %v830
        %v844 = vand.u32 %v747, %v830
        %v847 = vand.u32 %v748, %v830
        %v850 = vand.u32 %v749, %v830
        %v853 = vand.u32 %v750, %v830
        %v856 = vand.u32 %v751, %v830
        %v859 = vand.u32 %v752, %v830
        %v862 = vand.u32 %v753, %v830
        %v865 = vand.u32 %v754, %v830
        %v868 = vand.u32 %v755, %v830
        %v871 = vand.u32 %v756, %v830
        %v874 = vand.u32 %v757, %v830
        %v877 = vand.u32 %v758, %v830
        %879 = vmatprep.subr.bf16.mxu0 %v680
        %880 = vmatpush1.bf16.msra.mxu0 %v679
        %881 = vmatprep.subr.bf16.mxu0 %v696
        %882 = vmatpush1.bf16.msra.mxu0 %v695
        %883 = vmatprep.subr.bf16.mxu0 %v712
        %884 = vmatpush1.bf16.msra.mxu0 %v711
        %885 = vmatprep.subr.bf16.mxu0 %v728
        %886 = vmatpush1.bf16.msra.mxu0 %v727
        %887 = vmatprep.subr.bf16.mxu0 %v835
        %888 = vmatpush1.bf16.msra.mxu0 %v832
        %889 = vmatprep.subr.bf16.mxu0 0
        %890 = vmatpush1.bf16.msra.mxu0 0
        %891 = vmatprep.subr.bf16.mxu0 0
        %892 = vmatpush1.bf16.msra.mxu0 0
        %893 = vmatprep.subr.bf16.mxu0 0
        %894 = vmatpush1.bf16.msra.mxu0 0
        %895 = vmatprep.subr.bf16.mxu0 0
        %896 = vmatpush1.bf16.msra.mxu0 0
        %897 = vmatprep.subr.bf16.mxu0 0
        %898 = vmatpush1.bf16.msra.mxu0 0
        %899 = vmatprep.subr.bf16.mxu0 0
        %900 = vmatpush1.bf16.msra.mxu0 0
        %901 = vmatprep.subr.bf16.mxu0 0
        %902 = vmatpush1.bf16.msra.mxu0 0
        %903 = vmatprep.subr.bf16.mxu0 0
        %904 = vmatpush1.bf16.msra.mxu0 0
        %905 = vmatprep.subr.bf16.mxu0 0
        %906 = vmatpush1.bf16.msra.mxu0 0
        %907 = vmatprep.subr.bf16.mxu0 0
        %908 = vmatpush1.bf16.msra.mxu0 0
        %909 = vmatprep.subr.bf16.mxu0 0
        %910 = vmatpush1.bf16.msra.mxu0 0
        %911 = vmatprep.mubr.bf16.mxu0 0
        %912 = vmatmul.mubr.bf16.gmra.mrb[0].mxu0 %v825
        %v913 = vpop.f32.mrb[0].mxu0
        %v914 = vadd.f32 %v437, %v913
        %v915 = vpop.f32.mrb[0].mxu0
        %v916 = vadd.f32 %v437, %v915
        %v917 = vpop.f32.mrb[0].mxu0
        %v918 = vpop.f32.mrb[0].mxu0
        %919 = vdwg.mxu0
        %920 = vmatprep.subr.bf16.mxu0 %v682
        %921 = vmatpush1.bf16.msra.mxu0 %v681
        %922 = vmatprep.subr.bf16.mxu0 %v698
        %923 = vmatpush1.bf16.msra.mxu0 %v697
        %924 = vmatprep.subr.bf16.mxu0 %v714
        %925 = vmatpush1.bf16.msra.mxu0 %v713
        %926 = vmatprep.subr.bf16.mxu0 %v730
        %927 = vmatpush1.bf16.msra.mxu0 %v729
        %928 = vmatprep.subr.bf16.mxu0 %v841
        %929 = vmatpush1.bf16.msra.mxu0 %v838
        %930 = vmatprep.subr.bf16.mxu0 0
        %931 = vmatpush1.bf16.msra.mxu0 0
        %932 = vmatprep.subr.bf16.mxu0 0
        %933 = vmatpush1.bf16.msra.mxu0 0
        %934 = vmatprep.subr.bf16.mxu0 0
        %935 = vmatpush1.bf16.msra.mxu0 0
        %936 = vmatprep.subr.bf16.mxu0 0
        %937 = vmatpush1.bf16.msra.mxu0 0
        %938 = vmatprep.subr.bf16.mxu0 0
        %939 = vmatpush1.bf16.msra.mxu0 0
        %940 = vmatprep.subr.bf16.mxu0 0
        %941 = vmatpush1.bf16.msra.mxu0 0
        %942 = vmatprep.subr.bf16.mxu0 0
        %943 = vmatpush1.bf16.msra.mxu0 0
        %944 = vmatprep.subr.bf16.mxu0 0
        %945 = vmatpush1.bf16.msra.mxu0 0
        %946 = vmatprep.subr.bf16.mxu0 0
        %947 = vmatpush1.bf16.msra.mxu0 0
        %948 = vmatprep.subr.bf16.mxu0 0
        %949 = vmatpush1.bf16.msra.mxu0 0
        %950 = vmatprep.subr.bf16.mxu0 0
        %951 = vmatpush1.bf16.msra.mxu0 0
        %952 = vmatprep.mubr.bf16.mxu0 0
        %953 = vmatmul.mubr.bf16.gmra.mrb[0].mxu0 %v825
        %v954 = vpop.f32.mrb[0].mxu0
        %v955 = vadd.f32 %v437, %v954
        %v956 = vpop.f32.mrb[0].mxu0
        %v957 = vadd.f32 %v437, %v956
        %v958 = vpop.f32.mrb[0].mxu0
        %v959 = vpop.f32.mrb[0].mxu0
        %960 = vdwg.mxu0
        %961 = vmatprep.subr.bf16.mxu0 %v684
        %962 = vmatpush1.bf16.msra.mxu0 %v683
        %963 = vmatprep.subr.bf16.mxu0 %v700
        %964 = vmatpush1.bf16.msra.mxu0 %v699
        %965 = vmatprep.subr.bf16.mxu0 %v716
        %966 = vmatpush1.bf16.msra.mxu0 %v715
        %967 = vmatprep.subr.bf16.mxu0 %v732
        %968 = vmatpush1.bf16.msra.mxu0 %v731
        %969 = vmatprep.subr.bf16.mxu0 %v847
        %970 = vmatpush1.bf16.msra.mxu0 %v844
        %971 = vmatprep.subr.bf16.mxu0 0
        %972 = vmatpush1.bf16.msra.mxu0 0
        %973 = vmatprep.subr.bf16.mxu0 0
        %974 = vmatpush1.bf16.msra.mxu0 0
        %975 = vmatprep.subr.bf16.mxu0 0
        %976 = vmatpush1.bf16.msra.mxu0 0
        %977 = vmatprep.subr.bf16.mxu0 0
        %978 = vmatpush1.bf16.msra.mxu0 0
        %979 = vmatprep.subr.bf16.mxu0 0
        %980 = vmatpush1.bf16.msra.mxu0 0
        %981 = vmatprep.subr.bf16.mxu0 0
        %982 = vmatpush1.bf16.msra.mxu0 0
        %983 = vmatprep.subr.bf16.mxu0 0
        %984 = vmatpush1.bf16.msra.mxu0 0
        %985 = vmatprep.subr.bf16.mxu0 0
        %986 = vmatpush1.bf16.msra.mxu0 0
        %987 = vmatprep.subr.bf16.mxu0 0
        %988 = vmatpush1.bf16.msra.mxu0 0
        %989 = vmatprep.subr.bf16.mxu0 0
        %990 = vmatpush1.bf16.msra.mxu0 0
        %991 = vmatprep.subr.bf16.mxu0 0
        %992 = vmatpush1.bf16.msra.mxu0 0
        %993 = vmatprep.mubr.bf16.mxu0 0
        %994 = vmatmul.mubr.bf16.gmra.mrb[0].mxu0 %v825
        %v995 = vpop.f32.mrb[0].mxu0
        %v996 = vadd.f32 %v437, %v995
        %v997 = vpop.f32.mrb[0].mxu0
        %v998 = vadd.f32 %v437, %v997
        %v999 = vpop.f32.mrb[0].mxu0
        %v1000 = vpop.f32.mrb[0].mxu0
        %1001 = vdwg.mxu0
        %1002 = vmatprep.subr.bf16.mxu0 %v686
        %1003 = vmatpush1.bf16.msra.mxu0 %v685
        %1004 = vmatprep.subr.bf16.mxu0 %v702
        %1005 = vmatpush1.bf16.msra.mxu0 %v701
        %1006 = vmatprep.subr.bf16.mxu0 %v718
        %1007 = vmatpush1.bf16.msra.mxu0 %v717
        %1008 = vmatprep.subr.bf16.mxu0 %v734
        %1009 = vmatpush1.bf16.msra.mxu0 %v733
        %1010 = vmatprep.subr.bf16.mxu0 %v853
        %1011 = vmatpush1.bf16.msra.mxu0 %v850
        %1012 = vmatprep.subr.bf16.mxu0 0
        %1013 = vmatpush1.bf16.msra.mxu0 0
        %1014 = vmatprep.subr.bf16.mxu0 0
        %1015 = vmatpush1.bf16.msra.mxu0 0
        %1016 = vmatprep.subr.bf16.mxu0 0
        %1017 = vmatpush1.bf16.msra.mxu0 0
        %1018 = vmatprep.subr.bf16.mxu0 0
        %1019 = vmatpush1.bf16.msra.mxu0 0
        %1020 = vmatprep.subr.bf16.mxu0 0
        %1021 = vmatpush1.bf16.msra.mxu0 0
        %1022 = vmatprep.subr.bf16.mxu0 0
        %1023 = vmatpush1.bf16.msra.mxu0 0
        %1024 = vmatprep.subr.bf16.mxu0 0
        %1025 = vmatpush1.bf16.msra.mxu0 0
        %1026 = vmatprep.subr.bf16.mxu0 0
        %1027 = vmatpush1.bf16.msra.mxu0 0
        %1028 = vmatprep.subr.bf16.mxu0 0
        %1029 = vmatpush1.bf16.msra.mxu0 0
        %1030 = vmatprep.subr.bf16.mxu0 0
        %1031 = vmatpush1.bf16.msra.mxu0 0
        %1032 = vmatprep.subr.bf16.mxu0 0
        %1033 = vmatpush1.bf16.msra.mxu0 0
        %1034 = vmatprep.mubr.bf16.mxu0 0
        %1035 = vmatmul.mubr.bf16.gmra.mrb[0].mxu0 %v825
        %v1036 = vpop.f32.mrb[0].mxu0
        %v1037 = vadd.f32 %v437, %v1036
        %v1038 = vpop.f32.mrb[0].mxu0
        %v1039 = vadd.f32 %v437, %v1038
        %v1040 = vpop.f32.mrb[0].mxu0
        %v1041 = vpop.f32.mrb[0].mxu0
        %1042 = vdwg.mxu0
        %1043 = vmatprep.subr.bf16.mxu0 %v688
        %1044 = vmatpush1.bf16.msra.mxu0 %v687
        %1045 = vmatprep.subr.bf16.mxu0 %v704
        %1046 = vmatpush1.bf16.msra.mxu0 %v703
        %1047 = vmatprep.subr.bf16.mxu0 %v720
        %1048 = vmatpush1.bf16.msra.mxu0 %v719
        %1049 = vmatprep.subr.bf16.mxu0 %v736
        %1050 = vmatpush1.bf16.msra.mxu0 %v735
        %1051 = vmatprep.subr.bf16.mxu0 %v859
        %1052 = vmatpush1.bf16.msra.mxu0 %v856
        %1053 = vmatprep.subr.bf16.mxu0 0
        %1054 = vmatpush1.bf16.msra.mxu0 0
        %1055 = vmatprep.subr.bf16.mxu0 0
        %1056 = vmatpush1.bf16.msra.mxu0 0
        %1057 = vmatprep.subr.bf16.mxu0 0
        %1058 = vmatpush1.bf16.msra.mxu0 0
        %1059 = vmatprep.subr.bf16.mxu0 0
        %1060 = vmatpush1.bf16.msra.mxu0 0
        %1061 = vmatprep.subr.bf16.mxu0 0
        %1062 = vmatpush1.bf16.msra.mxu0 0
        %1063 = vmatprep.subr.bf16.mxu0 0
        %1064 = vmatpush1.bf16.msra.mxu0 0
        %1065 = vmatprep.subr.bf16.mxu0 0
        %1066 = vmatpush1.bf16.msra.mxu0 0
        %1067 = vmatprep.subr.bf16.mxu0 0
        %1068 = vmatpush1.bf16.msra.mxu0 0
        %1069 = vmatprep.subr.bf16.mxu0 0
        %1070 = vmatpush1.bf16.msra.mxu0 0
        %1071 = vmatprep.subr.bf16.mxu0 0
        %1072 = vmatpush1.bf16.msra.mxu0 0
        %1073 = vmatprep.subr.bf16.mxu0 0
        %1074 = vmatpush1.bf16.msra.mxu0 0
        %1075 = vmatprep.mubr.bf16.mxu0 0
        %1076 = vmatmul.mubr.bf16.gmra.mrb[0].mxu0 %v825
        %v1077 = vpop.f32.mrb[0].mxu0
        %v1078 = vadd.f32 %v437, %v1077
        %v1079 = vpop.f32.mrb[0].mxu0
        %v1080 = vadd.f32 %v437, %v1079
        %v1081 = vpop.f32.mrb[0].mxu0
        %v1082 = vpop.f32.mrb[0].mxu0
        %1083 = vdwg.mxu0
        %1084 = vmatprep.subr.bf16.mxu0 %v690
        %1085 = vmatpush1.bf16.msra.mxu0 %v689
        %1086 = vmatprep.subr.bf16.mxu0 %v706
        %1087 = vmatpush1.bf16.msra.mxu0 %v705
        %1088 = vmatprep.subr.bf16.mxu0 %v722
        %1089 = vmatpush1.bf16.msra.mxu0 %v721
        %1090 = vmatprep.subr.bf16.mxu0 %v738
        %1091 = vmatpush1.bf16.msra.mxu0 %v737
        %1092 = vmatprep.subr.bf16.mxu0 %v865
        %1093 = vmatpush1.bf16.msra.mxu0 %v862
        %1094 = vmatprep.subr.bf16.mxu0 0
        %1095 = vmatpush1.bf16.msra.mxu0 0
        %1096 = vmatprep.subr.bf16.mxu0 0
        %1097 = vmatpush1.bf16.msra.mxu0 0
        %1098 = vmatprep.subr.bf16.mxu0 0
        %1099 = vmatpush1.bf16.msra.mxu0 0
        %1100 = vmatprep.subr.bf16.mxu0 0
        %1101 = vmatpush1.bf16.msra.mxu0 0
        %1102 = vmatprep.subr.bf16.mxu0 0
        %1103 = vmatpush1.bf16.msra.mxu0 0
        %1104 = vmatprep.subr.bf16.mxu0 0
        %1105 = vmatpush1.bf16.msra.mxu0 0
        %1106 = vmatprep.subr.bf16.mxu0 0
        %1107 = vmatpush1.bf16.msra.mxu0 0
        %1108 = vmatprep.subr.bf16.mxu0 0
        %1109 = vmatpush1.bf16.msra.mxu0 0
        %1110 = vmatprep.subr.bf16.mxu0 0
        %1111 = vmatpush1.bf16.msra.mxu0 0
        %1112 = vmatprep.subr.bf16.mxu0 0
        %1113 = vmatpush1.bf16.msra.mxu0 0
        %1114 = vmatprep.subr.bf16.mxu0 0
        %1115 = vmatpush1.bf16.msra.mxu0 0
        %1116 = vmatprep.mubr.bf16.mxu0 0
        %1117 = vmatmul.mubr.bf16.gmra.mrb[0].mxu0 %v825
        %v1118 = vpop.f32.mrb[0].mxu0
        %v1119 = vadd.f32 %v437, %v1118
        %v1120 = vpop.f32.mrb[0].mxu0
        %v1121 = vadd.f32 %v437, %v1120
        %v1122 = vpop.f32.mrb[0].mxu0
        %v1123 = vpop.f32.mrb[0].mxu0
        %1124 = vdwg.mxu0
        %1125 = vmatprep.subr.bf16.mxu0 %v692
        %1126 = vmatpush1.bf16.msra.mxu0 %v691
        %1127 = vmatprep.subr.bf16.mxu0 %v708
        %1128 = vmatpush1.bf16.msra.mxu0 %v707
        %1129 = vmatprep.subr.bf16.mxu0 %v724
        %1130 = vmatpush1.bf16.msra.mxu0 %v723
        %1131 = vmatprep.subr.bf16.mxu0 %v740
        %1132 = vmatpush1.bf16.msra.mxu0 %v739
        %1133 = vmatprep.subr.bf16.mxu0 %v871
        %1134 = vmatpush1.bf16.msra.mxu0 %v868
        %1135 = vmatprep.subr.bf16.mxu0 0
        %1136 = vmatpush1.bf16.msra.mxu0 0
        %1137 = vmatprep.subr.bf16.mxu0 0
        %1138 = vmatpush1.bf16.msra.mxu0 0
        %1139 = vmatprep.subr.bf16.mxu0 0
        %1140 = vmatpush1.bf16.msra.mxu0 0
        %1141 = vmatprep.subr.bf16.mxu0 0
        %1142 = vmatpush1.bf16.msra.mxu0 0
        %1143 = vmatprep.subr.bf16.mxu0 0
        %1144 = vmatpush1.bf16.msra.mxu0 0
        %1145 = vmatprep.subr.bf16.mxu0 0
        %1146 = vmatpush1.bf16.msra.mxu0 0
        %1147 = vmatprep.subr.bf16.mxu0 0
        %1148 = vmatpush1.bf16.msra.mxu0 0
        %1149 = vmatprep.subr.bf16.mxu0 0
        %1150 = vmatpush1.bf16.msra.mxu0 0
        %1151 = vmatprep.subr.bf16.mxu0 0
        %1152 = vmatpush1.bf16.msra.mxu0 0
        %1153 = vmatprep.subr.bf16.mxu0 0
        %1154 = vmatpush1.bf16.msra.mxu0 0
        %1155 = vmatprep.subr.bf16.mxu0 0
        %1156 = vmatpush1.bf16.msra.mxu0 0
        %1157 = vmatprep.mubr.bf16.mxu0 0
        %1158 = vmatmul.mubr.bf16.gmra.mrb[0].mxu0 %v825
        %v1159 = vpop.f32.mrb[0].mxu0
        %v1160 = vadd.f32 %v437, %v1159
        %v1161 = vpop.f32.mrb[0].mxu0
        %v1162 = vadd.f32 %v437, %v1161
        %v1163 = vpop.f32.mrb[0].mxu0
        %v1164 = vpop.f32.mrb[0].mxu0
        %1165 = vdwg.mxu0
        %1166 = vmatprep.subr.bf16.mxu0 %v694
        %1167 = vmatpush1.bf16.msra.mxu0 %v693
        %1168 = vmatprep.subr.bf16.mxu0 %v710
        %1169 = vmatpush1.bf16.msra.mxu0 %v709
        %1170 = vmatprep.subr.bf16.mxu0 %v726
        %1171 = vmatpush1.bf16.msra.mxu0 %v725
        %1172 = vmatprep.subr.bf16.mxu0 %v742
        %1173 = vmatpush1.bf16.msra.mxu0 %v741
        %1174 = vmatprep.subr.bf16.mxu0 %v877
        %1175 = vmatpush1.bf16.msra.mxu0 %v874
        %1176 = vmatprep.subr.bf16.mxu0 0
        %1177 = vmatpush1.bf16.msra.mxu0 0
        %1178 = vmatprep.subr.bf16.mxu0 0
        %1179 = vmatpush1.bf16.msra.mxu0 0
        %1180 = vmatprep.subr.bf16.mxu0 0
        %1181 = vmatpush1.bf16.msra.mxu0 0
        %1182 = vmatprep.subr.bf16.mxu0 0
        %1183 = vmatpush1.bf16.msra.mxu0 0
        %1184 = vmatprep.subr.bf16.mxu0 0
        %1185 = vmatpush1.bf16.msra.mxu0 0
        %1186 = vmatprep.subr.bf16.mxu0 0
        %1187 = vmatpush1.bf16.msra.mxu0 0
        %1188 = vmatprep.subr.bf16.mxu0 0
        %1189 = vmatpush1.bf16.msra.mxu0 0
        %1190 = vmatprep.subr.bf16.mxu0 0
        %1191 = vmatpush1.bf16.msra.mxu0 0
        %1192 = vmatprep.subr.bf16.mxu0 0
        %1193 = vmatpush1.bf16.msra.mxu0 0
        %1194 = vmatprep.subr.bf16.mxu0 0
        %1195 = vmatpush1.bf16.msra.mxu0 0
        %1196 = vmatprep.subr.bf16.mxu0 0
        %1197 = vmatpush1.bf16.msra.mxu0 0
        %1198 = vmatprep.mubr.bf16.mxu0 0
        %1199 = vmatmul.mubr.bf16.gmra.mrb[0].mxu0 %v825
        %v1200 = vpop.f32.mrb[0].mxu0
        %v1201 = vadd.f32 %v437, %v1200
        %v1202 = vpop.f32.mrb[0].mxu0
        %v1203 = vadd.f32 %v437, %v1202
        %v1204 = vpop.f32.mrb[0].mxu0
        %v1205 = vpop.f32.mrb[0].mxu0
        %1206 = vdwg.mxu0
        %v1207 = vmax.f32 %v914, 0.0
        %v1208 = vmax.f32 %v916, 0.0
        %v1209 = vmax.f32 %v955, 0.0
        %v1210 = vmax.f32 %v957, 0.0
        %v1211 = vmax.f32 %v996, 0.0
        %v1212 = vmax.f32 %v998, 0.0
        %v1213 = vmax.f32 %v1037, 0.0
        %v1214 = vmax.f32 %v1039, 0.0
        %v1215 = vmax.f32 %v1078, 0.0
        %v1216 = vmax.f32 %v1080, 0.0
        %v1217 = vmax.f32 %v1119, 0.0
        %v1218 = vmax.f32 %v1121, 0.0
        %v1219 = vmax.f32 %v1160, 0.0
        %v1220 = vmax.f32 %v1162, 0.0
        %v1221 = vmax.f32 %v1201, 0.0
        %v1222 = vmax.f32 %v1203, 0.0
        %v1223 = vpack.c.bf16 %v1207, %v1207
        %v1224 = vpack.c.bf16 %v1208, %v1208
        %v1225 = vpack.c.bf16 %v1209, %v1209
        %v1226 = vpack.c.bf16 %v1210, %v1210
        %v1227 = vpack.c.bf16 %v1211, %v1211
        %v1228 = vpack.c.bf16 %v1212, %v1212
        %v1229 = vpack.c.bf16 %v1213, %v1213
        %v1230 = vpack.c.bf16 %v1214, %v1214
        %v1231 = vpack.c.bf16 %v1215, %v1215
        %v1232 = vpack.c.bf16 %v1216, %v1216
        %v1233 = vpack.c.bf16 %v1217, %v1217
        %v1234 = vpack.c.bf16 %v1218, %v1218
        %v1235 = vpack.c.bf16 %v1219, %v1219
        %v1236 = vpack.c.bf16 %v1220, %v1220
        %v1237 = vpack.c.bf16 %v1221, %v1221
        %v1238 = vpack.c.bf16 %v1222, %v1222
        %v1255 = vunpack.c.l.b16 %v1223
        %v1256 = vunpack.c.l.b16 %v1224
        %v1257 = vunpack.c.l.b16 %v1225
        %v1258 = vunpack.c.l.b16 %v1226
        %v1259 = vunpack.c.l.b16 %v1227
        %v1260 = vunpack.c.l.b16 %v1228
        %v1261 = vunpack.c.l.b16 %v1229
        %v1262 = vunpack.c.l.b16 %v1230
        %v1263 = vunpack.c.l.b16 %v1231
        %v1264 = vunpack.c.l.b16 %v1232
        %v1265 = vunpack.c.l.b16 %v1233
        %v1266 = vunpack.c.l.b16 %v1234
        %v1267 = vunpack.c.l.b16 %v1235
        %v1268 = vunpack.c.l.b16 %v1236
        %v1269 = vunpack.c.l.b16 %v1237
        %v1270 = vunpack.c.l.b16 %v1238
        %v1271 = vpack.c.b16 %v1256, %v1255
        %v1272 = vpack.c.b16 %v1258, %v1257
        %v1273 = vpack.c.b16 %v1260, %v1259
        %v1274 = vpack.c.b16 %v1262, %v1261
        %v1275 = vpack.c.b16 %v1264, %v1263
        %v1276 = vpack.c.b16 %v1266, %v1265
        %v1277 = vpack.c.b16 %v1268, %v1267
        %v1278 = vpack.c.b16 %v1270, %v1269
        %1287 = vst [vmem:[%s349] sm:$0xff] %v1271
        %1288 = vst [vmem:[%s349 + $0x8] sm:$0xff] %v1272
        %1289 = vst [vmem:[%s349 + $0x10] sm:$0xff] %v1273
        %1290 = vst [vmem:[%s349 + $0x18] sm:$0xff] %v1274
        %1291 = vst [vmem:[%s349 + $0x20] sm:$0xff] %v1275
        %1292 = vst [vmem:[%s349 + $0x28] sm:$0xff] %v1276
        %1293 = vst [vmem:[%s349 + $0x30] sm:$0xff] %v1277
        %1294 = vst [vmem:[%s349 + $0x38] sm:$0xff] %v1278
        %s1295 = smul.u32 16, %s14
        %p1296 = scmp.lt.s32.totalorder %s1295, 63
        %s1297 = scalar_select %p1296, %s1295, 63
        %s1298 = smul.addr %s1297, 4
        %s1299 = scalar_lea.vmem %s3, %s1298
        // Predicated region
        $region56: #{_lambda_.5} parent=50 // pred_check
          %p1300 = pneg %p100
        $region57: #{_lambda_.5} parent=50 // pred_check_branch
          %1302 = sbr.rel (%p1300) target = $region59
        $region58: #{_lambda_.5} parent=50 // pred_region
          %s1303 = smul.u32 16, %s14
        $region59: #{_lambda_.5} parent=50 // pred_fallthru
          _
      $region51: #{_lambda_.5} parent=5 // pred_fallthru
        _
      %p1304 = scmp.le.s32.totalorder 2, %s9
      // Predicated region
      $region60: #{_lambda_.5} parent=5 // pred_check
        %p1305 = pneg %p1304
      $region61: #{_lambda_.5} parent=5 // pred_check_branch
        %1307 = sbr.rel (%p1305) target = $region63
      $region62: #{_lambda_.5} parent=5 // pred_region
        %s1308 = ssub.s32 %s9, 2
        // Predicated region
        $region64: #{_lambda_.5} parent=62 // pred_check
          %p1309 = pneg %p106
        $region65: #{_lambda_.5} parent=62 // pred_check_branch
          %1311 = sbr.rel (%p1309) target = $region67
        $region66: #{_lambda_.5} parent=62 // pred_region
          %s1312 = smul.u32 16, %s15
          %p1313 = scmp.lt.s32.totalorder %s1312, 63
          %s1314 = scalar_select %p1313, %s1312, 63
          %s1315 = smul.addr %s1314, 4
          %s1316 = scalar_lea.vmem %s3, %s1315
        $region67: #{_lambda_.5} parent=62 // pred_fallthru
          _
      $region63: #{_lambda_.5} parent=5 // pred_fallthru
        _
    $region6: #{_lambda_.5} parent=1 // loop_footer
      %s13 = sadd.s32 1, %s9
    $region7: #{_lambda_.5} parent=1 // loop_footer_branch
      %8 = sbr.rel target = $region3
    $region8: #{_lambda_.5} parent=1 // loop_exit
      _

// kernel: _lambda_.6
$region0: #{_lambda_.6}
  #allocation0 [shape = 'u32[]', space=smem, size = 0x4, offset = 0x4, fixed_abs, tag = 'smem constant byte address 0x4 - core index']
  #allocation1 [shape = 'u32[144,128]{1,0:T(1,128)}', space=vmem, size = 0x12000, scoped, tag = 'internal scratch']
  %s0 = inlined_call_operand.vmem [shape: bf16[128,2048], index: 0, kind: input, shape index: {}]
  %s1 = inlined_call_operand.vmem [shape: bf16[8,128], index: 1, kind: input, shape index: {}]
  %s2 = inlined_call_operand.vmem [shape: f32[8,1], index: 2, kind: input, shape index: {}]
  %s3 = inlined_call_operand.vmem [shape: bf16[8,2048], index: 3, kind: output, shape index: {}]
  %s4 = sld [smem:[#allocation0]]
  $region68: #{_lambda_.6} parent=0
    _
  %s6 = ssub.s32 1, %s4
  %s7 = scalar_select 0, %s6, %s4
  $region1: #{_lambda_.6} parent=0
    #allocation2 [shape = 'u8[524288]{0}', space=vmem, size = 0x80000, scoped, tag = 'input window, operand 0']
    loop: start=0, step=1, limit=4
    $region2: #{_lambda_.6} parent=1 // loop_pre_header
      _
    $region3: #{_lambda_.6} parent=1 // loop_header
      %s9 = sphi 0, %s13
      %p10 = scmp.ge.s32.totalorder %s9, 4
      %s19 = sphi 0, %s21
      %s22 = sphi 0, %s19
      %s23 = sphi 0, %s22
      %s39 = sphi 0, %s23
      %s43 = sphi 0, %s43
      %s45 = sphi 0, %s43
      %s46 = sphi 0, %s45
      %s60 = sphi 0, %s46
      %s64 = sphi 0, %s64
      %s66 = sphi 0, %s64
      %s67 = sphi 0, %s66
      %s81 = sphi 0, %s67
      %s87 = sphi 0, %s89
      %s90 = sphi 0, %s87
      %s91 = sphi 0, %s90
      %s107 = sphi 0, %s91
    $region4: #{_lambda_.6} parent=1 // loop_header_branch
      %12 = sbr.rel (%p10) target = $region8
    $region5: #{_lambda_.6} parent=1 // loop_body
      %s14 = ssub.s32 %s9, 1
      %s15 = ssub.s32 %s9, 2
      %s16 = sadd.s32 %s9, 1
      %s17 = ssub.s32 %s9, %s16
      %p18 = scmp.eq.s32.totalorder %s17, 0
      %s20 = sadd.s32 %s19, 1
      %s21 = scalar_select %p18, %s19, %s20
      %p24 = pneg %p18
      %p25 = scmp.eq.s32.totalorder %s9, 1
      %p26 = por %p24, %p25
      %p27 = scmp.ne.s32.totalorder %s19, %s22
      %p28 = scmp.eq.s32.totalorder %s9, 0
      %p29 = por %p27, %p28
      %p30 = scmp.ne.s32.totalorder %s19, %s22
      %p31 = scmp.eq.s32.totalorder %s14, 1
      %p32 = por %p30, %p31
      %p33 = scmp.ne.s32.totalorder %s22, %s23
      %p34 = scmp.eq.s32.totalorder %s14, 0
      %p35 = por %p33, %p34
      %p36 = scmp.ne.s32.totalorder %s22, %s23
      %p37 = scmp.eq.s32.totalorder %s15, 1
      %p38 = por %p36, %p37
      %p40 = scmp.ne.s32.totalorder %s23, %s39
      %p41 = scmp.eq.s32.totalorder %s15, 0
      %p42 = por %p40, %p41
      %s44 = sadd.s32 %s43, 1
      %p47 = scmp.eq.s32.totalorder %s9, 1
      %p48 = scmp.ne.s32.totalorder %s43, %s45
      %p49 = scmp.eq.s32.totalorder %s9, 0
      %p50 = por %p48, %p49
      %p51 = scmp.ne.s32.totalorder %s43, %s45
      %p52 = scmp.eq.s32.totalorder %s14, 1
      %p53 = por %p51, %p52
      %p54 = scmp.ne.s32.totalorder %s45, %s46
      %p55 = scmp.eq.s32.totalorder %s14, 0
      %p56 = por %p54, %p55
      %p57 = scmp.ne.s32.totalorder %s45, %s46
      %p58 = scmp.eq.s32.totalorder %s15, 1
      %p59 = por %p57, %p58
      %p61 = scmp.ne.s32.totalorder %s46, %s60
      %p62 = scmp.eq.s32.totalorder %s15, 0
      %p63 = por %p61, %p62
      %s65 = sadd.s32 %s64, 1
      %p68 = scmp.eq.s32.totalorder %s9, 1
      %p69 = scmp.ne.s32.totalorder %s64, %s66
      %p70 = scmp.eq.s32.totalorder %s9, 0
      %p71 = por %p69, %p70
      %p72 = scmp.ne.s32.totalorder %s64, %s66
      %p73 = scmp.eq.s32.totalorder %s14, 1
      %p74 = por %p72, %p73
      %p75 = scmp.ne.s32.totalorder %s66, %s67
      %p76 = scmp.eq.s32.totalorder %s14, 0
      %p77 = por %p75, %p76
      %p78 = scmp.ne.s32.totalorder %s66, %s67
      %p79 = scmp.eq.s32.totalorder %s15, 1
      %p80 = por %p78, %p79
      %p82 = scmp.ne.s32.totalorder %s67, %s81
      %p83 = scmp.eq.s32.totalorder %s15, 0
      %p84 = por %p82, %p83
      %s85 = ssub.s32 %s9, %s16
      %p86 = scmp.eq.s32.totalorder %s85, 0
      %s88 = sadd.s32 %s87, 1
      %s89 = scalar_select %p86, %s87, %s88
      %p92 = pneg %p86
      %p93 = scmp.eq.s32.totalorder %s9, 1
      %p94 = por %p92, %p93
      %p95 = scmp.ne.s32.totalorder %s87, %s90
      %p96 = scmp.eq.s32.totalorder %s9, 0
      %p97 = por %p95, %p96
      %p98 = scmp.ne.s32.totalorder %s87, %s90
      %p99 = scmp.eq.s32.totalorder %s14, 1
      %p100 = por %p98, %p99
      %p101 = scmp.ne.s32.totalorder %s90, %s91
      %p102 = scmp.eq.s32.totalorder %s14, 0
      %p103 = por %p101, %p102
      %p104 = scmp.ne.s32.totalorder %s90, %s91
      %p105 = scmp.eq.s32.totalorder %s15, 1
      %p106 = por %p104, %p105
      %p108 = scmp.ne.s32.totalorder %s91, %s107
      %p109 = scmp.eq.s32.totalorder %s15, 0
      %p110 = por %p108, %p109
      %p111 = scmp.le.s32.totalorder 1, %s9
      %p112 = scmp.lt.s32.totalorder %s9, 3
      %p113 = pnand %p111, %p112
      %p114 = pneg %p113
      // Predicated region
      $region9: #{_lambda_.6} parent=5 // pred_check
        _
      $region10: #{_lambda_.6} parent=5 // pred_check_branch
        %116 = sbr.rel (%p113) target = $region12
      $region11: #{_lambda_.6} parent=5 // pred_region
        %s117 = ssub.s32 %s9, 1
        // Predicated region
        $region13: #{_lambda_.6} parent=11 // pred_check
          %p118 = pneg %p56
        $region14: #{_lambda_.6} parent=11 // pred_check_branch
          %120 = sbr.rel (%p118) target = $region16
        $region15: #{_lambda_.6} parent=11 // pred_region
          _
        $region16: #{_lambda_.6} parent=11 // pred_fallthru
          _
        // Predicated region
        $region17: #{_lambda_.6} parent=11 // pred_check
          %p121 = pneg %p77
        $region18: #{_lambda_.6} parent=11 // pred_check_branch
          %123 = sbr.rel (%p121) target = $region20
        $region19: #{_lambda_.6} parent=11 // pred_region
          _
        $region20: #{_lambda_.6} parent=11 // pred_fallthru
          _
      $region12: #{_lambda_.6} parent=5 // pred_fallthru
        _
      %p124 = scmp.lt.s32.totalorder %s9, 2
      // Predicated region
      $region21: #{_lambda_.6} parent=5 // pred_check
        %p125 = pneg %p124
      $region22: #{_lambda_.6} parent=5 // pred_check_branch
        %127 = sbr.rel (%p125) target = $region24
      $region23: #{_lambda_.6} parent=5 // pred_region
        // Predicated region
        $region25: #{_lambda_.6} parent=23 // pred_check
          %p128 = pneg %p29
        $region26: #{_lambda_.6} parent=23 // pred_check_branch
          %130 = sbr.rel (%p128) target = $region28
        $region27: #{_lambda_.6} parent=23 // pred_region
          %s131 = sand.u32 %s19, 1
          %s132 = sand.u32 %s19, 1
          %s133 = smul.addr %s132, 512
          %s134 = scalar_lea.vmem [#allocation2], %s133
          %s135 = smul.u32 8, %s9
          %s136 = smul.addr %s135, 4
          %s137 = scalar_lea.vmem %s0, %s136
          // Predicated region
          $region29: #{_lambda_.6} parent=27 // pred_check
            _
          $region30: #{_lambda_.6} parent=27 // pred_check_branch
            %139 = sbr.rel (0) target = $region32
          $region31: #{_lambda_.6} parent=27 // pred_region
            // Predicated region
            $region33: #{_lambda_.6} parent=31 // pred_check
              _
            $region34: #{_lambda_.6} parent=31 // pred_check_branch
              %141 = sbr.rel (0) target = $region36
            $region35: #{_lambda_.6} parent=31 // pred_region
              loop: start=0, step=1, limit=1
              $region37: #{_lambda_.6} parent=35 // loop_pre_header
                _
              $region38: #{_lambda_.6} parent=35 // loop_header
                %s143 = sphi 0, %s147
                %p144 = scmp.ge.s32.totalorder %s143, 1
                %s148 = sphi %s137, %s137
                %s149 = sphi %s134, %s134
              $region39: #{_lambda_.6} parent=35 // loop_header_branch
                %146 = sbr.rel (%p144) target = $region43
              $region40: #{_lambda_.6} parent=35 // loop_body
                %v150 = vld [vmem:[%s148] sm:$0xff]
                %151 = vst [vmem:[%s149] sm:$0xff] %v150
                %v152 = vld [vmem:[%s148 + $0x8] sm:$0xff]
                %153 = vst [vmem:[%s149 + $0x8] sm:$0xff] %v152
                %v154 = vld [vmem:[%s148 + $0x10] sm:$0xff]
                %155 = vst [vmem:[%s149 + $0x10] sm:$0xff] %v154
                %v156 = vld [vmem:[%s148 + $0x18] sm:$0xff]
                %157 = vst [vmem:[%s149 + $0x18] sm:$0xff] %v156
                %v158 = vld [vmem:[%s148 + $0x40] sm:$0xff]
                %159 = vst [vmem:[%s149 + $0x20] sm:$0xff] %v158
                %v160 = vld [vmem:[%s148 + $0x48] sm:$0xff]
                %161 = vst [vmem:[%s149 + $0x28] sm:$0xff] %v160
                %v162 = vld [vmem:[%s148 + $0x50] sm:$0xff]
                %163 = vst [vmem:[%s149 + $0x30] sm:$0xff] %v162
                %v164 = vld [vmem:[%s148 + $0x58] sm:$0xff]
                %165 = vst [vmem:[%s149 + $0x38] sm:$0xff] %v164
                %v166 = vld [vmem:[%s148 + $0x80] sm:$0xff]
                %167 = vst [vmem:[%s149 + $0x40] sm:$0xff] %v166
                %v168 = vld [vmem:[%s148 + $0x88] sm:$0xff]
                %169 = vst [vmem:[%s149 + $0x48] sm:$0xff] %v168
                %v170 = vld [vmem:[%s148 + $0x90] sm:$0xff]
                %171 = vst [vmem:[%s149 + $0x50] sm:$0xff] %v170
                %v172 = vld [vmem:[%s148 + $0x98] sm:$0xff]
                %173 = vst [vmem:[%s149 + $0x58] sm:$0xff] %v172
                %v174 = vld [vmem:[%s148 + $0xc0] sm:$0xff]
                %175 = vst [vmem:[%s149 + $0x60] sm:$0xff] %v174
                %v176 = vld [vmem:[%s148 + $0xc8] sm:$0xff]
                %177 = vst [vmem:[%s149 + $0x68] sm:$0xff] %v176
                %v178 = vld [vmem:[%s148 + $0xd0] sm:$0xff]
                %179 = vst [vmem:[%s149 + $0x70] sm:$0xff] %v178
                %v180 = vld [vmem:[%s148 + $0xd8] sm:$0xff]
                %181 = vst [vmem:[%s149 + $0x78] sm:$0xff] %v180
                %v182 = vld [vmem:[%s148 + $0x100] sm:$0xff]
                %183 = vst [vmem:[%s149 + $0x80] sm:$0xff] %v182
                %v184 = vld [vmem:[%s148 + $0x108] sm:$0xff]
                %185 = vst [vmem:[%s149 + $0x88] sm:$0xff] %v184
                %v186 = vld [vmem:[%s148 + $0x110] sm:$0xff]
                %187 = vst [vmem:[%s149 + $0x90] sm:$0xff] %v186
                %v188 = vld [vmem:[%s148 + $0x118] sm:$0xff]
                %189 = vst [vmem:[%s149 + $0x98] sm:$0xff] %v188
                %v190 = vld [vmem:[%s148 + $0x140] sm:$0xff]
                %191 = vst [vmem:[%s149 + $0xa0] sm:$0xff] %v190
                %v192 = vld [vmem:[%s148 + $0x148] sm:$0xff]
                %193 = vst [vmem:[%s149 + $0xa8] sm:$0xff] %v192
                %v194 = vld [vmem:[%s148 + $0x150] sm:$0xff]
                %195 = vst [vmem:[%s149 + $0xb0] sm:$0xff] %v194
                %v196 = vld [vmem:[%s148 + $0x158] sm:$0xff]
                %197 = vst [vmem:[%s149 + $0xb8] sm:$0xff] %v196
                %v198 = vld [vmem:[%s148 + $0x180] sm:$0xff]
                %199 = vst [vmem:[%s149 + $0xc0] sm:$0xff] %v198
                %v200 = vld [vmem:[%s148 + $0x188] sm:$0xff]
                %201 = vst [vmem:[%s149 + $0xc8] sm:$0xff] %v200
                %v202 = vld [vmem:[%s148 + $0x190] sm:$0xff]
                %203 = vst [vmem:[%s149 + $0xd0] sm:$0xff] %v202
                %v204 = vld [vmem:[%s148 + $0x198] sm:$0xff]
                %205 = vst [vmem:[%s149 + $0xd8] sm:$0xff] %v204
                %v206 = vld [vmem:[%s148 + $0x1c0] sm:$0xff]
                %207 = vst [vmem:[%s149 + $0xe0] sm:$0xff] %v206
                %v208 = vld [vmem:[%s148 + $0x1c8] sm:$0xff]
                %209 = vst [vmem:[%s149 + $0xe8] sm:$0xff] %v208
                %v210 = vld [vmem:[%s148 + $0x1d0] sm:$0xff]
                %211 = vst [vmem:[%s149 + $0xf0] sm:$0xff] %v210
                %v212 = vld [vmem:[%s148 + $0x1d8] sm:$0xff]
                %213 = vst [vmem:[%s149 + $0xf8] sm:$0xff] %v212
                %v214 = vld [vmem:[%s148 + $0x200] sm:$0xff]
                %215 = vst [vmem:[%s149 + $0x100] sm:$0xff] %v214
                %v216 = vld [vmem:[%s148 + $0x208] sm:$0xff]
                %217 = vst [vmem:[%s149 + $0x108] sm:$0xff] %v216
                %v218 = vld [vmem:[%s148 + $0x210] sm:$0xff]
                %219 = vst [vmem:[%s149 + $0x110] sm:$0xff] %v218
                %v220 = vld [vmem:[%s148 + $0x218] sm:$0xff]
                %221 = vst [vmem:[%s149 + $0x118] sm:$0xff] %v220
                %v222 = vld [vmem:[%s148 + $0x240] sm:$0xff]
                %223 = vst [vmem:[%s149 + $0x120] sm:$0xff] %v222
                %v224 = vld [vmem:[%s148 + $0x248] sm:$0xff]
                %225 = vst [vmem:[%s149 + $0x128] sm:$0xff] %v224
                %v226 = vld [vmem:[%s148 + $0x250] sm:$0xff]
                %227 = vst [vmem:[%s149 + $0x130] sm:$0xff] %v226
                %v228 = vld [vmem:[%s148 + $0x258] sm:$0xff]
                %229 = vst [vmem:[%s149 + $0x138] sm:$0xff] %v228
                %v230 = vld [vmem:[%s148 + $0x280] sm:$0xff]
                %231 = vst [vmem:[%s149 + $0x140] sm:$0xff] %v230
                %v232 = vld [vmem:[%s148 + $0x288] sm:$0xff]
                %233 = vst [vmem:[%s149 + $0x148] sm:$0xff] %v232
                %v234 = vld [vmem:[%s148 + $0x290] sm:$0xff]
                %235 = vst [vmem:[%s149 + $0x150] sm:$0xff] %v234
                %v236 = vld [vmem:[%s148 + $0x298] sm:$0xff]
                %237 = vst [vmem:[%s149 + $0x158] sm:$0xff] %v236
                %v238 = vld [vmem:[%s148 + $0x2c0] sm:$0xff]
                %239 = vst [vmem:[%s149 + $0x160] sm:$0xff] %v238
                %v240 = vld [vmem:[%s148 + $0x2c8] sm:$0xff]
                %241 = vst [vmem:[%s149 + $0x168] sm:$0xff] %v240
                %v242 = vld [vmem:[%s148 + $0x2d0] sm:$0xff]
                %243 = vst [vmem:[%s149 + $0x170] sm:$0xff] %v242
                %v244 = vld [vmem:[%s148 + $0x2d8] sm:$0xff]
                %245 = vst [vmem:[%s149 + $0x178] sm:$0xff] %v244
                %v246 = vld [vmem:[%s148 + $0x300] sm:$0xff]
                %247 = vst [vmem:[%s149 + $0x180] sm:$0xff] %v246
                %v248 = vld [vmem:[%s148 + $0x308] sm:$0xff]
                %249 = vst [vmem:[%s149 + $0x188] sm:$0xff] %v248
                %v250 = vld [vmem:[%s148 + $0x310] sm:$0xff]
                %251 = vst [vmem:[%s149 + $0x190] sm:$0xff] %v250
                %v252 = vld [vmem:[%s148 + $0x318] sm:$0xff]
                %253 = vst [vmem:[%s149 + $0x198] sm:$0xff] %v252
                %v254 = vld [vmem:[%s148 + $0x340] sm:$0xff]
                %255 = vst [vmem:[%s149 + $0x1a0] sm:$0xff] %v254
                %v256 = vld [vmem:[%s148 + $0x348] sm:$0xff]
                %257 = vst [vmem:[%s149 + $0x1a8] sm:$0xff] %v256
                %v258 = vld [vmem:[%s148 + $0x350] sm:$0xff]
                %259 = vst [vmem:[%s149 + $0x1b0] sm:$0xff] %v258
                %v260 = vld [vmem:[%s148 + $0x358] sm:$0xff]
                %261 = vst [vmem:[%s149 + $0x1b8] sm:$0xff] %v260
                %v262 = vld [vmem:[%s148 + $0x380] sm:$0xff]
                %263 = vst [vmem:[%s149 + $0x1c0] sm:$0xff] %v262
                %v264 = vld [vmem:[%s148 + $0x388] sm:$0xff]
                %265 = vst [vmem:[%s149 + $0x1c8] sm:$0xff] %v264
                %v266 = vld [vmem:[%s148 + $0x390] sm:$0xff]
                %267 = vst [vmem:[%s149 + $0x1d0] sm:$0xff] %v266
                %v268 = vld [vmem:[%s148 + $0x398] sm:$0xff]
                %269 = vst [vmem:[%s149 + $0x1d8] sm:$0xff] %v268
                %v270 = vld [vmem:[%s148 + $0x3c0] sm:$0xff]
                %271 = vst [vmem:[%s149 + $0x1e0] sm:$0xff] %v270
                %v272 = vld [vmem:[%s148 + $0x3c8] sm:$0xff]
                %273 = vst [vmem:[%s149 + $0x1e8] sm:$0xff] %v272
                %v274 = vld [vmem:[%s148 + $0x3d0] sm:$0xff]
                %275 = vst [vmem:[%s149 + $0x1f0] sm:$0xff] %v274
                %v276 = vld [vmem:[%s148 + $0x3d8] sm:$0xff]
                %277 = vst [vmem:[%s149 + $0x1f8] sm:$0xff] %v276
              $region41: #{_lambda_.6} parent=35 // loop_footer
                %s147 = sadd.s32 1, %s143
              $region42: #{_lambda_.6} parent=35 // loop_footer_branch
                %142 = sbr.rel target = $region38
              $region43: #{_lambda_.6} parent=35 // loop_exit
                _
            $region36: #{_lambda_.6} parent=31 // pred_fallthru
              _
            // Predicated region
            $region44: #{_lambda_.6} parent=31 // pred_check
              _
            $region45: #{_lambda_.6} parent=31 // pred_check_branch
              %279 = sbr.rel target = $region47
            $region46: #{_lambda_.6} parent=31 // pred_region
              _
            $region47: #{_lambda_.6} parent=31 // pred_fallthru
              _
          $region32: #{_lambda_.6} parent=27 // pred_fallthru
            _
          %280 = vnop
        $region28: #{_lambda_.6} parent=23 // pred_fallthru
          _
      $region24: #{_lambda_.6} parent=5 // pred_fallthru
        _
      %p281 = scmp.le.s32.totalorder 1, %s9
      %p282 = scmp.lt.s32.totalorder %s9, 3
      %p283 = pnand %p281, %p282
      %p284 = pneg %p283
      // Predicated region
      $region48: #{_lambda_.6} parent=5 // pred_check
        _
      $region49: #{_lambda_.6} parent=5 // pred_check_branch
        %286 = sbr.rel (%p283) target = $region51
      $region50: #{_lambda_.6} parent=5 // pred_region
        %s287 = ssub.s32 %s9, 1
        %s288 = sand.u32 %s22, 1
        %s289 = sand.u32 %s22, 1
        %s290 = smul.addr %s289, 512
        %s291 = scalar_lea.vmem [#allocation2], %s290
        // Predicated region
        $region52: #{_lambda_.6} parent=50 // pred_check
          %p292 = pneg %p35
        $region53: #{_lambda_.6} parent=50 // pred_check_branch
          %294 = sbr.rel (%p292) target = $region55
        $region54: #{_lambda_.6} parent=50 // pred_region
          _
        $region55: #{_lambda_.6} parent=50 // pred_fallthru
          _
        %s295 = sand.u32 %s22, 1
        %s296 = sand.u32 %s22, 1
        %s297 = smul.addr %s296, 512
        %s298 = scalar_lea.vmem [#allocation2], %s297
        %p299 = pneg %p35
        %p300 = pneg %p32
        %p301 = pneg %p56
        %p302 = pneg %p53
        %p303 = pneg %p77
        %p304 = pneg %p74
        %p305 = pneg %p103
        %p306 = pneg %p100
        %s307 = smul.u32 8, %s14
        %p308 = scmp.lt.s32.totalorder %s307, 15
        %s309 = scalar_select %p308, %s307, 15
        %s310 = smul.addr %s309, 4
        %s311 = scalar_lea.vmem %s3, %s310
        %s312 = smul.u32 8, %s14
        %s313 = smul.u32 8, %s14
        %p314 = scmp.lt.s32.totalorder %s313, 15
        %s315 = scalar_select %p314, %s313, 15
        %s316 = smul.addr %s315, 4
        %s317 = scalar_lea.vmem %s3, %s316
        %s318 = smul.u32 8, %s14
        %v320 = vld [vmem:[%s1] sm:$0xf]
        %v321 = vld [vmem:[%s291] sm:$0xff]
        %v322 = vld [vmem:[%s291 + $0x8] sm:$0xff]
        %v323 = vld [vmem:[%s291 + $0x10] sm:$0xff]
        %v324 = vld [vmem:[%s291 + $0x18] sm:$0xff]
        %v325 = vld [vmem:[%s291 + $0x20] sm:$0xff]
        %v326 = vld [vmem:[%s291 + $0x28] sm:$0xff]
        %v327 = vld [vmem:[%s291 + $0x30] sm:$0xff]
        %v328 = vld [vmem:[%s291 + $0x38] sm:$0xff]
        %v329 = vld [vmem:[%s291 + $0x40] sm:$0xff]
        %v330 = vld [vmem:[%s291 + $0x48] sm:$0xff]
        %v331 = vld [vmem:[%s291 + $0x50] sm:$0xff]
        %v332 = vld [vmem:[%s291 + $0x58] sm:$0xff]
        %v333 = vld [vmem:[%s291 + $0x60] sm:$0xff]
        %v334 = vld [vmem:[%s291 + $0x68] sm:$0xff]
        %v335 = vld [vmem:[%s291 + $0x70] sm:$0xff]
        %v336 = vld [vmem:[%s291 + $0x78] sm:$0xff]
        %v337 = vld [vmem:[%s291 + $0x80] sm:$0xff]
        %v338 = vld [vmem:[%s291 + $0x88] sm:$0xff]
        %v339 = vld [vmem:[%s291 + $0x90] sm:$0xff]
        %v340 = vld [vmem:[%s291 + $0x98] sm:$0xff]
        %v341 = vld [vmem:[%s291 + $0xa0] sm:$0xff]
        %v342 = vld [vmem:[%s291 + $0xa8] sm:$0xff]
        %v343 = vld [vmem:[%s291 + $0xb0] sm:$0xff]
        %v344 = vld [vmem:[%s291 + $0xb8] sm:$0xff]
        %v345 = vld [vmem:[%s291 + $0xc0] sm:$0xff]
        %v346 = vld [vmem:[%s291 + $0xc8] sm:$0xff]
        %v347 = vld [vmem:[%s291 + $0xd0] sm:$0xff]
        %v348 = vld [vmem:[%s291 + $0xd8] sm:$0xff]
        %v349 = vld [vmem:[%s291 + $0xe0] sm:$0xff]
        %v350 = vld [vmem:[%s291 + $0xe8] sm:$0xff]
        %v351 = vld [vmem:[%s291 + $0xf0] sm:$0xff]
        %v352 = vld [vmem:[%s291 + $0xf8] sm:$0xff]
        %v353 = vld [vmem:[%s291 + $0x100] sm:$0xff]
        %v354 = vld [vmem:[%s291 + $0x108] sm:$0xff]
        %v355 = vld [vmem:[%s291 + $0x110] sm:$0xff]
        %v356 = vld [vmem:[%s291 + $0x118] sm:$0xff]
        %v357 = vld [vmem:[%s291 + $0x120] sm:$0xff]
        %v358 = vld [vmem:[%s291 + $0x128] sm:$0xff]
        %v359 = vld [vmem:[%s291 + $0x130] sm:$0xff]
        %v360 = vld [vmem:[%s291 + $0x138] sm:$0xff]
        %v361 = vld [vmem:[%s291 + $0x140] sm:$0xff]
        %v362 = vld [vmem:[%s291 + $0x148] sm:$0xff]
        %v363 = vld [vmem:[%s291 + $0x150] sm:$0xff]
        %v364 = vld [vmem:[%s291 + $0x158] sm:$0xff]
        %v365 = vld [vmem:[%s291 + $0x160] sm:$0xff]
        %v366 = vld [vmem:[%s291 + $0x168] sm:$0xff]
        %v367 = vld [vmem:[%s291 + $0x170] sm:$0xff]
        %v368 = vld [vmem:[%s291 + $0x178] sm:$0xff]
        %v369 = vld [vmem:[%s291 + $0x180] sm:$0xff]
        %v370 = vld [vmem:[%s291 + $0x188] sm:$0xff]
        %v371 = vld [vmem:[%s291 + $0x190] sm:$0xff]
        %v372 = vld [vmem:[%s291 + $0x198] sm:$0xff]
        %v373 = vld [vmem:[%s291 + $0x1a0] sm:$0xff]
        %v374 = vld [vmem:[%s291 + $0x1a8] sm:$0xff]
        %v375 = vld [vmem:[%s291 + $0x1b0] sm:$0xff]
        %v376 = vld [vmem:[%s291 + $0x1b8] sm:$0xff]
        %v377 = vld [vmem:[%s291 + $0x1c0] sm:$0xff]
        %v378 = vld [vmem:[%s291 + $0x1c8] sm:$0xff]
        %v379 = vld [vmem:[%s291 + $0x1d0] sm:$0xff]
        %v380 = vld [vmem:[%s291 + $0x1d8] sm:$0xff]
        %v381 = vld [vmem:[%s291 + $0x1e0] sm:$0xff]
        %v382 = vld [vmem:[%s291 + $0x1e8] sm:$0xff]
        %v383 = vld [vmem:[%s291 + $0x1f0] sm:$0xff]
        %v384 = vld [vmem:[%s291 + $0x1f8] sm:$0xff]
        %v385 = vld [vmem:[%s2] sm:$0xff]
        %387 = vset.pattern.permute.xlu0 0
        %388 = vperm.xlu0 %387, %v385
        %v389 = vpop.permute.xlu0 %388
        %v455 = vunpack.c.l.b16 %v321
        %v456 = vunpack.c.h.b16 %v321
        %v457 = vunpack.c.l.b16 %v322
        %v458 = vunpack.c.h.b16 %v322
        %v459 = vunpack.c.l.b16 %v323
        %v460 = vunpack.c.h.b16 %v323
        %v461 = vunpack.c.l.b16 %v324
        %v462 = vunpack.c.h.b16 %v324
        %v463 = vunpack.c.l.b16 %v325
        %v464 = vunpack.c.h.b16 %v325
        %v465 = vunpack.c.l.b16 %v326
        %v466 = vunpack.c.h.b16 %v326
        %v467 = vunpack.c.l.b16 %v327
        %v468 = vunpack.c.h.b16 %v327
        %v469 = vunpack.c.l.b16 %v328
        %v470 = vunpack.c.h.b16 %v328
        %v471 = vunpack.c.l.b16 %v329
        %v472 = vunpack.c.h.b16 %v329
        %v473 = vunpack.c.l.b16 %v330
        %v474 = vunpack.c.h.b16 %v330
        %v475 = vunpack.c.l.b16 %v331
        %v476 = vunpack.c.h.b16 %v331
        %v477 = vunpack.c.l.b16 %v332
        %v478 = vunpack.c.h.b16 %v332
        %v479 = vunpack.c.l.b16 %v333
        %v480 = vunpack.c.h.b16 %v333
        %v481 = vunpack.c.l.b16 %v334
        %v482 = vunpack.c.h.b16 %v334
        %v483 = vunpack.c.l.b16 %v335
        %v484 = vunpack.c.h.b16 %v335
        %v485 = vunpack.c.l.b16 %v336
        %v486 = vunpack.c.h.b16 %v336
        %v487 = vunpack.c.l.b16 %v337
        %v488 = vunpack.c.h.b16 %v337
        %v489 = vunpack.c.l.b16 %v338
        %v490 = vunpack.c.h.b16 %v338
        %v491 = vunpack.c.l.b16 %v339
        %v492 = vunpack.c.h.b16 %v339
        %v493 = vunpack.c.l.b16 %v340
        %v494 = vunpack.c.h.b16 %v340
        %v495 = vunpack.c.l.b16 %v341
        %v496 = vunpack.c.h.b16 %v341
        %v497 = vunpack.c.l.b16 %v342
        %v498 = vunpack.c.h.b16 %v342
        %v499 = vunpack.c.l.b16 %v343
        %v500 = vunpack.c.h.b16 %v343
        %v501 = vunpack.c.l.b16 %v344
        %v502 = vunpack.c.h.b16 %v344
        %v503 = vunpack.c.l.b16 %v345
        %v504 = vunpack.c.h.b16 %v345
        %v505 = vunpack.c.l.b16 %v346
        %v506 = vunpack.c.h.b16 %v346
        %v507 = vunpack.c.l.b16 %v347
        %v508 = vunpack.c.h.b16 %v347
        %v509 = vunpack.c.l.b16 %v348
        %v510 = vunpack.c.h.b16 %v348
        %v511 = vunpack.c.l.b16 %v349
        %v512 = vunpack.c.h.b16 %v349
        %v513 = vunpack.c.l.b16 %v350
        %v514 = vunpack.c.h.b16 %v350
        %v515 = vunpack.c.l.b16 %v351
        %v516 = vunpack.c.h.b16 %v351
        %v517 = vunpack.c.l.b16 %v352
        %v518 = vunpack.c.h.b16 %v352
        %v519 = vunpack.c.l.b16 %v353
        %v520 = vunpack.c.h.b16 %v353
        %v521 = vunpack.c.l.b16 %v354
        %v522 = vunpack.c.h.b16 %v354
        %v523 = vunpack.c.l.b16 %v355
        %v524 = vunpack.c.h.b16 %v355
        %v525 = vunpack.c.l.b16 %v356
        %v526 = vunpack.c.h.b16 %v356
        %v527 = vunpack.c.l.b16 %v357
        %v528 = vunpack.c.h.b16 %v357
        %v529 = vunpack.c.l.b16 %v358
        %v530 = vunpack.c.h.b16 %v358
        %v531 = vunpack.c.l.b16 %v359
        %v532 = vunpack.c.h.b16 %v359
        %v533 = vunpack.c.l.b16 %v360
        %v534 = vunpack.c.h.b16 %v360
        %v535 = vunpack.c.l.b16 %v361
        %v536 = vunpack.c.h.b16 %v361
        %v537 = vunpack.c.l.b16 %v362
        %v538 = vunpack.c.h.b16 %v362
        %v539 = vunpack.c.l.b16 %v363
        %v540 = vunpack.c.h.b16 %v363
        %v541 = vunpack.c.l.b16 %v364
        %v542 = vunpack.c.h.b16 %v364
        %v543 = vunpack.c.l.b16 %v365
        %v544 = vunpack.c.h.b16 %v365
        %v545 = vunpack.c.l.b16 %v366
        %v546 = vunpack.c.h.b16 %v366
        %v547 = vunpack.c.l.b16 %v367
        %v548 = vunpack.c.h.b16 %v367
        %v549 = vunpack.c.l.b16 %v368
        %v550 = vunpack.c.h.b16 %v368
        %v551 = vunpack.c.l.b16 %v369
        %v552 = vunpack.c.h.b16 %v369
        %v553 = vunpack.c.l.b16 %v370
        %v554 = vunpack.c.h.b16 %v370
        %v555 = vunpack.c.l.b16 %v371
        %v556 = vunpack.c.h.b16 %v371
        %v557 = vunpack.c.l.b16 %v372
        %v558 = vunpack.c.h.b16 %v372
        %v559 = vunpack.c.l.b16 %v373
        %v560 = vunpack.c.h.b16 %v373
        %v561 = vunpack.c.l.b16 %v374
        %v562 = vunpack.c.h.b16 %v374
        %v563 = vunpack.c.l.b16 %v375
        %v564 = vunpack.c.h.b16 %v375
        %v565 = vunpack.c.l.b16 %v376
        %v566 = vunpack.c.h.b16 %v376
        %v567 = vunpack.c.l.b16 %v377
        %v568 = vunpack.c.h.b16 %v377
        %v569 = vunpack.c.l.b16 %v378
        %v570 = vunpack.c.h.b16 %v378
        %v571 = vunpack.c.l.b16 %v379
        %v572 = vunpack.c.h.b16 %v379
        %v573 = vunpack.c.l.b16 %v380
        %v574 = vunpack.c.h.b16 %v380
        %v575 = vunpack.c.l.b16 %v381
        %v576 = vunpack.c.h.b16 %v381
        %v577 = vunpack.c.l.b16 %v382
        %v578 = vunpack.c.h.b16 %v382
        %v579 = vunpack.c.l.b16 %v383
        %v580 = vunpack.c.h.b16 %v383
        %v581 = vunpack.c.l.b16 %v384
        %v582 = vunpack.c.h.b16 %v384
        %v583 = vpack.c.b16 %v463, %v455
        %v584 = vpack.c.b16 %v464, %v456
        %v585 = vpack.c.b16 %v465, %v457
        %v586 = vpack.c.b16 %v466, %v458
        %v587 = vpack.c.b16 %v467, %v459
        %v588 = vpack.c.b16 %v468, %v460
        %v589 = vpack.c.b16 %v469, %v461
        %v590 = vpack.c.b16 %v470, %v462
        %v591 = vpack.c.b16 %v479, %v471
        %v592 = vpack.c.b16 %v480, %v472
        %v593 = vpack.c.b16 %v481, %v473
        %v594 = vpack.c.b16 %v482, %v474
        %v595 = vpack.c.b16 %v483, %v475
        %v596 = vpack.c.b16 %v484, %v476
        %v597 = vpack.c.b16 %v485, %v477
        %v598 = vpack.c.b16 %v486, %v478
        %v599 = vpack.c.b16 %v495, %v487
        %v600 = vpack.c.b16 %v496, %v488
        %v601 = vpack.c.b16 %v497, %v489
        %v602 = vpack.c.b16 %v498, %v490
        %v603 = vpack.c.b16 %v499, %v491
        %v604 = vpack.c.b16 %v500, %v492
        %v605 = vpack.c.b16 %v501, %v493
        %v606 = vpack.c.b16 %v502, %v494
        %v607 = vpack.c.b16 %v511, %v503
        %v608 = vpack.c.b16 %v512, %v504
        %v609 = vpack.c.b16 %v513, %v505
        %v610 = vpack.c.b16 %v514, %v506
        %v611 = vpack.c.b16 %v515, %v507
        %v612 = vpack.c.b16 %v516, %v508
        %v613 = vpack.c.b16 %v517, %v509
        %v614 = vpack.c.b16 %v518, %v510
        %v615 = vpack.c.b16 %v527, %v519
        %v616 = vpack.c.b16 %v528, %v520
        %v617 = vpack.c.b16 %v529, %v521
        %v618 = vpack.c.b16 %v530, %v522
        %v619 = vpack.c.b16 %v531, %v523
        %v620 = vpack.c.b16 %v532, %v524
        %v621 = vpack.c.b16 %v533, %v525
        %v622 = vpack.c.b16 %v534, %v526
        %v623 = vpack.c.b16 %v543, %v535
        %v624 = vpack.c.b16 %v544, %v536
        %v625 = vpack.c.b16 %v545, %v537
        %v626 = vpack.c.b16 %v546, %v538
        %v627 = vpack.c.b16 %v547, %v539
        %v628 = vpack.c.b16 %v548, %v540
        %v629 = vpack.c.b16 %v549, %v541
        %v630 = vpack.c.b16 %v550, %v542
        %v631 = vpack.c.b16 %v559, %v551
        %v632 = vpack.c.b16 %v560, %v552
        %v633 = vpack.c.b16 %v561, %v553
        %v634 = vpack.c.b16 %v562, %v554
        %v635 = vpack.c.b16 %v563, %v555
        %v636 = vpack.c.b16 %v564, %v556
        %v637 = vpack.c.b16 %v565, %v557
        %v638 = vpack.c.b16 %v566, %v558
        %v639 = vpack.c.b16 %v575, %v567
        %v640 = vpack.c.b16 %v576, %v568
        %v641 = vpack.c.b16 %v577, %v569
        %v642 = vpack.c.b16 %v578, %v570
        %v643 = vpack.c.b16 %v579, %v571
        %v644 = vpack.c.b16 %v580, %v572
        %v645 = vpack.c.b16 %v581, %v573
        %v646 = vpack.c.b16 %v582, %v574
        %711 = vmatprep.subr.bf16.mxu0 %v584
        %712 = vmatpush1.bf16.msra.mxu0 %v583
        %713 = vmatprep.subr.bf16.mxu0 %v592
        %714 = vmatpush1.bf16.msra.mxu0 %v591
        %715 = vmatprep.subr.bf16.mxu0 %v600
        %716 = vmatpush1.bf16.msra.mxu0 %v599
        %717 = vmatprep.subr.bf16.mxu0 %v608
        %718 = vmatpush1.bf16.msra.mxu0 %v607
        %719 = vmatprep.subr.bf16.mxu0 %v616
        %720 = vmatpush1.bf16.msra.mxu0 %v615
        %721 = vmatprep.subr.bf16.mxu0 %v624
        %722 = vmatpush1.bf16.msra.mxu0 %v623
        %723 = vmatprep.subr.bf16.mxu0 %v632
        %724 = vmatpush1.bf16.msra.mxu0 %v631
        %725 = vmatprep.subr.bf16.mxu0 %v640
        %726 = vmatpush1.bf16.msra.mxu0 %v639
        %727 = vmatprep.subr.bf16.mxu0 0
        %728 = vmatpush1.bf16.msra.mxu0 0
        %729 = vmatprep.subr.bf16.mxu0 0
        %730 = vmatpush1.bf16.msra.mxu0 0
        %731 = vmatprep.subr.bf16.mxu0 0
        %732 = vmatpush1.bf16.msra.mxu0 0
        %733 = vmatprep.subr.bf16.mxu0 0
        %734 = vmatpush1.bf16.msra.mxu0 0
        %735 = vmatprep.subr.bf16.mxu0 0
        %736 = vmatpush1.bf16.msra.mxu0 0
        %737 = vmatprep.subr.bf16.mxu0 0
        %738 = vmatpush1.bf16.msra.mxu0 0
        %739 = vmatprep.subr.bf16.mxu0 0
        %740 = vmatpush1.bf16.msra.mxu0 0
        %741 = vmatprep.subr.bf16.mxu0 0
        %742 = vmatpush1.bf16.msra.mxu0 0
        %743 = vmatprep.mubr.bf16.mxu0 0
        %744 = vmatmul.mubr.bf16.gmra.mrb[0].mxu0 %v320
        %v745 = vpop.f32.mrb[0].mxu0
        %v746 = vadd.f32 %v389, %v745
        %v747 = vpop.f32.mrb[0].mxu0
        %v748 = vadd.f32 %v389, %v747
        %v749 = vpop.f32.mrb[0].mxu0
        %v750 = vpop.f32.mrb[0].mxu0
        %751 = vdwg.mxu0
        %752 = vmatprep.subr.bf16.mxu0 %v586
        %753 = vmatpush1.bf16.msra.mxu0 %v585
        %754 = vmatprep.subr.bf16.mxu0 %v594
        %755 = vmatpush1.bf16.msra.mxu0 %v593
        %756 = vmatprep.subr.bf16.mxu0 %v602
        %757 = vmatpush1.bf16.msra.mxu0 %v601
        %758 = vmatprep.subr.bf16.mxu0 %v610
        %759 = vmatpush1.bf16.msra.mxu0 %v609
        %760 = vmatprep.subr.bf16.mxu0 %v618
        %761 = vmatpush1.bf16.msra.mxu0 %v617
        %762 = vmatprep.subr.bf16.mxu0 %v626
        %763 = vmatpush1.bf16.msra.mxu0 %v625
        %764 = vmatprep.subr.bf16.mxu0 %v634
        %765 = vmatpush1.bf16.msra.mxu0 %v633
        %766 = vmatprep.subr.bf16.mxu0 %v642
        %767 = vmatpush1.bf16.msra.mxu0 %v641
        %768 = vmatprep.subr.bf16.mxu0 0
        %769 = vmatpush1.bf16.msra.mxu0 0
        %770 = vmatprep.subr.bf16.mxu0 0
        %771 = vmatpush1.bf16.msra.mxu0 0
        %772 = vmatprep.subr.bf16.mxu0 0
        %773 = vmatpush1.bf16.msra.mxu0 0
        %774 = vmatprep.subr.bf16.mxu0 0
        %775 = vmatpush1.bf16.msra.mxu0 0
        %776 = vmatprep.subr.bf16.mxu0 0
        %777 = vmatpush1.bf16.msra.mxu0 0
        %778 = vmatprep.subr.bf16.mxu0 0
        %779 = vmatpush1.bf16.msra.mxu0 0
        %780 = vmatprep.subr.bf16.mxu0 0
        %781 = vmatpush1.bf16.msra.mxu0 0
        %782 = vmatprep.subr.bf16.mxu0 0
        %783 = vmatpush1.bf16.msra.mxu0 0
        %784 = vmatprep.mubr.bf16.mxu0 0
        %785 = vmatmul.mubr.bf16.gmra.mrb[0].mxu0 %v320
        %v786 = vpop.f32.mrb[0].mxu0
        %v787 = vadd.f32 %v389, %v786
        %v788 = vpop.f32.mrb[0].mxu0
        %v789 = vadd.f32 %v389, %v788
        %v790 = vpop.f32.mrb[0].mxu0
        %v791 = vpop.f32.mrb[0].mxu0
        %792 = vdwg.mxu0
        %793 = vmatprep.subr.bf16.mxu0 %v588
        %794 = vmatpush1.bf16.msra.mxu0 %v587
        %795 = vmatprep.subr.bf16.mxu0 %v596
        %796 = vmatpush1.bf16.msra.mxu0 %v595
        %797 = vmatprep.subr.bf16.mxu0 %v604
        %798 = vmatpush1.bf16.msra.mxu0 %v603
        %799 = vmatprep.subr.bf16.mxu0 %v612
        %800 = vmatpush1.bf16.msra.mxu0 %v611
        %801 = vmatprep.subr.bf16.mxu0 %v620
        %802 = vmatpush1.bf16.msra.mxu0 %v619
        %803 = vmatprep.subr.bf16.mxu0 %v628
        %804 = vmatpush1.bf16.msra.mxu0 %v627
        %805 = vmatprep.subr.bf16.mxu0 %v636
        %806 = vmatpush1.bf16.msra.mxu0 %v635
        %807 = vmatprep.subr.bf16.mxu0 %v644
        %808 = vmatpush1.bf16.msra.mxu0 %v643
        %809 = vmatprep.subr.bf16.mxu0 0
        %810 = vmatpush1.bf16.msra.mxu0 0
        %811 = vmatprep.subr.bf16.mxu0 0
        %812 = vmatpush1.bf16.msra.mxu0 0
        %813 = vmatprep.subr.bf16.mxu0 0
        %814 = vmatpush1.bf16.msra.mxu0 0
        %815 = vmatprep.subr.bf16.mxu0 0
        %816 = vmatpush1.bf16.msra.mxu0 0
        %817 = vmatprep.subr.bf16.mxu0 0
        %818 = vmatpush1.bf16.msra.mxu0 0
        %819 = vmatprep.subr.bf16.mxu0 0
        %820 = vmatpush1.bf16.msra.mxu0 0
        %821 = vmatprep.subr.bf16.mxu0 0
        %822 = vmatpush1.bf16.msra.mxu0 0
        %823 = vmatprep.subr.bf16.mxu0 0
        %824 = vmatpush1.bf16.msra.mxu0 0
        %825 = vmatprep.mubr.bf16.mxu0 0
        %826 = vmatmul.mubr.bf16.gmra.mrb[0].mxu0 %v320
        %v827 = vpop.f32.mrb[0].mxu0
        %v828 = vadd.f32 %v389, %v827
        %v829 = vpop.f32.mrb[0].mxu0
        %v830 = vadd.f32 %v389, %v829
        %v831 = vpop.f32.mrb[0].mxu0
        %v832 = vpop.f32.mrb[0].mxu0
        %833 = vdwg.mxu0
        %834 = vmatprep.subr.bf16.mxu0 %v590
        %835 = vmatpush1.bf16.msra.mxu0 %v589
        %836 = vmatprep.subr.bf16.mxu0 %v598
        %837 = vmatpush1.bf16.msra.mxu0 %v597
        %838 = vmatprep.subr.bf16.mxu0 %v606
        %839 = vmatpush1.bf16.msra.mxu0 %v605
        %840 = vmatprep.subr.bf16.mxu0 %v614
        %841 = vmatpush1.bf16.msra.mxu0 %v613
        %842 = vmatprep.subr.bf16.mxu0 %v622
        %843 = vmatpush1.bf16.msra.mxu0 %v621
        %844 = vmatprep.subr.bf16.mxu0 %v630
        %845 = vmatpush1.bf16.msra.mxu0 %v629
        %846 = vmatprep.subr.bf16.mxu0 %v638
        %847 = vmatpush1.bf16.msra.mxu0 %v637
        %848 = vmatprep.subr.bf16.mxu0 %v646
        %849 = vmatpush1.bf16.msra.mxu0 %v645
        %850 = vmatprep.subr.bf16.mxu0 0
        %851 = vmatpush1.bf16.msra.mxu0 0
        %852 = vmatprep.subr.bf16.mxu0 0
        %853 = vmatpush1.bf16.msra.mxu0 0
        %854 = vmatprep.subr.bf16.mxu0 0
        %855 = vmatpush1.bf16.msra.mxu0 0
        %856 = vmatprep.subr.bf16.mxu0 0
        %857 = vmatpush1.bf16.msra.mxu0 0
        %858 = vmatprep.subr.bf16.mxu0 0
        %859 = vmatpush1.bf16.msra.mxu0 0
        %860 = vmatprep.subr.bf16.mxu0 0
        %861 = vmatpush1.bf16.msra.mxu0 0
        %862 = vmatprep.subr.bf16.mxu0 0
        %863 = vmatpush1.bf16.msra.mxu0 0
        %864 = vmatprep.subr.bf16.mxu0 0
        %865 = vmatpush1.bf16.msra.mxu0 0
        %866 = vmatprep.mubr.bf16.mxu0 0
        %867 = vmatmul.mubr.bf16.gmra.mrb[0].mxu0 %v320
        %v868 = vpop.f32.mrb[0].mxu0
        %v869 = vadd.f32 %v389, %v868
        %v870 = vpop.f32.mrb[0].mxu0
        %v871 = vadd.f32 %v389, %v870
        %v872 = vpop.f32.mrb[0].mxu0
        %v873 = vpop.f32.mrb[0].mxu0
        %874 = vdwg.mxu0
        %v875 = vmax.f32 %v746, 0.0
        %v876 = vmax.f32 %v748, 0.0
        %v877 = vmax.f32 %v787, 0.0
        %v878 = vmax.f32 %v789, 0.0
        %v879 = vmax.f32 %v828, 0.0
        %v880 = vmax.f32 %v830, 0.0
        %v881 = vmax.f32 %v869, 0.0
        %v882 = vmax.f32 %v871, 0.0
        %v883 = vpack.c.bf16 %v875, %v875
        %v884 = vpack.c.bf16 %v876, %v876
        %v885 = vpack.c.bf16 %v877, %v877
        %v886 = vpack.c.bf16 %v878, %v878
        %v887 = vpack.c.bf16 %v879, %v879
        %v888 = vpack.c.bf16 %v880, %v880
        %v889 = vpack.c.bf16 %v881, %v881
        %v890 = vpack.c.bf16 %v882, %v882
        %v899 = vunpack.c.l.b16 %v883
        %v900 = vunpack.c.l.b16 %v884
        %v901 = vunpack.c.l.b16 %v885
        %v902 = vunpack.c.l.b16 %v886
        %v903 = vunpack.c.l.b16 %v887
        %v904 = vunpack.c.l.b16 %v888
        %v905 = vunpack.c.l.b16 %v889
        %v906 = vunpack.c.l.b16 %v890
        %v907 = vpack.c.b16 %v900, %v899
        %v908 = vpack.c.b16 %v902, %v901
        %v909 = vpack.c.b16 %v904, %v903
        %v910 = vpack.c.b16 %v906, %v905
        %915 = vst [vmem:[%s317] sm:$0xff] %v907
        %916 = vst [vmem:[%s317 + $0x8] sm:$0xff] %v908
        %917 = vst [vmem:[%s317 + $0x10] sm:$0xff] %v909
        %918 = vst [vmem:[%s317 + $0x18] sm:$0xff] %v910
        %s919 = smul.u32 8, %s14
        %p920 = scmp.lt.s32.totalorder %s919, 15
        %s921 = scalar_select %p920, %s919, 15
        %s922 = smul.addr %s921, 4
        %s923 = scalar_lea.vmem %s3, %s922
        // Predicated region
        $region56: #{_lambda_.6} parent=50 // pred_check
          %p924 = pneg %p100
        $region57: #{_lambda_.6} parent=50 // pred_check_branch
          %926 = sbr.rel (%p924) target = $region59
        $region58: #{_lambda_.6} parent=50 // pred_region
          %s927 = smul.u32 8, %s14
        $region59: #{_lambda_.6} parent=50 // pred_fallthru
          _
      $region51: #{_lambda_.6} parent=5 // pred_fallthru
        _
      %p928 = scmp.le.s32.totalorder 2, %s9
      // Predicated region
      $region60: #{_lambda_.6} parent=5 // pred_check
        %p929 = pneg %p928
      $region61: #{_lambda_.6} parent=5 // pred_check_branch
        %931 = sbr.rel (%p929) target = $region63
      $region62: #{_lambda_.6} parent=5 // pred_region
        %s932 = ssub.s32 %s9, 2
        // Predicated region
        $region64: #{_lambda_.6} parent=62 // pred_check
          %p933 = pneg %p106
        $region65: #{_lambda_.6} parent=62 // pred_check_branch
          %935 = sbr.rel (%p933) target = $region67
        $region66: #{_lambda_.6} parent=62 // pred_region
          %s936 = smul.u32 8, %s15
          %p937 = scmp.lt.s32.totalorder %s936, 15
          %s938 = scalar_select %p937, %s936, 15
          %s939 = smul.addr %s938, 4
          %s940 = scalar_lea.vmem %s3, %s939
        $region67: #{_lambda_.6} parent=62 // pred_fallthru
          _
      $region63: #{_lambda_.6} parent=5 // pred_fallthru
        _
    $region6: #{_lambda_.6} parent=1 // loop_footer
      %s13 = sadd.s32 1, %s9
    $region7: #{_lambda_.6} parent=1 // loop_footer_branch
      %8 = sbr.rel target = $region3
    $region8: #{_lambda_.6} parent=1 // loop_exit
      _

// kernel: _lambda_.7
$region0: #{_lambda_.7}
  #allocation0 [shape = 'u32[]', space=smem, size = 0x4, offset = 0x4, fixed_abs, tag = 'smem constant byte address 0x4 - core index']
  #allocation1 [shape = 'u32[144,128]{1,0:T(1,128)}', space=vmem, size = 0x12000, scoped, tag = 'internal scratch']
  %s0 = inlined_call_operand.vmem [shape: bf16[128,512], index: 0, kind: input, shape index: {}]
  %s1 = inlined_call_operand.vmem [shape: bf16[16,128], index: 1, kind: input, shape index: {}]
  %s2 = inlined_call_operand.vmem [shape: f32[16,1], index: 2, kind: input, shape index: {}]
  %s3 = inlined_call_operand.vmem [shape: bf16[16,512], index: 3, kind: output, shape index: {}]
  %s4 = sld [smem:[#allocation0]]
  $region117: #{_lambda_.7} parent=0
    _
  %s6 = ssub.s32 1, %s4
  %s7 = scalar_select 0, %s6, %s4
  $region1: #{_lambda_.7} parent=0
    #allocation2 [shape = 'u8[131072]{0}', space=vmem, size = 0x20000, scoped, tag = 'input window, operand 0']
    #allocation3 [shape = 'u8[16384]{0}', space=vmem, size = 0x4000, scoped, tag = 'output window, operand 0']
    loop: start=0, step=1, limit=4
    $region2: #{_lambda_.7} parent=1 // loop_pre_header
      _
    $region3: #{_lambda_.7} parent=1 // loop_header
      %s9 = sphi 0, %s13
      %p10 = scmp.ge.s32.totalorder %s9, 4
      %s19 = sphi 0, %s21
      %s22 = sphi 0, %s19
      %s23 = sphi 0, %s22
      %s39 = sphi 0, %s23
      %s43 = sphi 0, %s43
      %s45 = sphi 0, %s43
      %s46 = sphi 0, %s45
      %s60 = sphi 0, %s46
      %s64 = sphi 0, %s64
      %s66 = sphi 0, %s64
      %s67 = sphi 0, %s66
      %s81 = sphi 0, %s67
      %s87 = sphi 0, %s89
      %s90 = sphi 0, %s87
      %s91 = sphi 0, %s90
      %s107 = sphi 0, %s91
    $region4: #{_lambda_.7} parent=1 // loop_header_branch
      %12 = sbr.rel (%p10) target = $region8
    $region5: #{_lambda_.7} parent=1 // loop_body
      %s14 = ssub.s32 %s9, 1
      %s15 = ssub.s32 %s9, 2
      %s16 = sadd.s32 %s9, 1
      %s17 = ssub.s32 %s9, %s16
      %p18 = scmp.eq.s32.totalorder %s17, 0
      %s20 = sadd.s32 %s19, 1
      %s21 = scalar_select %p18, %s19, %s20
      %p24 = pneg %p18
      %p25 = scmp.eq.s32.totalorder %s9, 1
      %p26 = por %p24, %p25
      %p27 = scmp.ne.s32.totalorder %s19, %s22
      %p28 = scmp.eq.s32.totalorder %s9, 0
      %p29 = por %p27, %p28
      %p30 = scmp.ne.s32.totalorder %s19, %s22
      %p31 = scmp.eq.s32.totalorder %s14, 1
      %p32 = por %p30, %p31
      %p33 = scmp.ne.s32.totalorder %s22, %s23
      %p34 = scmp.eq.s32.totalorder %s14, 0
      %p35 = por %p33, %p34
      %p36 = scmp.ne.s32.totalorder %s22, %s23
      %p37 = scmp.eq.s32.totalorder %s15, 1
      %p38 = por %p36, %p37
      %p40 = scmp.ne.s32.totalorder %s23, %s39
      %p41 = scmp.eq.s32.totalorder %s15, 0
      %p42 = por %p40, %p41
      %s44 = sadd.s32 %s43, 1
      %p47 = scmp.eq.s32.totalorder %s9, 1
      %p48 = scmp.ne.s32.totalorder %s43, %s45
      %p49 = scmp.eq.s32.totalorder %s9, 0
      %p50 = por %p48, %p49
      %p51 = scmp.ne.s32.totalorder %s43, %s45
      %p52 = scmp.eq.s32.totalorder %s14, 1
      %p53 = por %p51, %p52
      %p54 = scmp.ne.s32.totalorder %s45, %s46
      %p55 = scmp.eq.s32.totalorder %s14, 0
      %p56 = por %p54, %p55
      %p57 = scmp.ne.s32.totalorder %s45, %s46
      %p58 = scmp.eq.s32.totalorder %s15, 1
      %p59 = por %p57, %p58
      %p61 = scmp.ne.s32.totalorder %s46, %s60
      %p62 = scmp.eq.s32.totalorder %s15, 0
      %p63 = por %p61, %p62
      %s65 = sadd.s32 %s64, 1
      %p68 = scmp.eq.s32.totalorder %s9, 1
      %p69 = scmp.ne.s32.totalorder %s64, %s66
      %p70 = scmp.eq.s32.totalorder %s9, 0
      %p71 = por %p69, %p70
      %p72 = scmp.ne.s32.totalorder %s64, %s66
      %p73 = scmp.eq.s32.totalorder %s14, 1
      %p74 = por %p72, %p73
      %p75 = scmp.ne.s32.totalorder %s66, %s67
      %p76 = scmp.eq.s32.totalorder %s14, 0
      %p77 = por %p75, %p76
      %p78 = scmp.ne.s32.totalorder %s66, %s67
      %p79 = scmp.eq.s32.totalorder %s15, 1
      %p80 = por %p78, %p79
      %p82 = scmp.ne.s32.totalorder %s67, %s81
      %p83 = scmp.eq.s32.totalorder %s15, 0
      %p84 = por %p82, %p83
      %s85 = ssub.s32 %s9, %s16
      %p86 = scmp.eq.s32.totalorder %s85, 0
      %s88 = sadd.s32 %s87, 1
      %s89 = scalar_select %p86, %s87, %s88
      %p92 = pneg %p86
      %p93 = scmp.eq.s32.totalorder %s9, 1
      %p94 = por %p92, %p93
      %p95 = scmp.ne.s32.totalorder %s87, %s90
      %p96 = scmp.eq.s32.totalorder %s9, 0
      %p97 = por %p95, %p96
      %p98 = scmp.ne.s32.totalorder %s87, %s90
      %p99 = scmp.eq.s32.totalorder %s14, 1
      %p100 = por %p98, %p99
      %p101 = scmp.ne.s32.totalorder %s90, %s91
      %p102 = scmp.eq.s32.totalorder %s14, 0
      %p103 = por %p101, %p102
      %p104 = scmp.ne.s32.totalorder %s90, %s91
      %p105 = scmp.eq.s32.totalorder %s15, 1
      %p106 = por %p104, %p105
      %p108 = scmp.ne.s32.totalorder %s91, %s107
      %p109 = scmp.eq.s32.totalorder %s15, 0
      %p110 = por %p108, %p109
      %p111 = scmp.le.s32.totalorder 1, %s9
      %p112 = scmp.lt.s32.totalorder %s9, 3
      %p113 = pnand %p111, %p112
      %p114 = pneg %p113
      // Predicated region
      $region9: #{_lambda_.7} parent=5 // pred_check
        _
      $region10: #{_lambda_.7} parent=5 // pred_check_branch
        %116 = sbr.rel (%p113) target = $region12
      $region11: #{_lambda_.7} parent=5 // pred_region
        %s117 = ssub.s32 %s9, 1
        // Predicated region
        $region13: #{_lambda_.7} parent=11 // pred_check
          %p118 = pneg %p56
        $region14: #{_lambda_.7} parent=11 // pred_check_branch
          %120 = sbr.rel (%p118) target = $region16
        $region15: #{_lambda_.7} parent=11 // pred_region
          _
        $region16: #{_lambda_.7} parent=11 // pred_fallthru
          _
        // Predicated region
        $region17: #{_lambda_.7} parent=11 // pred_check
          %p121 = pneg %p77
        $region18: #{_lambda_.7} parent=11 // pred_check_branch
          %123 = sbr.rel (%p121) target = $region20
        $region19: #{_lambda_.7} parent=11 // pred_region
          _
        $region20: #{_lambda_.7} parent=11 // pred_fallthru
          _
      $region12: #{_lambda_.7} parent=5 // pred_fallthru
        _
      %p124 = scmp.lt.s32.totalorder %s9, 2
      // Predicated region
      $region21: #{_lambda_.7} parent=5 // pred_check
        %p125 = pneg %p124
      $region22: #{_lambda_.7} parent=5 // pred_check_branch
        %127 = sbr.rel (%p125) target = $region24
      $region23: #{_lambda_.7} parent=5 // pred_region
        // Predicated region
        $region25: #{_lambda_.7} parent=23 // pred_check
          %p128 = pneg %p29
        $region26: #{_lambda_.7} parent=23 // pred_check_branch
          %130 = sbr.rel (%p128) target = $region28
        $region27: #{_lambda_.7} parent=23 // pred_region
          %s131 = sand.u32 %s19, 1
          %s132 = sand.u32 %s19, 1
          %s133 = smul.addr %s132, 128
          %s134 = scalar_lea.vmem [#allocation2], %s133
          %s135 = smul.u32 2, %s9
          %s136 = smul.addr %s135, 4
          %s137 = scalar_lea.vmem %s0, %s136
          // Predicated region
          $region29: #{_lambda_.7} parent=27 // pred_check
            _
          $region30: #{_lambda_.7} parent=27 // pred_check_branch
            %139 = sbr.rel (0) target = $region32
          $region31: #{_lambda_.7} parent=27 // pred_region
            // Predicated region
            $region33: #{_lambda_.7} parent=31 // pred_check
              _
            $region34: #{_lambda_.7} parent=31 // pred_check_branch
              %141 = sbr.rel (0) target = $region36
            $region35: #{_lambda_.7} parent=31 // pred_region
              // Predicated region
              $region48: #{_lambda_.7} parent=35 // pred_check
                _
              $region49: #{_lambda_.7} parent=35 // pred_check_branch
                %186 = sbr.rel (0) target = $region51
              $region50: #{_lambda_.7} parent=35 // pred_region
                loop: start=0, step=1, limit=1
                $region52: #{_lambda_.7} parent=50 // loop_pre_header
                  _
                $region53: #{_lambda_.7} parent=50 // loop_header
                  %s188 = sphi 0, %s192
                  %p189 = scmp.ge.s32.totalorder %s188, 1
                  %s193 = sphi %s137, %s137
                  %s194 = sphi %s134, %s134
                $region54: #{_lambda_.7} parent=50 // loop_header_branch
                  %191 = sbr.rel (%p189) target = $region58
                $region55: #{_lambda_.7} parent=50 // loop_body
                  %v195 = vld [vmem:[%s193] sm:$0xff]
                  %196 = vst [vmem:[%s194] sm:$0xff] %v195
                  %v197 = vld [vmem:[%s193 + $0x10] sm:$0xff]
                  %198 = vst [vmem:[%s194 + $0x8] sm:$0xff] %v197
                  %v199 = vld [vmem:[%s193 + $0x20] sm:$0xff]
                  %200 = vst [vmem:[%s194 + $0x10] sm:$0xff] %v199
                  %v201 = vld [vmem:[%s193 + $0x30] sm:$0xff]
                  %202 = vst [vmem:[%s194 + $0x18] sm:$0xff] %v201
                  %v203 = vld [vmem:[%s193 + $0x40] sm:$0xff]
                  %204 = vst [vmem:[%s194 + $0x20] sm:$0xff] %v203
                  %v205 = vld [vmem:[%s193 + $0x50] sm:$0xff]
                  %206 = vst [vmem:[%s194 + $0x28] sm:$0xff] %v205
                  %v207 = vld [vmem:[%s193 + $0x60] sm:$0xff]
                  %208 = vst [vmem:[%s194 + $0x30] sm:$0xff] %v207
                  %v209 = vld [vmem:[%s193 + $0x70] sm:$0xff]
                  %210 = vst [vmem:[%s194 + $0x38] sm:$0xff] %v209
                  %v211 = vld [vmem:[%s193 + $0x80] sm:$0xff]
                  %212 = vst [vmem:[%s194 + $0x40] sm:$0xff] %v211
                  %v213 = vld [vmem:[%s193 + $0x90] sm:$0xff]
                  %214 = vst [vmem:[%s194 + $0x48] sm:$0xff] %v213
                  %v215 = vld [vmem:[%s193 + $0xa0] sm:$0xff]
                  %216 = vst [vmem:[%s194 + $0x50] sm:$0xff] %v215
                  %v217 = vld [vmem:[%s193 + $0xb0] sm:$0xff]
                  %218 = vst [vmem:[%s194 + $0x58] sm:$0xff] %v217
                  %v219 = vld [vmem:[%s193 + $0xc0] sm:$0xff]
                  %220 = vst [vmem:[%s194 + $0x60] sm:$0xff] %v219
                  %v221 = vld [vmem:[%s193 + $0xd0] sm:$0xff]
                  %222 = vst [vmem:[%s194 + $0x68] sm:$0xff] %v221
                  %v223 = vld [vmem:[%s193 + $0xe0] sm:$0xff]
                  %224 = vst [vmem:[%s194 + $0x70] sm:$0xff] %v223
                  %v225 = vld [vmem:[%s193 + $0xf0] sm:$0xff]
                  %226 = vst [vmem:[%s194 + $0x78] sm:$0xff] %v225
                $region56: #{_lambda_.7} parent=50 // loop_footer
                  %s192 = sadd.s32 1, %s188
                $region57: #{_lambda_.7} parent=50 // loop_footer_branch
                  %187 = sbr.rel target = $region53
                $region58: #{_lambda_.7} parent=50 // loop_exit
                  _
              $region51: #{_lambda_.7} parent=35 // pred_fallthru
                _
              // Predicated region
              $region59: #{_lambda_.7} parent=35 // pred_check
                _
              $region60: #{_lambda_.7} parent=35 // pred_check_branch
                %228 = sbr.rel target = $region62
              $region61: #{_lambda_.7} parent=35 // pred_region
                _
              $region62: #{_lambda_.7} parent=35 // pred_fallthru
                _
            $region36: #{_lambda_.7} parent=31 // pred_fallthru
              _
            // Predicated region
            $region37: #{_lambda_.7} parent=31 // pred_check
              _
            $region38: #{_lambda_.7} parent=31 // pred_check_branch
              %143 = sbr.rel target = $region40
            $region39: #{_lambda_.7} parent=31 // pred_region
              loop: start=0, step=1, limit=1
              $region41: #{_lambda_.7} parent=39 // loop_pre_header
                _
              $region42: #{_lambda_.7} parent=39 // loop_header
                %s146 = sphi 0, %s150
                %p147 = scmp.ge.s32.totalorder %s146, 1
                %s151 = sphi %s137, %s137
                %s152 = sphi %s134, %s134
              $region43: #{_lambda_.7} parent=39 // loop_header_branch
                %149 = sbr.rel (%p147) target = $region47
              $region44: #{_lambda_.7} parent=39 // loop_body
                %v153 = vld [vmem:[%s151] sm:$0xff]
                %154 = vst [vmem:[%s152] sm:$0xff] %v153
                %v155 = vld [vmem:[%s151 + $0x10] sm:$0xff]
                %156 = vst [vmem:[%s152 + $0x8] sm:$0xff] %v155
                %v157 = vld [vmem:[%s151 + $0x20] sm:$0xff]
                %158 = vst [vmem:[%s152 + $0x10] sm:$0xff] %v157
                %v159 = vld [vmem:[%s151 + $0x30] sm:$0xff]
                %160 = vst [vmem:[%s152 + $0x18] sm:$0xff] %v159
                %v161 = vld [vmem:[%s151 + $0x40] sm:$0xff]
                %162 = vst [vmem:[%s152 + $0x20] sm:$0xff] %v161
                %v163 = vld [vmem:[%s151 + $0x50] sm:$0xff]
                %164 = vst [vmem:[%s152 + $0x28] sm:$0xff] %v163
                %v165 = vld [vmem:[%s151 + $0x60] sm:$0xff]
                %166 = vst [vmem:[%s152 + $0x30] sm:$0xff] %v165
                %v167 = vld [vmem:[%s151 + $0x70] sm:$0xff]
                %168 = vst [vmem:[%s152 + $0x38] sm:$0xff] %v167
                %v169 = vld [vmem:[%s151 + $0x80] sm:$0xff]
                %170 = vst [vmem:[%s152 + $0x40] sm:$0xff] %v169
                %v171 = vld [vmem:[%s151 + $0x90] sm:$0xff]
                %172 = vst [vmem:[%s152 + $0x48] sm:$0xff] %v171
                %v173 = vld [vmem:[%s151 + $0xa0] sm:$0xff]
                %174 = vst [vmem:[%s152 + $0x50] sm:$0xff] %v173
                %v175 = vld [vmem:[%s151 + $0xb0] sm:$0xff]
                %176 = vst [vmem:[%s152 + $0x58] sm:$0xff] %v175
                %v177 = vld [vmem:[%s151 + $0xc0] sm:$0xff]
                %178 = vst [vmem:[%s152 + $0x60] sm:$0xff] %v177
                %v179 = vld [vmem:[%s151 + $0xd0] sm:$0xff]
                %180 = vst [vmem:[%s152 + $0x68] sm:$0xff] %v179
                %v181 = vld [vmem:[%s151 + $0xe0] sm:$0xff]
                %182 = vst [vmem:[%s152 + $0x70] sm:$0xff] %v181
                %v183 = vld [vmem:[%s151 + $0xf0] sm:$0xff]
                %184 = vst [vmem:[%s152 + $0x78] sm:$0xff] %v183
              $region45: #{_lambda_.7} parent=39 // loop_footer
                %s150 = sadd.s32 1, %s146
              $region46: #{_lambda_.7} parent=39 // loop_footer_branch
                %145 = sbr.rel target = $region42
              $region47: #{_lambda_.7} parent=39 // loop_exit
                _
            $region40: #{_lambda_.7} parent=31 // pred_fallthru
              _
          $region32: #{_lambda_.7} parent=27 // pred_fallthru
            _
          %229 = vnop
        $region28: #{_lambda_.7} parent=23 // pred_fallthru
          _
      $region24: #{_lambda_.7} parent=5 // pred_fallthru
        _
      %p230 = scmp.le.s32.totalorder 1, %s9
      %p231 = scmp.lt.s32.totalorder %s9, 3
      %p232 = pnand %p230, %p231
      %p233 = pneg %p232
      // Predicated region
      $region63: #{_lambda_.7} parent=5 // pred_check
        _
      $region64: #{_lambda_.7} parent=5 // pred_check_branch
        %235 = sbr.rel (%p232) target = $region66
      $region65: #{_lambda_.7} parent=5 // pred_region
        %s236 = ssub.s32 %s9, 1
        %s237 = sand.u32 %s22, 1
        %s238 = sand.u32 %s22, 1
        %s239 = smul.addr %s238, 128
        %s240 = scalar_lea.vmem [#allocation2], %s239
        // Predicated region
        $region67: #{_lambda_.7} parent=65 // pred_check
          %p241 = pneg %p35
        $region68: #{_lambda_.7} parent=65 // pred_check_branch
          %243 = sbr.rel (%p241) target = $region70
        $region69: #{_lambda_.7} parent=65 // pred_region
          _
        $region70: #{_lambda_.7} parent=65 // pred_fallthru
          _
        %s244 = sand.u32 %s22, 1
        %s245 = sand.u32 %s22, 1
        %s246 = smul.addr %s245, 128
        %s247 = scalar_lea.vmem [#allocation2], %s246
        %p248 = pneg %p35
        %p249 = pneg %p32
        %p250 = pneg %p56
        %p251 = pneg %p53
        %p252 = pneg %p77
        %p253 = pneg %p74
        %p254 = pneg %p103
        %p255 = pneg %p100
        %s256 = sand.u32 %s90, 1
        %s257 = sand.u32 %s90, 1
        %s258 = smul.addr %s257, 16
        %s259 = scalar_lea.vmem [#allocation3], %s258
        %s260 = smul.u32 2, %s14
        %s261 = smul.u32 2, %s14
        %v263 = vld [vmem:[%s1] sm:$0xf]
        %v264 = vld [vmem:[%s1 + $0x4] sm:$0xf]
        %v265 = vld [vmem:[%s240] sm:$0xff]
        %v266 = vld [vmem:[%s240 + $0x8] sm:$0xff]
        %v267 = vld [vmem:[%s240 + $0x10] sm:$0xff]
        %v268 = vld [vmem:[%s240 + $0x18] sm:$0xff]
        %v269 = vld [vmem:[%s240 + $0x20] sm:$0xff]
        %v270 = vld [vmem:[%s240 + $0x28] sm:$0xff]
        %v271 = vld [vmem:[%s240 + $0x30] sm:$0xff]
        %v272 = vld [vmem:[%s240 + $0x38] sm:$0xff]
        %v273 = vld [vmem:[%s240 + $0x40] sm:$0xff]
        %v274 = vld [vmem:[%s240 + $0x48] sm:$0xff]
        %v275 = vld [vmem:[%s240 + $0x50] sm:$0xff]
        %v276 = vld [vmem:[%s240 + $0x58] sm:$0xff]
        %v277 = vld [vmem:[%s240 + $0x60] sm:$0xff]
        %v278 = vld [vmem:[%s240 + $0x68] sm:$0xff]
        %v279 = vld [vmem:[%s240 + $0x70] sm:$0xff]
        %v280 = vld [vmem:[%s240 + $0x78] sm:$0xff]
        %v281 = vld [vmem:[%s2] sm:$0xff]
        %v282 = vld [vmem:[%s2 + $0x8] sm:$0xff]
        %284 = vset.pattern.permute.xlu0 0
        %285 = vperm.xlu0 %284, %v281
        %v286 = vpop.permute.xlu0 %285
        %289 = vset.pattern.permute.xlu0 0
        %290 = vperm.xlu0 %289, %v282
        %v291 = vpop.permute.xlu0 %290
        %v295 = vunpack.c.l.b16 %v263
        %v296 = vunpack.c.l.b16 %v264
        %v297 = vpack.c.b16 %v296, %v295
        %v315 = vunpack.c.l.b16 %v265
        %v316 = vunpack.c.h.b16 %v265
        %v317 = vunpack.c.l.b16 %v266
        %v318 = vunpack.c.h.b16 %v266
        %v319 = vunpack.c.l.b16 %v267
        %v320 = vunpack.c.h.b16 %v267
        %v321 = vunpack.c.l.b16 %v268
        %v322 = vunpack.c.h.b16 %v268
        %v323 = vunpack.c.l.b16 %v269
        %v324 = vunpack.c.h.b16 %v269
        %v325 = vunpack.c.l.b16 %v270
        %v326 = vunpack.c.h.b16 %v270
        %v327 = vunpack.c.l.b16 %v271
        %v328 = vunpack.c.h.b16 %v271
        %v329 = vunpack.c.l.b16 %v272
        %v330 = vunpack.c.h.b16 %v272
        %v331 = vunpack.c.l.b16 %v273
        %v332 = vunpack.c.h.b16 %v273
        %v333 = vunpack.c.l.b16 %v274
        %v334 = vunpack.c.h.b16 %v274
        %v335 = vunpack.c.l.b16 %v275
        %v336 = vunpack.c.h.b16 %v275
        %v337 = vunpack.c.l.b16 %v276
        %v338 = vunpack.c.h.b16 %v276
        %v339 = vunpack.c.l.b16 %v277
        %v340 = vunpack.c.h.b16 %v277
        %v341 = vunpack.c.l.b16 %v278
        %v342 = vunpack.c.h.b16 %v278
        %v343 = vunpack.c.l.b16 %v279
        %v344 = vunpack.c.h.b16 %v279
        %v345 = vunpack.c.l.b16 %v280
        %v346 = vunpack.c.h.b16 %v280
        %v347 = vpack.c.b16 %v317, %v315
        %v348 = vpack.c.b16 %v318, %v316
        %v349 = vpack.c.b16 %v321, %v319
        %v350 = vpack.c.b16 %v322, %v320
        %v351 = vpack.c.b16 %v325, %v323
        %v352 = vpack.c.b16 %v326, %v324
        %v353 = vpack.c.b16 %v329, %v327
        %v354 = vpack.c.b16 %v330, %v328
        %v355 = vpack.c.b16 %v333, %v331
        %v356 = vpack.c.b16 %v334, %v332
        %v357 = vpack.c.b16 %v337, %v335
        %v358 = vpack.c.b16 %v338, %v336
        %v359 = vpack.c.b16 %v341, %v339
        %v360 = vpack.c.b16 %v342, %v340
        %v361 = vpack.c.b16 %v345, %v343
        %v362 = vpack.c.b16 %v346, %v344
        %379 = vmatprep.subr.bf16.mxu0 %v348
        %380 = vmatpush1.bf16.msra.mxu0 %v347
        %381 = vmatprep.subr.bf16.mxu0 %v350
        %382 = vmatpush1.bf16.msra.mxu0 %v349
        %383 = vmatprep.subr.bf16.mxu0 %v352
        %384 = vmatpush1.bf16.msra.mxu0 %v351
        %385 = vmatprep.subr.bf16.mxu0 %v354
        %386 = vmatpush1.bf16.msra.mxu0 %v353
        %387 = vmatprep.subr.bf16.mxu0 %v356
        %388 = vmatpush1.bf16.msra.mxu0 %v355
        %389 = vmatprep.subr.bf16.mxu0 %v358
        %390 = vmatpush1.bf16.msra.mxu0 %v357
        %391 = vmatprep.subr.bf16.mxu0 %v360
        %392 = vmatpush1.bf16.msra.mxu0 %v359
        %393 = vmatprep.subr.bf16.mxu0 %v362
        %394 = vmatpush1.bf16.msra.mxu0 %v361
        %395 = vmatprep.subr.bf16.mxu0 0
        %396 = vmatpush1.bf16.msra.mxu0 0
        %397 = vmatprep.subr.bf16.mxu0 0
        %398 = vmatpush1.bf16.msra.mxu0 0
        %399 = vmatprep.subr.bf16.mxu0 0
        %400 = vmatpush1.bf16.msra.mxu0 0
        %401 = vmatprep.subr.bf16.mxu0 0
        %402 = vmatpush1.bf16.msra.mxu0 0
        %403 = vmatprep.subr.bf16.mxu0 0
        %404 = vmatpush1.bf16.msra.mxu0 0
        %405 = vmatprep.subr.bf16.mxu0 0
        %406 = vmatpush1.bf16.msra.mxu0 0
        %407 = vmatprep.subr.bf16.mxu0 0
        %408 = vmatpush1.bf16.msra.mxu0 0
        %409 = vmatprep.subr.bf16.mxu0 0
        %410 = vmatpush1.bf16.msra.mxu0 0
        %411 = vmatprep.mubr.bf16.mxu0 0
        %412 = vmatmul.mubr.bf16.gmra.mrb[0].mxu0 %v297
        %v413 = vpop.f32.mrb[0].mxu0
        %v414 = vadd.f32 %v286, %v413
        %v415 = vpop.f32.mrb[0].mxu0
        %v416 = vadd.f32 %v286, %v415
        %v417 = vpop.f32.mrb[0].mxu0
        %v418 = vadd.f32 %v291, %v417
        %v419 = vpop.f32.mrb[0].mxu0
        %v420 = vadd.f32 %v291, %v419
        %421 = vdwg.mxu0
        %v422 = vmax.f32 %v414, 0.0
        %v423 = vmax.f32 %v416, 0.0
        %v424 = vmax.f32 %v418, 0.0
        %v425 = vmax.f32 %v420, 0.0
        %v426 = vpack.c.bf16 %v424, %v422
        %v427 = vpack.c.bf16 %v425, %v423
        %v430 = vunpack.c.l.b16 %v426
        %v431 = vunpack.c.l.b16 %v427
        %v432 = vunpack.c.h.b16 %v426
        %v433 = vunpack.c.h.b16 %v427
        %v434 = vpack.c.b16 %v431, %v430
        %v435 = vpack.c.b16 %v433, %v432
        %438 = vst [vmem:[%s259] sm:$0xff] %v434
        %439 = vst [vmem:[%s259 + $0x8] sm:$0xff] %v435
        %s440 = sand.u32 %s90, 1
        %s441 = sand.u32 %s90, 1
        %s442 = smul.addr %s441, 16
        %s443 = scalar_lea.vmem [#allocation3], %s442
        // Predicated region
        $region71: #{_lambda_.7} parent=65 // pred_check
          %p444 = pneg %p100
        $region72: #{_lambda_.7} parent=65 // pred_check_branch
          %446 = sbr.rel (%p444) target = $region74
        $region73: #{_lambda_.7} parent=65 // pred_region
          %s447 = smul.u32 2, %s14
          %s448 = smul.addr %s447, 4
          %s449 = scalar_lea.vmem %s3, %s448
          // Predicated region
          $region75: #{_lambda_.7} parent=73 // pred_check
            _
          $region76: #{_lambda_.7} parent=73 // pred_check_branch
            %451 = sbr.rel (0) target = $region78
          $region77: #{_lambda_.7} parent=73 // pred_region
            // Predicated region
            $region79: #{_lambda_.7} parent=77 // pred_check
              _
            $region80: #{_lambda_.7} parent=77 // pred_check_branch
              %453 = sbr.rel (0) target = $region82
            $region81: #{_lambda_.7} parent=77 // pred_region
              // Predicated region
              $region94: #{_lambda_.7} parent=81 // pred_check
                _
              $region95: #{_lambda_.7} parent=81 // pred_check_branch
                %470 = sbr.rel (0) target = $region97
              $region96: #{_lambda_.7} parent=81 // pred_region
                loop: start=0, step=1, limit=1
                $region98: #{_lambda_.7} parent=96 // loop_pre_header
                  _
                $region99: #{_lambda_.7} parent=96 // loop_header
                  %s472 = sphi 0, %s476
                  %p473 = scmp.ge.s32.totalorder %s472, 1
                  %s477 = sphi %s443, %s443
                  %s478 = sphi %s449, %s449
                $region100: #{_lambda_.7} parent=96 // loop_header_branch
                  %475 = sbr.rel (%p473) target = $region104
                $region101: #{_lambda_.7} parent=96 // loop_body
                  %v479 = vld [vmem:[%s477] sm:$0xff]
                  %480 = vst [vmem:[%s478] sm:$0xff] %v479
                  %v481 = vld [vmem:[%s477 + $0x8] sm:$0xff]
                  %482 = vst [vmem:[%s478 + $0x10] sm:$0xff] %v481
                $region102: #{_lambda_.7} parent=96 // loop_footer
                  %s476 = sadd.s32 1, %s472
                $region103: #{_lambda_.7} parent=96 // loop_footer_branch
                  %471 = sbr.rel target = $region99
                $region104: #{_lambda_.7} parent=96 // loop_exit
                  _
              $region97: #{_lambda_.7} parent=81 // pred_fallthru
                _
              // Predicated region
              $region105: #{_lambda_.7} parent=81 // pred_check
                _
              $region106: #{_lambda_.7} parent=81 // pred_check_branch
                %484 = sbr.rel target = $region108
              $region107: #{_lambda_.7} parent=81 // pred_region
                _
              $region108: #{_lambda_.7} parent=81 // pred_fallthru
                _
            $region82: #{_lambda_.7} parent=77 // pred_fallthru
              _
            // Predicated region
            $region83: #{_lambda_.7} parent=77 // pred_check
              _
            $region84: #{_lambda_.7} parent=77 // pred_check_branch
              %455 = sbr.rel target = $region86
            $region85: #{_lambda_.7} parent=77 // pred_region
              loop: start=0, step=1, limit=1
              $region87: #{_lambda_.7} parent=85 // loop_pre_header
                _
              $region88: #{_lambda_.7} parent=85 // loop_header
                %s458 = sphi 0, %s462
                %p459 = scmp.ge.s32.totalorder %s458, 1
                %s463 = sphi %s443, %s443
                %s464 = sphi %s449, %s449
              $region89: #{_lambda_.7} parent=85 // loop_header_branch
                %461 = sbr.rel (%p459) target = $region93
              $region90: #{_lambda_.7} parent=85 // loop_body
                %v465 = vld [vmem:[%s463] sm:$0xff]
                %466 = vst [vmem:[%s464] sm:$0xff] %v465
                %v467 = vld [vmem:[%s463 + $0x8] sm:$0xff]
                %468 = vst [vmem:[%s464 + $0x10] sm:$0xff] %v467
              $region91: #{_lambda_.7} parent=85 // loop_footer
                %s462 = sadd.s32 1, %s458
              $region92: #{_lambda_.7} parent=85 // loop_footer_branch
                %457 = sbr.rel target = $region88
              $region93: #{_lambda_.7} parent=85 // loop_exit
                _
            $region86: #{_lambda_.7} parent=77 // pred_fallthru
              _
          $region78: #{_lambda_.7} parent=73 // pred_fallthru
            _
          %485 = vnop
        $region74: #{_lambda_.7} parent=65 // pred_fallthru
          _
      $region66: #{_lambda_.7} parent=5 // pred_fallthru
        _
      %p486 = scmp.le.s32.totalorder 2, %s9
      // Predicated region
      $region109: #{_lambda_.7} parent=5 // pred_check
        %p487 = pneg %p486
      $region110: #{_lambda_.7} parent=5 // pred_check_branch
        %489 = sbr.rel (%p487) target = $region112
      $region111: #{_lambda_.7} parent=5 // pred_region
        %s490 = ssub.s32 %s9, 2
        // Predicated region
        $region113: #{_lambda_.7} parent=111 // pred_check
          %p491 = pneg %p106
        $region114: #{_lambda_.7} parent=111 // pred_check_branch
          %493 = sbr.rel (%p491) target = $region116
        $region115: #{_lambda_.7} parent=111 // pred_region
          %s494 = sand.u32 %s91, 1
          %s495 = sand.u32 %s91, 1
          %s496 = smul.addr %s495, 16
          %s497 = scalar_lea.vmem [#allocation3], %s496
        $region116: #{_lambda_.7} parent=111 // pred_fallthru
          _
      $region112: #{_lambda_.7} parent=5 // pred_fallthru
        _
    $region6: #{_lambda_.7} parent=1 // loop_footer
      %s13 = sadd.s32 1, %s9
    $region7: #{_lambda_.7} parent=1 // loop_footer_branch
      %8 = sbr.rel target = $region3
    $region8: #{_lambda_.7} parent=1 // loop_exit
      _

// kernel: _lambda_.8
$region0: #{_lambda_.8}
  #allocation0 [shape = 'u32[]', space=smem, size = 0x4, offset = 0x4, fixed_abs, tag = 'smem constant byte address 0x4 - core index']
  #allocation1 [shape = 'u32[144,128]{1,0:T(1,128)}', space=vmem, size = 0x12000, scoped, tag = 'internal scratch']
  %s0 = inlined_call_operand.vmem [shape: bf16[256,128], index: 0, kind: input, shape index: {}]
  %s1 = inlined_call_operand.vmem [shape: bf16[32,256], index: 1, kind: input, shape index: {}]
  %s2 = inlined_call_operand.vmem [shape: f32[32,1], index: 2, kind: input, shape index: {}]
  %s3 = inlined_call_operand.vmem [shape: bf16[32,128], index: 3, kind: output, shape index: {}]
  %s4 = sld [smem:[#allocation0]]
  $region22: #{_lambda_.8} parent=0
    _
  %s6 = ssub.s32 1, %s4
  %s7 = scalar_select 0, %s6, %s4
  // Predicated region
  $region2: #{_lambda_.8} parent=0 // pred_check
    _
  $region3: #{_lambda_.8} parent=0 // pred_check_branch
    %9 = sbr.rel (0) target = $region5
  $region4: #{_lambda_.8} parent=0 // pred_region
    _
  $region5: #{_lambda_.8} parent=0 // pred_fallthru
    _
  // Predicated region
  $region6: #{_lambda_.8} parent=0 // pred_check
    _
  $region7: #{_lambda_.8} parent=0 // pred_check_branch
    %11 = sbr.rel (0) target = $region9
  $region8: #{_lambda_.8} parent=0 // pred_region
    _
  $region9: #{_lambda_.8} parent=0 // pred_fallthru
    _
  // Predicated region
  $region10: #{_lambda_.8} parent=0 // pred_check
    _
  $region11: #{_lambda_.8} parent=0 // pred_check_branch
    %13 = sbr.rel (0) target = $region13
  $region12: #{_lambda_.8} parent=0 // pred_region
    _
  $region13: #{_lambda_.8} parent=0 // pred_fallthru
    _
  %v15 = vld [vmem:[%s1] sm:$0xff]
  %v16 = vld [vmem:[%s1 + $0x8] sm:$0xff]
  %v17 = vld [vmem:[%s1 + $0x10] sm:$0xff]
  %v18 = vld [vmem:[%s1 + $0x18] sm:$0xff]
  %v19 = vld [vmem:[%s0] sm:$0xf]
  %v20 = vld [vmem:[%s0 + $0x4] sm:$0xf]
  %v21 = vld [vmem:[%s0 + $0x8] sm:$0xf]
  %v22 = vld [vmem:[%s0 + $0xc] sm:$0xf]
  %v23 = vld [vmem:[%s0 + $0x10] sm:$0xf]
  %v24 = vld [vmem:[%s0 + $0x14] sm:$0xf]
  %v25 = vld [vmem:[%s0 + $0x18] sm:$0xf]
  %v26 = vld [vmem:[%s0 + $0x1c] sm:$0xf]
  %v27 = vld [vmem:[%s0 + $0x20] sm:$0xf]
  %v28 = vld [vmem:[%s0 + $0x24] sm:$0xf]
  %v29 = vld [vmem:[%s0 + $0x28] sm:$0xf]
  %v30 = vld [vmem:[%s0 + $0x2c] sm:$0xf]
  %v31 = vld [vmem:[%s0 + $0x30] sm:$0xf]
  %v32 = vld [vmem:[%s0 + $0x34] sm:$0xf]
  %v33 = vld [vmem:[%s0 + $0x38] sm:$0xf]
  %v34 = vld [vmem:[%s0 + $0x3c] sm:$0xf]
  %v35 = vld [vmem:[%s0 + $0x40] sm:$0xf]
  %v36 = vld [vmem:[%s0 + $0x44] sm:$0xf]
  %v37 = vld [vmem:[%s0 + $0x48] sm:$0xf]
  %v38 = vld [vmem:[%s0 + $0x4c] sm:$0xf]
  %v39 = vld [vmem:[%s0 + $0x50] sm:$0xf]
  %v40 = vld [vmem:[%s0 + $0x54] sm:$0xf]
  %v41 = vld [vmem:[%s0 + $0x58] sm:$0xf]
  %v42 = vld [vmem:[%s0 + $0x5c] sm:$0xf]
  %v43 = vld [vmem:[%s0 + $0x60] sm:$0xf]
  %v44 = vld [vmem:[%s0 + $0x64] sm:$0xf]
  %v45 = vld [vmem:[%s0 + $0x68] sm:$0xf]
  %v46 = vld [vmem:[%s0 + $0x6c] sm:$0xf]
  %v47 = vld [vmem:[%s0 + $0x70] sm:$0xf]
  %v48 = vld [vmem:[%s0 + $0x74] sm:$0xf]
  %v49 = vld [vmem:[%s0 + $0x78] sm:$0xf]
  %v50 = vld [vmem:[%s0 + $0x7c] sm:$0xf]
  %v51 = vld [vmem:[%s2] sm:$0xff]
  %v52 = vld [vmem:[%s2 + $0x8] sm:$0xff]
  %v53 = vld [vmem:[%s2 + $0x10] sm:$0xff]
  %v54 = vld [vmem:[%s2 + $0x18] sm:$0xff]
  %56 = vset.pattern.permute.xlu0 0
  %57 = vperm.xlu0 %56, %v51
  %v58 = vpop.permute.xlu0 %57
  %61 = vset.pattern.permute.xlu0 0
  %62 = vperm.xlu0 %61, %v52
  %v63 = vpop.permute.xlu0 %62
  %66 = vset.pattern.permute.xlu0 0
  %67 = vperm.xlu0 %66, %v53
  %v68 = vpop.permute.xlu0 %67
  %71 = vset.pattern.permute.xlu0 0
  %72 = vperm.xlu0 %71, %v54
  %v73 = vpop.permute.xlu0 %72
  %v79 = vunpack.c.l.b16 %v15
  %v80 = vunpack.c.h.b16 %v15
  %v81 = vunpack.c.l.b16 %v16
  %v82 = vunpack.c.h.b16 %v16
  %v83 = vunpack.c.l.b16 %v17
  %v84 = vunpack.c.h.b16 %v17
  %v85 = vunpack.c.l.b16 %v18
  %v86 = vunpack.c.h.b16 %v18
  %v87 = vpack.c.b16 %v81, %v79
  %v88 = vpack.c.b16 %v82, %v80
  %v89 = vpack.c.b16 %v85, %v83
  %v90 = vpack.c.b16 %v86, %v84
  %v127 = vunpack.c.l.b16 %v19
  %v128 = vunpack.c.l.b16 %v20
  %v129 = vunpack.c.l.b16 %v21
  %v130 = vunpack.c.l.b16 %v22
  %v131 = vunpack.c.l.b16 %v23
  %v132 = vunpack.c.l.b16 %v24
  %v133 = vunpack.c.l.b16 %v25
  %v134 = vunpack.c.l.b16 %v26
  %v135 = vunpack.c.l.b16 %v27
  %v136 = vunpack.c.l.b16 %v28
  %v137 = vunpack.c.l.b16 %v29
  %v138 = vunpack.c.l.b16 %v30
  %v139 = vunpack.c.l.b16 %v31
  %v140 = vunpack.c.l.b16 %v32
  %v141 = vunpack.c.l.b16 %v33
  %v142 = vunpack.c.l.b16 %v34
  %v143 = vunpack.c.l.b16 %v35
  %v144 = vunpack.c.l.b16 %v36
  %v145 = vunpack.c.l.b16 %v37
  %v146 = vunpack.c.l.b16 %v38
  %v147 = vunpack.c.l.b16 %v39
  %v148 = vunpack.c.l.b16 %v40
  %v149 = vunpack.c.l.b16 %v41
  %v150 = vunpack.c.l.b16 %v42
  %v151 = vunpack.c.l.b16 %v43
  %v152 = vunpack.c.l.b16 %v44
  %v153 = vunpack.c.l.b16 %v45
  %v154 = vunpack.c.l.b16 %v46
  %v155 = vunpack.c.l.b16 %v47
  %v156 = vunpack.c.l.b16 %v48
  %v157 = vunpack.c.l.b16 %v49
  %v158 = vunpack.c.l.b16 %v50
  %v159 = vpack.c.b16 %v128, %v127
  %v160 = vpack.c.b16 %v130, %v129
  %v161 = vpack.c.b16 %v132, %v131
  %v162 = vpack.c.b16 %v134, %v133
  %v163 = vpack.c.b16 %v136, %v135
  %v164 = vpack.c.b16 %v138, %v137
  %v165 = vpack.c.b16 %v140, %v139
  %v166 = vpack.c.b16 %v142, %v141
  %v167 = vpack.c.b16 %v144, %v143
  %v168 = vpack.c.b16 %v146, %v145
  %v169 = vpack.c.b16 %v148, %v147
  %v170 = vpack.c.b16 %v150, %v149
  %v171 = vpack.c.b16 %v152, %v151
  %v172 = vpack.c.b16 %v154, %v153
  %v173 = vpack.c.b16 %v156, %v155
  %v174 = vpack.c.b16 %v158, %v157
  %191 = vmatprep.subr.bf16.mxu0 0
  %192 = vmatpush1.bf16.msra.mxu0 %v159
  %193 = vmatprep.subr.bf16.mxu0 0
  %194 = vmatpush1.bf16.msra.mxu0 %v160
  %195 = vmatprep.subr.bf16.mxu0 0
  %196 = vmatpush1.bf16.msra.mxu0 %v161
  %197 = vmatprep.subr.bf16.mxu0 0
  %198 = vmatpush1.bf16.msra.mxu0 %v162
  %199 = vmatprep.subr.bf16.mxu0 0
  %200 = vmatpush1.bf16.msra.mxu0 %v163
  %201 = vmatprep.subr.bf16.mxu0 0
  %202 = vmatpush1.bf16.msra.mxu0 %v164
  %203 = vmatprep.subr.bf16.mxu0 0
  %204 = vmatpush1.bf16.msra.mxu0 %v165
  %205 = vmatprep.subr.bf16.mxu0 0
  %206 = vmatpush1.bf16.msra.mxu0 %v166
  %207 = vmatprep.subr.bf16.mxu0 0
  %208 = vmatpush1.bf16.msra.mxu0 %v167
  %209 = vmatprep.subr.bf16.mxu0 0
  %210 = vmatpush1.bf16.msra.mxu0 %v168
  %211 = vmatprep.subr.bf16.mxu0 0
  %212 = vmatpush1.bf16.msra.mxu0 %v169
  %213 = vmatprep.subr.bf16.mxu0 0
  %214 = vmatpush1.bf16.msra.mxu0 %v170
  %215 = vmatprep.subr.bf16.mxu0 0
  %216 = vmatpush1.bf16.msra.mxu0 %v171
  %217 = vmatprep.subr.bf16.mxu0 0
  %218 = vmatpush1.bf16.msra.mxu0 %v172
  %219 = vmatprep.subr.bf16.mxu0 0
  %220 = vmatpush1.bf16.msra.mxu0 %v173
  %221 = vmatprep.subr.bf16.mxu0 0
  %222 = vmatpush1.bf16.msra.mxu0 %v174
  %223 = vmatprep.mubr.bf16.mxu0 %v88
  %224 = vmatmul.mubr.bf16.gmra.mrb[0].mxu0 %v87
  %v225 = vpop.f32.mrb[0].mxu0
  %v226 = vadd.f32 %v58, %v225
  %v227 = vpop.f32.mrb[0].mxu0
  %v228 = vpop.f32.mrb[0].mxu0
  %v229 = vadd.f32 %v63, %v228
  %v230 = vpop.f32.mrb[0].mxu0
  %231 = vmatprep.mubr.bf16.mxu0 %v90
  %232 = vmatmul.mubr.bf16.gmra.mrb[0].mxu0 %v89
  %v233 = vpop.f32.mrb[0].mxu0
  %v234 = vadd.f32 %v68, %v233
  %v235 = vpop.f32.mrb[0].mxu0
  %v236 = vpop.f32.mrb[0].mxu0
  %v237 = vadd.f32 %v73, %v236
  %v238 = vpop.f32.mrb[0].mxu0
  %239 = vdwg.mxu0
  %v240 = vmax.f32 %v226, 0.0
  %v241 = vmax.f32 %v229, 0.0
  %v242 = vmax.f32 %v234, 0.0
  %v243 = vmax.f32 %v237, 0.0
  %v244 = vpack.c.bf16 %v241, %v240
  %v245 = vpack.c.bf16 %v243, %v242
  %v248 = vunpack.c.l.b16 %v244
  %v249 = vunpack.c.h.b16 %v244
  %v250 = vunpack.c.l.b16 %v245
  %v251 = vunpack.c.h.b16 %v245
  %v252 = vpack.c.b16 %v248, %v248
  %v253 = vpack.c.b16 %v249, %v249
  %v254 = vpack.c.b16 %v250, %v250
  %v255 = vpack.c.b16 %v251, %v251
  %260 = vst [vmem:[%s3] sm:$0xf] %v252
  %261 = vst [vmem:[%s3 + $0x4] sm:$0xf] %v253
  %262 = vst [vmem:[%s3 + $0x8] sm:$0xf] %v254
  %263 = vst [vmem:[%s3 + $0xc] sm:$0xf] %v255
  // Predicated region
  $region14: #{_lambda_.8} parent=0 // pred_check
    _
  $region15: #{_lambda_.8} parent=0 // pred_check_branch
    %265 = sbr.rel (0) target = $region17
  $region16: #{_lambda_.8} parent=0 // pred_region
    _
  $region17: #{_lambda_.8} parent=0 // pred_fallthru
    _
  // Predicated region
  $region18: #{_lambda_.8} parent=0 // pred_check
    _
  $region19: #{_lambda_.8} parent=0 // pred_check_branch
    %267 = sbr.rel (0) target = $region21
  $region20: #{_lambda_.8} parent=0 // pred_region
    _
  $region21: #{_lambda_.8} parent=0 // pred_fallthru
    _

// kernel: _lambda_.9
$region0: #{_lambda_.9}
  #allocation0 [shape = 'u32[]', space=smem, size = 0x4, offset = 0x4, fixed_abs, tag = 'smem constant byte address 0x4 - core index']
  #allocation1 [shape = 'u32[144,128]{1,0:T(1,128)}', space=vmem, size = 0x12000, scoped, tag = 'internal scratch']
  %s0 = inlined_call_operand.vmem [shape: bf16[2,512,16], index: 0, kind: input, shape index: {}]
  %s1 = inlined_call_operand.vmem [shape: bf16[64,512], index: 1, kind: input, shape index: {}]
  %s2 = inlined_call_operand.vmem [shape: f32[64,1], index: 2, kind: input, shape index: {}]
  %s3 = inlined_call_operand.vmem [shape: f32[2,64,16], index: 3, kind: input, shape index: {}]
  %s4 = inlined_call_operand.vmem [shape: f32[2,1], index: 4, kind: input, shape index: {}]
  %s5 = inlined_call_operand.vmem [shape: f32[2,2,1], index: 5, kind: output, shape index: {}]
  %s6 = sld [smem:[#allocation0]]
  $region53: #{_lambda_.9} parent=0
    _
  %s8 = ssub.s32 1, %s6
  %s9 = scalar_select 0, %s8, %s6
  loop: start=0, step=1, limit=4
  $region2: #{_lambda_.9} parent=0 // loop_pre_header
    _
  $region3: #{_lambda_.9} parent=0 // loop_header
    %s11 = sphi 0, %s15
    %p12 = scmp.ge.s32.totalorder %s11, 4
    %s21 = sphi 0, %s23
    %s24 = sphi 0, %s21
    %s25 = sphi 0, %s24
    %s41 = sphi 0, %s25
    %s45 = sphi 0, %s45
    %s47 = sphi 0, %s45
    %s48 = sphi 0, %s47
    %s62 = sphi 0, %s48
    %s66 = sphi 0, %s66
    %s68 = sphi 0, %s66
    %s69 = sphi 0, %s68
    %s83 = sphi 0, %s69
    %s87 = sphi 0, %s87
    %s89 = sphi 0, %s87
    %s90 = sphi 0, %s89
    %s104 = sphi 0, %s90
    %s108 = sphi 0, %s108
    %s110 = sphi 0, %s108
    %s111 = sphi 0, %s110
    %s125 = sphi 0, %s111
    %s131 = sphi 0, %s133
    %s134 = sphi 0, %s131
    %s135 = sphi 0, %s134
    %s151 = sphi 0, %s135
  $region4: #{_lambda_.9} parent=0 // loop_header_branch
    %14 = sbr.rel (%p12) target = $region8
  $region5: #{_lambda_.9} parent=0 // loop_body
    %s16 = ssub.s32 %s11, 1
    %s17 = ssub.s32 %s11, 2
    %s18 = sadd.s32 %s11, 1
    %s19 = ssub.s32 %s11, %s18
    %p20 = scmp.eq.s32.totalorder %s19, 0
    %s22 = sadd.s32 %s21, 1
    %s23 = scalar_select %p20, %s21, %s22
    %p26 = pneg %p20
    %p27 = scmp.eq.s32.totalorder %s11, 1
    %p28 = por %p26, %p27
    %p29 = scmp.ne.s32.totalorder %s21, %s24
    %p30 = scmp.eq.s32.totalorder %s11, 0
    %p31 = por %p29, %p30
    %p32 = scmp.ne.s32.totalorder %s21, %s24
    %p33 = scmp.eq.s32.totalorder %s16, 1
    %p34 = por %p32, %p33
    %p35 = scmp.ne.s32.totalorder %s24, %s25
    %p36 = scmp.eq.s32.totalorder %s16, 0
    %p37 = por %p35, %p36
    %p38 = scmp.ne.s32.totalorder %s24, %s25
    %p39 = scmp.eq.s32.totalorder %s17, 1
    %p40 = por %p38, %p39
    %p42 = scmp.ne.s32.totalorder %s25, %s41
    %p43 = scmp.eq.s32.totalorder %s17, 0
    %p44 = por %p42, %p43
    %s46 = sadd.s32 %s45, 1
    %p49 = scmp.eq.s32.totalorder %s11, 1
    %p50 = scmp.ne.s32.totalorder %s45, %s47
    %p51 = scmp.eq.s32.totalorder %s11, 0
    %p52 = por %p50, %p51
    %p53 = scmp.ne.s32.totalorder %s45, %s47
    %p54 = scmp.eq.s32.totalorder %s16, 1
    %p55 = por %p53, %p54
    %p56 = scmp.ne.s32.totalorder %s47, %s48
    %p57 = scmp.eq.s32.totalorder %s16, 0
    %p58 = por %p56, %p57
    %p59 = scmp.ne.s32.totalorder %s47, %s48
    %p60 = scmp.eq.s32.totalorder %s17, 1
    %p61 = por %p59, %p60
    %p63 = scmp.ne.s32.totalorder %s48, %s62
    %p64 = scmp.eq.s32.totalorder %s17, 0
    %p65 = por %p63, %p64
    %s67 = sadd.s32 %s66, 1
    %p70 = scmp.eq.s32.totalorder %s11, 1
    %p71 = scmp.ne.s32.totalorder %s66, %s68
    %p72 = scmp.eq.s32.totalorder %s11, 0
    %p73 = por %p71, %p72
    %p74 = scmp.ne.s32.totalorder %s66, %s68
    %p75 = scmp.eq.s32.totalorder %s16, 1
    %p76 = por %p74, %p75
    %p77 = scmp.ne.s32.totalorder %s68, %s69
    %p78 = scmp.eq.s32.totalorder %s16, 0
    %p79 = por %p77, %p78
    %p80 = scmp.ne.s32.totalorder %s68, %s69
    %p81 = scmp.eq.s32.totalorder %s17, 1
    %p82 = por %p80, %p81
    %p84 = scmp.ne.s32.totalorder %s69, %s83
    %p85 = scmp.eq.s32.totalorder %s17, 0
    %p86 = por %p84, %p85
    %s88 = sadd.s32 %s87, 1
    %p91 = scmp.eq.s32.totalorder %s11, 1
    %p92 = scmp.ne.s32.totalorder %s87, %s89
    %p93 = scmp.eq.s32.totalorder %s11, 0
    %p94 = por %p92, %p93
    %p95 = scmp.ne.s32.totalorder %s87, %s89
    %p96 = scmp.eq.s32.totalorder %s16, 1
    %p97 = por %p95, %p96
    %p98 = scmp.ne.s32.totalorder %s89, %s90
    %p99 = scmp.eq.s32.totalorder %s16, 0
    %p100 = por %p98, %p99
    %p101 = scmp.ne.s32.totalorder %s89, %s90
    %p102 = scmp.eq.s32.totalorder %s17, 1
    %p103 = por %p101, %p102
    %p105 = scmp.ne.s32.totalorder %s90, %s104
    %p106 = scmp.eq.s32.totalorder %s17, 0
    %p107 = por %p105, %p106
    %s109 = sadd.s32 %s108, 1
    %p112 = scmp.eq.s32.totalorder %s11, 1
    %p113 = scmp.ne.s32.totalorder %s108, %s110
    %p114 = scmp.eq.s32.totalorder %s11, 0
    %p115 = por %p113, %p114
    %p116 = scmp.ne.s32.totalorder %s108, %s110
    %p117 = scmp.eq.s32.totalorder %s16, 1
    %p118 = por %p116, %p117
    %p119 = scmp.ne.s32.totalorder %s110, %s111
    %p120 = scmp.eq.s32.totalorder %s16, 0
    %p121 = por %p119, %p120
    %p122 = scmp.ne.s32.totalorder %s110, %s111
    %p123 = scmp.eq.s32.totalorder %s17, 1
    %p124 = por %p122, %p123
    %p126 = scmp.ne.s32.totalorder %s111, %s125
    %p127 = scmp.eq.s32.totalorder %s17, 0
    %p128 = por %p126, %p127
    %s129 = ssub.s32 %s11, %s18
    %p130 = scmp.eq.s32.totalorder %s129, 0
    %s132 = sadd.s32 %s131, 1
    %s133 = scalar_select %p130, %s131, %s132
    %p136 = pneg %p130
    %p137 = scmp.eq.s32.totalorder %s11, 1
    %p138 = por %p136, %p137
    %p139 = scmp.ne.s32.totalorder %s131, %s134
    %p140 = scmp.eq.s32.totalorder %s11, 0
    %p141 = por %p139, %p140
    %p142 = scmp.ne.s32.totalorder %s131, %s134
    %p143 = scmp.eq.s32.totalorder %s16, 1
    %p144 = por %p142, %p143
    %p145 = scmp.ne.s32.totalorder %s134, %s135
    %p146 = scmp.eq.s32.totalorder %s16, 0
    %p147 = por %p145, %p146
    %p148 = scmp.ne.s32.totalorder %s134, %s135
    %p149 = scmp.eq.s32.totalorder %s17, 1
    %p150 = por %p148, %p149
    %p152 = scmp.ne.s32.totalorder %s135, %s151
    %p153 = scmp.eq.s32.totalorder %s17, 0
    %p154 = por %p152, %p153
    %p155 = scmp.le.s32.totalorder 1, %s11
    %p156 = scmp.lt.s32.totalorder %s11, 3
    %p157 = pnand %p155, %p156
    %p158 = pneg %p157
    // Predicated region
    $region9: #{_lambda_.9} parent=5 // pred_check
      _
    $region10: #{_lambda_.9} parent=5 // pred_check_branch
      %160 = sbr.rel (%p157) target = $region12
    $region11: #{_lambda_.9} parent=5 // pred_region
      %s161 = ssub.s32 %s11, 1
      // Predicated region
      $region13: #{_lambda_.9} parent=11 // pred_check
        %p162 = pneg %p58
      $region14: #{_lambda_.9} parent=11 // pred_check_branch
        %164 = sbr.rel (%p162) target = $region16
      $region15: #{_lambda_.9} parent=11 // pred_region
        _
      $region16: #{_lambda_.9} parent=11 // pred_fallthru
        _
      // Predicated region
      $region17: #{_lambda_.9} parent=11 // pred_check
        %p165 = pneg %p79
      $region18: #{_lambda_.9} parent=11 // pred_check_branch
        %167 = sbr.rel (%p165) target = $region20
      $region19: #{_lambda_.9} parent=11 // pred_region
        _
      $region20: #{_lambda_.9} parent=11 // pred_fallthru
        _
      // Predicated region
      $region21: #{_lambda_.9} parent=11 // pred_check
        %p168 = pneg %p100
      $region22: #{_lambda_.9} parent=11 // pred_check_branch
        %170 = sbr.rel (%p168) target = $region24
      $region23: #{_lambda_.9} parent=11 // pred_region
        _
      $region24: #{_lambda_.9} parent=11 // pred_fallthru
        _
      // Predicated region
      $region25: #{_lambda_.9} parent=11 // pred_check
        %p171 = pneg %p121
      $region26: #{_lambda_.9} parent=11 // pred_check_branch
        %173 = sbr.rel (%p171) target = $region28
      $region27: #{_lambda_.9} parent=11 // pred_region
        _
      $region28: #{_lambda_.9} parent=11 // pred_fallthru
        _
    $region12: #{_lambda_.9} parent=5 // pred_fallthru
      _
    %p174 = scmp.lt.s32.totalorder %s11, 2
    // Predicated region
    $region29: #{_lambda_.9} parent=5 // pred_check
      %p175 = pneg %p174
    $region30: #{_lambda_.9} parent=5 // pred_check_branch
      %177 = sbr.rel (%p175) target = $region32
    $region31: #{_lambda_.9} parent=5 // pred_region
      // Predicated region
      $region33: #{_lambda_.9} parent=31 // pred_check
        %p178 = pneg %p31
      $region34: #{_lambda_.9} parent=31 // pred_check_branch
        %180 = sbr.rel (%p178) target = $region36
      $region35: #{_lambda_.9} parent=31 // pred_region
        %p181 = scmp.lt.s32.totalorder %s11, 1
        %s182 = scalar_select %p181, %s11, 1
        %s183 = smul.addr %s182, 64
        %s184 = smul.addr %s183, 4
        %s185 = scalar_lea.vmem %s0, %s184
      $region36: #{_lambda_.9} parent=31 // pred_fallthru
        _
    $region32: #{_lambda_.9} parent=5 // pred_fallthru
      _
    %p186 = scmp.le.s32.totalorder 1, %s11
    %p187 = scmp.lt.s32.totalorder %s11, 3
    %p188 = pnand %p186, %p187
    %p189 = pneg %p188
    // Predicated region
    $region37: #{_lambda_.9} parent=5 // pred_check
      _
    $region38: #{_lambda_.9} parent=5 // pred_check_branch
      %191 = sbr.rel (%p188) target = $region40
    $region39: #{_lambda_.9} parent=5 // pred_region
      %s192 = ssub.s32 %s11, 1
      %p193 = scmp.lt.s32.totalorder %s16, 1
      %s194 = scalar_select %p193, %s16, 1
      %s195 = smul.addr %s194, 64
      %s196 = smul.addr %s195, 4
      %s197 = scalar_lea.vmem %s0, %s196
      %p198 = pneg %p37
      %p199 = pneg %p34
      %p200 = pneg %p58
      %p201 = pneg %p55
      %p202 = pneg %p79
      %p203 = pneg %p76
      %p204 = pneg %p100
      %p205 = pneg %p97
      %p206 = pneg %p121
      %p207 = pneg %p118
      %p208 = pneg %p147
      %p209 = pneg %p144
      %p210 = scmp.lt.s32.totalorder %s16, 1
      %s211 = scalar_select %p210, %s16, 1
      %s212 = smul.addr %s211, 2
      %s213 = scalar_lea.vmem %s5, %s212
      %p214 = scmp.lt.s32.totalorder %s16, 1
      %s215 = scalar_select %p214, %s16, 1
      %s216 = smul.addr %s215, 64
      %s217 = smul.addr %s216, 4
      %s218 = scalar_lea.vmem %s0, %s217
      %p219 = scmp.lt.s32.totalorder %s16, 1
      %s220 = scalar_select %p219, %s16, 1
      %s221 = smul.addr %s220, 2
      %s222 = scalar_lea.vmem %s5, %s221
      %v224 = vld [vmem:[%s1] sm:$0xff]
      %v225 = vld [vmem:[%s1 + $0x8] sm:$0xff]
      %v226 = vld [vmem:[%s1 + $0x10] sm:$0xff]
      %v227 = vld [vmem:[%s1 + $0x18] sm:$0xff]
      %v228 = vld [vmem:[%s1 + $0x20] sm:$0xff]
      %v229 = vld [vmem:[%s1 + $0x28] sm:$0xff]
      %v230 = vld [vmem:[%s1 + $0x30] sm:$0xff]
      %v231 = vld [vmem:[%s1 + $0x38] sm:$0xff]
      %v232 = vld [vmem:[%s1 + $0x40] sm:$0xff]
      %v233 = vld [vmem:[%s1 + $0x48] sm:$0xff]
      %v234 = vld [vmem:[%s1 + $0x50] sm:$0xff]
      %v235 = vld [vmem:[%s1 + $0x58] sm:$0xff]
      %v236 = vld [vmem:[%s1 + $0x60] sm:$0xff]
      %v237 = vld [vmem:[%s1 + $0x68] sm:$0xff]
      %v238 = vld [vmem:[%s1 + $0x70] sm:$0xff]
      %v239 = vld [vmem:[%s1 + $0x78] sm:$0xff]
      %v240 = vld [vmem:[%s218] sm:$0xf]
      %v241 = vld [vmem:[%s218 + $0x4] sm:$0xf]
      %v242 = vld [vmem:[%s218 + $0x8] sm:$0xf]
      %v243 = vld [vmem:[%s218 + $0xc] sm:$0xf]
      %v244 = vld [vmem:[%s218 + $0x10] sm:$0xf]
      %v245 = vld [vmem:[%s218 + $0x14] sm:$0xf]
      %v246 = vld [vmem:[%s218 + $0x18] sm:$0xf]
      %v247 = vld [vmem:[%s218 + $0x1c] sm:$0xf]
      %v248 = vld [vmem:[%s218 + $0x20] sm:$0xf]
      %v249 = vld [vmem:[%s218 + $0x24] sm:$0xf]
      %v250 = vld [vmem:[%s218 + $0x28] sm:$0xf]
      %v251 = vld [vmem:[%s218 + $0x2c] sm:$0xf]
      %v252 = vld [vmem:[%s218 + $0x30] sm:$0xf]
      %v253 = vld [vmem:[%s218 + $0x34] sm:$0xf]
      %v254 = vld [vmem:[%s218 + $0x38] sm:$0xf]
      %v255 = vld [vmem:[%s218 + $0x3c] sm:$0xf]
      %v256 = vld [vmem:[%s218 + $0x40] sm:$0xf]
      %v257 = vld [vmem:[%s218 + $0x44] sm:$0xf]
      %v258 = vld [vmem:[%s218 + $0x48] sm:$0xf]
      %v259 = vld [vmem:[%s218 + $0x4c] sm:$0xf]
      %v260 = vld [vmem:[%s218 + $0x50] sm:$0xf]
      %v261 = vld [vmem:[%s218 + $0x54] sm:$0xf]
      %v262 = vld [vmem:[%s218 + $0x58] sm:$0xf]
      %v263 = vld [vmem:[%s218 + $0x5c] sm:$0xf]
      %v264 = vld [vmem:[%s218 + $0x60] sm:$0xf]
      %v265 = vld [vmem:[%s218 + $0x64] sm:$0xf]
      %v266 = vld [vmem:[%s218 + $0x68] sm:$0xf]
      %v267 = vld [vmem:[%s218 + $0x6c] sm:$0xf]
      %v268 = vld [vmem:[%s218 + $0x70] sm:$0xf]
      %v269 = vld [vmem:[%s218 + $0x74] sm:$0xf]
      %v270 = vld [vmem:[%s218 + $0x78] sm:$0xf]
      %v271 = vld [vmem:[%s218 + $0x7c] sm:$0xf]
      %v272 = vld [vmem:[%s218 + $0x80] sm:$0xf]
      %v273 = vld [vmem:[%s218 + $0x84] sm:$0xf]
      %v274 = vld [vmem:[%s218 + $0x88] sm:$0xf]
      %v275 = vld [vmem:[%s218 + $0x8c] sm:$0xf]
      %v276 = vld [vmem:[%s218 + $0x90] sm:$0xf]
      %v277 = vld [vmem:[%s218 + $0x94] sm:$0xf]
      %v278 = vld [vmem:[%s218 + $0x98] sm:$0xf]
      %v279 = vld [vmem:[%s218 + $0x9c] sm:$0xf]
      %v280 = vld [vmem:[%s218 + $0xa0] sm:$0xf]
      %v281 = vld [vmem:[%s218 + $0xa4] sm:$0xf]
      %v282 = vld [vmem:[%s218 + $0xa8] sm:$0xf]
      %v283 = vld [vmem:[%s218 + $0xac] sm:$0xf]
      %v284 = vld [vmem:[%s218 + $0xb0] sm:$0xf]
      %v285 = vld [vmem:[%s218 + $0xb4] sm:$0xf]
      %v286 = vld [vmem:[%s218 + $0xb8] sm:$0xf]
      %v287 = vld [vmem:[%s218 + $0xbc] sm:$0xf]
      %v288 = vld [vmem:[%s218 + $0xc0] sm:$0xf]
      %v289 = vld [vmem:[%s218 + $0xc4] sm:$0xf]
      %v290 = vld [vmem:[%s218 + $0xc8] sm:$0xf]
      %v291 = vld [vmem:[%s218 + $0xcc] sm:$0xf]
      %v292 = vld [vmem:[%s218 + $0xd0] sm:$0xf]
      %v293 = vld [vmem:[%s218 + $0xd4] sm:$0xf]
      %v294 = vld [vmem:[%s218 + $0xd8] sm:$0xf]
      %v295 = vld [vmem:[%s218 + $0xdc] sm:$0xf]
      %v296 = vld [vmem:[%s218 + $0xe0] sm:$0xf]
      %v297 = vld [vmem:[%s218 + $0xe4] sm:$0xf]
      %v298 = vld [vmem:[%s218 + $0xe8] sm:$0xf]
      %v299 = vld [vmem:[%s218 + $0xec] sm:$0xf]
      %v300 = vld [vmem:[%s218 + $0xf0] sm:$0xf]
      %v301 = vld [vmem:[%s218 + $0xf4] sm:$0xf]
      %v302 = vld [vmem:[%s218 + $0xf8] sm:$0xf]
      %v303 = vld [vmem:[%s218 + $0xfc] sm:$0xf]
      %v304 = vld [vmem:[%s2] sm:$0xff]
      %v305 = vld [vmem:[%s2 + $0x8] sm:$0xff]
      %v306 = vld [vmem:[%s2 + $0x10] sm:$0xff]
      %v307 = vld [vmem:[%s2 + $0x18] sm:$0xff]
      %v308 = vld [vmem:[%s2 + $0x20] sm:$0xff]
      %v309 = vld [vmem:[%s2 + $0x28] sm:$0xff]
      %v310 = vld [vmem:[%s2 + $0x30] sm:$0xff]
      %v311 = vld [vmem:[%s2 + $0x38] sm:$0xff]
      %313 = vset.pattern.permute.xlu0 0
      %314 = vperm.xlu0 %313, %v304
      %v315 = vpop.permute.xlu0 %314
      %318 = vset.pattern.permute.xlu0 0
      %319 = vperm.xlu0 %318, %v305
      %v320 = vpop.permute.xlu0 %319
      %323 = vset.pattern.permute.xlu0 0
      %324 = vperm.xlu0 %323, %v306
      %v325 = vpop.permute.xlu0 %324
      %328 = vset.pattern.permute.xlu0 0
      %329 = vperm.xlu0 %328, %v307
      %v330 = vpop.permute.xlu0 %329
      %333 = vset.pattern.permute.xlu0 0
      %334 = vperm.xlu0 %333, %v308
      %v335 = vpop.permute.xlu0 %334
      %338 = vset.pattern.permute.xlu0 0
      %339 = vperm.xlu0 %338, %v309
      %v340 = vpop.permute.xlu0 %339
      %343 = vset.pattern.permute.xlu0 0
      %344 = vperm.xlu0 %343, %v310
      %v345 = vpop.permute.xlu0 %344
      %348 = vset.pattern.permute.xlu0 0
      %349 = vperm.xlu0 %348, %v311
      %v350 = vpop.permute.xlu0 %349
      %v368 = vunpack.c.l.b16 %v224
      %v369 = vunpack.c.h.b16 %v224
      %v370 = vunpack.c.l.b16 %v225
      %v371 = vunpack.c.h.b16 %v225
      %v372 = vunpack.c.l.b16 %v226
      %v373 = vunpack.c.h.b16 %v226
      %v374 = vunpack.c.l.b16 %v227
      %v375 = vunpack.c.h.b16 %v227
      %v376 = vunpack.c.l.b16 %v228
      %v377 = vunpack.c.h.b16 %v228
      %v378 = vunpack.c.l.b16 %v229
      %v379 = vunpack.c.h.b16 %v229
      %v380 = vunpack.c.l.b16 %v230
      %v381 = vunpack.c.h.b16 %v230
      %v382 = vunpack.c.l.b16 %v231
      %v383 = vunpack.c.h.b16 %v231
      %v384 = vunpack.c.l.b16 %v232
      %v385 = vunpack.c.h.b16 %v232
      %v386 = vunpack.c.l.b16 %v233
      %v387 = vunpack.c.h.b16 %v233
      %v388 = vunpack.c.l.b16 %v234
      %v389 = vunpack.c.h.b16 %v234
      %v390 = vunpack.c.l.b16 %v235
      %v391 = vunpack.c.h.b16 %v235
      %v392 = vunpack.c.l.b16 %v236
      %v393 = vunpack.c.h.b16 %v236
      %v394 = vunpack.c.l.b16 %v237
      %v395 = vunpack.c.h.b16 %v237
      %v396 = vunpack.c.l.b16 %v238
      %v397 = vunpack.c.h.b16 %v238
      %v398 = vunpack.c.l.b16 %v239
      %v399 = vunpack.c.h.b16 %v239
      %v400 = vpack.c.b16 %v372, %v368
      %v401 = vpack.c.b16 %v373, %v369
      %v402 = vpack.c.b16 %v374, %v370
      %v403 = vpack.c.b16 %v375, %v371
      %v404 = vpack.c.b16 %v380, %v376
      %v405 = vpack.c.b16 %v381, %v377
      %v406 = vpack.c.b16 %v382, %v378
      %v407 = vpack.c.b16 %v383, %v379
      %v408 = vpack.c.b16 %v388, %v384
      %v409 = vpack.c.b16 %v389, %v385
      %v410 = vpack.c.b16 %v390, %v386
      %v411 = vpack.c.b16 %v391, %v387
      %v412 = vpack.c.b16 %v396, %v392
      %v413 = vpack.c.b16 %v397, %v393
      %v414 = vpack.c.b16 %v398, %v394
      %v415 = vpack.c.b16 %v399, %v395
      %v496 = vunpack.c.l.b16 %v240
      %v497 = vunpack.c.l.b16 %v241
      %v498 = vunpack.c.l.b16 %v242
      %v499 = vunpack.c.l.b16 %v243
      %v500 = vunpack.c.l.b16 %v244
      %v501 = vunpack.c.l.b16 %v245
      %v502 = vunpack.c.l.b16 %v246
      %v503 = vunpack.c.l.b16 %v247
      %v504 = vunpack.c.l.b16 %v248
      %v505 = vunpack.c.l.b16 %v249
      %v506 = vunpack.c.l.b16 %v250
      %v507 = vunpack.c.l.b16 %v251
      %v508 = vunpack.c.l.b16 %v252
      %v509 = vunpack.c.l.b16 %v253
      %v510 = vunpack.c.l.b16 %v254
      %v511 = vunpack.c.l.b16 %v255
      %v512 = vunpack.c.l.b16 %v256
      %v513 = vunpack.c.l.b16 %v257
      %v514 = vunpack.c.l.b16 %v258
      %v515 = vunpack.c.l.b16 %v259
      %v516 = vunpack.c.l.b16 %v260
      %v517 = vunpack.c.l.b16 %v261
      %v518 = vunpack.c.l.b16 %v262
      %v519 = vunpack.c.l.b16 %v263
      %v520 = vunpack.c.l.b16 %v264
      %v521 = vunpack.c.l.b16 %v265
      %v522 = vunpack.c.l.b16 %v266
      %v523 = vunpack.c.l.b16 %v267
      %v524 = vunpack.c.l.b16 %v268
      %v525 = vunpack.c.l.b16 %v269
      %v526 = vunpack.c.l.b16 %v270
      %v527 = vunpack.c.l.b16 %v271
      %v528 = vunpack.c.l.b16 %v272
      %v529 = vunpack.c.l.b16 %v273
      %v530 = vunpack.c.l.b16 %v274
      %v531 = vunpack.c.l.b16 %v275
      %v532 = vunpack.c.l.b16 %v276
      %v533 = vunpack.c.l.b16 %v277
      %v534 = vunpack.c.l.b16 %v278
      %v535 = vunpack.c.l.b16 %v279
      %v536 = vunpack.c.l.b16 %v280
      %v537 = vunpack.c.l.b16 %v281
      %v538 = vunpack.c.l.b16 %v282
      %v539 = vunpack.c.l.b16 %v283
      %v540 = vunpack.c.l.b16 %v284
      %v541 = vunpack.c.l.b16 %v285
      %v542 = vunpack.c.l.b16 %v286
      %v543 = vunpack.c.l.b16 %v287
      %v544 = vunpack.c.l.b16 %v288
      %v545 = vunpack.c.l.b16 %v289
      %v546 = vunpack.c.l.b16 %v290
      %v547 = vunpack.c.l.b16 %v291
      %v548 = vunpack.c.l.b16 %v292
      %v549 = vunpack.c.l.b16 %v293
      %v550 = vunpack.c.l.b16 %v294
      %v551 = vunpack.c.l.b16 %v295
      %v552 = vunpack.c.l.b16 %v296
      %v553 = vunpack.c.l.b16 %v297
      %v554 = vunpack.c.l.b16 %v298
      %v555 = vunpack.c.l.b16 %v299
      %v556 = vunpack.c.l.b16 %v300
      %v557 = vunpack.c.l.b16 %v301
      %v558 = vunpack.c.l.b16 %v302
      %v559 = vunpack.c.l.b16 %v303
      %v560 = vpack.c.b16 %v497, %v496
      %v561 = vpack.c.b16 %v499, %v498
      %v562 = vpack.c.b16 %v501, %v500
      %v563 = vpack.c.b16 %v503, %v502
      %v564 = vpack.c.b16 %v505, %v504
      %v565 = vpack.c.b16 %v507, %v506
      %v566 = vpack.c.b16 %v509, %v508
      %v567 = vpack.c.b16 %v511, %v510
      %v568 = vpack.c.b16 %v513, %v512
      %v569 = vpack.c.b16 %v515, %v514
      %v570 = vpack.c.b16 %v517, %v516
      %v571 = vpack.c.b16 %v519, %v518
      %v572 = vpack.c.b16 %v521, %v520
      %v573 = vpack.c.b16 %v523, %v522
      %v574 = vpack.c.b16 %v525, %v524
      %v575 = vpack.c.b16 %v527, %v526
      %v576 = vpack.c.b16 %v529, %v528
      %v577 = vpack.c.b16 %v531, %v530
      %v578 = vpack.c.b16 %v533, %v532
      %v579 = vpack.c.b16 %v535, %v534
      %v580 = vpack.c.b16 %v537, %v536
      %v581 = vpack.c.b16 %v539, %v538
      %v582 = vpack.c.b16 %v541, %v540
      %v583 = vpack.c.b16 %v543, %v542
      %v584 = vpack.c.b16 %v545, %v544
      %v585 = vpack.c.b16 %v547, %v546
      %v586 = vpack.c.b16 %v549, %v548
      %v587 = vpack.c.b16 %v551, %v550
      %v588 = vpack.c.b16 %v553, %v552
      %v589 = vpack.c.b16 %v555, %v554
      %v590 = vpack.c.b16 %v557, %v556
      %v591 = vpack.c.b16 %v559, %v558
      %624 = vmatprep.subr.bf16.mxu0 0
      %625 = vmatpush1.bf16.msra.mxu0 %v560
      %626 = vmatprep.subr.bf16.mxu0 0
      %627 = vmatpush1.bf16.msra.mxu0 %v561
      %628 = vmatprep.subr.bf16.mxu0 0
      %629 = vmatpush1.bf16.msra.mxu0 %v562
      %630 = vmatprep.subr.bf16.mxu0 0
      %631 = vmatpush1.bf16.msra.mxu0 %v563
      %632 = vmatprep.subr.bf16.mxu0 0
      %633 = vmatpush1.bf16.msra.mxu0 %v564
      %634 = vmatprep.subr.bf16.mxu0 0
      %635 = vmatpush1.bf16.msra.mxu0 %v565
      %636 = vmatprep.subr.bf16.mxu0 0
      %637 = vmatpush1.bf16.msra.mxu0 %v566
      %638 = vmatprep.subr.bf16.mxu0 0
      %639 = vmatpush1.bf16.msra.mxu0 %v567
      %640 = vmatprep.subr.bf16.mxu0 0
      %641 = vmatpush1.bf16.msra.mxu0 %v568
      %642 = vmatprep.subr.bf16.mxu0 0
      %643 = vmatpush1.bf16.msra.mxu0 %v569
      %644 = vmatprep.subr.bf16.mxu0 0
      %645 = vmatpush1.bf16.msra.mxu0 %v570
      %646 = vmatprep.subr.bf16.mxu0 0
      %647 = vmatpush1.bf16.msra.mxu0 %v571
      %648 = vmatprep.subr.bf16.mxu0 0
      %649 = vmatpush1.bf16.msra.mxu0 %v572
      %650 = vmatprep.subr.bf16.mxu0 0
      %651 = vmatpush1.bf16.msra.mxu0 %v573
      %652 = vmatprep.subr.bf16.mxu0 0
      %653 = vmatpush1.bf16.msra.mxu0 %v574
      %654 = vmatprep.subr.bf16.mxu0 0
      %655 = vmatpush1.bf16.msra.mxu0 %v575
      %656 = vmatprep.mubr.bf16.mxu0 %v401
      %657 = vmatmul.mubr.bf16.gmra.mrb[0].mxu0 %v400
      %v658 = vpop.f32.mrb[0].mxu0
      %v659 = vadd.f32 %v315, %v658
      %v660 = vpop.f32.mrb[0].mxu0
      %v661 = vpop.f32.mrb[0].mxu0
      %v662 = vadd.f32 %v320, %v661
      %v663 = vpop.f32.mrb[0].mxu0
      %664 = vmatprep.mubr.bf16.mxu0 %v405
      %665 = vmatmul.mubr.bf16.gmra.mrb[0].mxu0 %v404
      %v666 = vpop.f32.mrb[0].mxu0
      %v667 = vadd.f32 %v325, %v666
      %v668 = vpop.f32.mrb[0].mxu0
      %v669 = vpop.f32.mrb[0].mxu0
      %v670 = vadd.f32 %v330, %v669
      %v671 = vpop.f32.mrb[0].mxu0
      %672 = vmatprep.mubr.bf16.mxu0 %v409
      %673 = vmatmul.mubr.bf16.gmra.mrb[0].mxu0 %v408
      %v674 = vpop.f32.mrb[0].mxu0
      %v675 = vadd.f32 %v335, %v674
      %v676 = vpop.f32.mrb[0].mxu0
      %v677 = vpop.f32.mrb[0].mxu0
      %v678 = vadd.f32 %v340, %v677
      %v679 = vpop.f32.mrb[0].mxu0
      %680 = vmatprep.mubr.bf16.mxu0 %v413
      %681 = vmatmul.mubr.bf16.gmra.mrb[0].mxu0 %v412
      %v682 = vpop.f32.mrb[0].mxu0
      %v683 = vadd.f32 %v345, %v682
      %v684 = vpop.f32.mrb[0].mxu0
      %v685 = vpop.f32.mrb[0].mxu0
      %v686 = vadd.f32 %v350, %v685
      %v687 = vpop.f32.mrb[0].mxu0
      %688 = vdwg.mxu0
      %689 = vmatprep.subr.bf16.mxu0 0
      %690 = vmatpush1.bf16.msra.mxu0 %v576
      %691 = vmatprep.subr.bf16.mxu0 0
      %692 = vmatpush1.bf16.msra.mxu0 %v577
      %693 = vmatprep.subr.bf16.mxu0 0
      %694 = vmatpush1.bf16.msra.mxu0 %v578
      %695 = vmatprep.subr.bf16.mxu0 0
      %696 = vmatpush1.bf16.msra.mxu0 %v579
      %697 = vmatprep.subr.bf16.mxu0 0
      %698 = vmatpush1.bf16.msra.mxu0 %v580
      %699 = vmatprep.subr.bf16.mxu0 0
      %700 = vmatpush1.bf16.msra.mxu0 %v581
      %701 = vmatprep.subr.bf16.mxu0 0
      %702 = vmatpush1.bf16.msra.mxu0 %v582
      %703 = vmatprep.subr.bf16.mxu0 0
      %704 = vmatpush1.bf16.msra.mxu0 %v583
      %705 = vmatprep.subr.bf16.mxu0 0
      %706 = vmatpush1.bf16.msra.mxu0 %v584
      %707 = vmatprep.subr.bf16.mxu0 0
      %708 = vmatpush1.bf16.msra.mxu0 %v585
      %709 = vmatprep.subr.bf16.mxu0 0
      %710 = vmatpush1.bf16.msra.mxu0 %v586
      %711 = vmatprep.subr.bf16.mxu0 0
      %712 = vmatpush1.bf16.msra.mxu0 %v587
      %713 = vmatprep.subr.bf16.mxu0 0
      %714 = vmatpush1.bf16.msra.mxu0 %v588
      %715 = vmatprep.subr.bf16.mxu0 0
      %716 = vmatpush1.bf16.msra.mxu0 %v589
      %717 = vmatprep.subr.bf16.mxu0 0
      %718 = vmatpush1.bf16.msra.mxu0 %v590
      %719 = vmatprep.subr.bf16.mxu0 0
      %720 = vmatpush1.bf16.msra.mxu0 %v591
      %721 = vmatprep.mubr.bf16.mxu0 %v403
      %722 = vmatmul.mubr.bf16.gmra.mrb[0].mxu0 %v402
      %v723 = vpop.f32.mrb[0].mxu0
      %v724 = vadd.f32 %v659, %v723
      %v725 = vpop.f32.mrb[0].mxu0
      %v726 = vpop.f32.mrb[0].mxu0
      %v727 = vadd.f32 %v662, %v726
      %v728 = vpop.f32.mrb[0].mxu0
      %729 = vmatprep.mubr.bf16.mxu0 %v407
      %730 = vmatmul.mubr.bf16.gmra.mrb[0].mxu0 %v406
      %v731 = vpop.f32.mrb[0].mxu0
      %v732 = vadd.f32 %v667, %v731
      %v733 = vpop.f32.mrb[0].mxu0
      %v734 = vpop.f32.mrb[0].mxu0
      %v735 = vadd.f32 %v670, %v734
      %v736 = vpop.f32.mrb[0].mxu0
      %737 = vmatprep.mubr.bf16.mxu0 %v411
      %738 = vmatmul.mubr.bf16.gmra.mrb[0].mxu0 %v410
      %v739 = vpop.f32.mrb[0].mxu0
      %v740 = vadd.f32 %v675, %v739
      %v741 = vpop.f32.mrb[0].mxu0
      %v742 = vpop.f32.mrb[0].mxu0
      %v743 = vadd.f32 %v678, %v742
      %v744 = vpop.f32.mrb[0].mxu0
      %745 = vmatprep.mubr.bf16.mxu0 %v415
      %746 = vmatmul.mubr.bf16.gmra.mrb[0].mxu0 %v414
      %v747 = vpop.f32.mrb[0].mxu0
      %v748 = vadd.f32 %v683, %v747
      %v749 = vpop.f32.mrb[0].mxu0
      %v750 = vpop.f32.mrb[0].mxu0
      %v751 = vadd.f32 %v686, %v750
      %v752 = vpop.f32.mrb[0].mxu0
      %753 = vdwg.mxu0
      %v754 = vmax.f32 %v724, 0.0
      %v755 = vmax.f32 %v727, 0.0
      %v756 = vmax.f32 %v732, 0.0
      %v757 = vmax.f32 %v735, 0.0
      %v758 = vmax.f32 %v740, 0.0
      %v759 = vmax.f32 %v743, 0.0
      %v760 = vmax.f32 %v748, 0.0
      %v761 = vmax.f32 %v751, 0.0
      %v762 = vld [vmem:[%s3] sm:$0xff]
      %v763 = vld [vmem:[%s3 + $0x8] sm:$0xff]
      %v764 = vld [vmem:[%s3 + $0x10] sm:$0xff]
      %v765 = vld [vmem:[%s3 + $0x18] sm:$0xff]
      %v766 = vld [vmem:[%s3 + $0x20] sm:$0xff]
      %v767 = vld [vmem:[%s3 + $0x28] sm:$0xff]
      %v768 = vld [vmem:[%s3 + $0x30] sm:$0xff]
      %v769 = vld [vmem:[%s3 + $0x38] sm:$0xff]
      %v770 = vmul.f32 %v762, %v754
      %v771 = vmul.f32 %v763, %v755
      %v772 = vmul.f32 %v764, %v756
      %v773 = vmul.f32 %v765, %v757
      %v774 = vmul.f32 %v766, %v758
      %v775 = vmul.f32 %v767, %v759
      %v776 = vmul.f32 %v768, %v760
      %v777 = vmul.f32 %v769, %v761
      %vm778 = vcmask 130048
      %v779 = vsel %vm778, %v770, 0.0
      %v780 = vsel %vm778, %v771, 0.0
      %v781 = vadd.f32 %v779, %v780
      %v782 = vsel %vm778, %v772, 0.0
      %v783 = vadd.f32 %v781, %v782
      %v784 = vsel %vm778, %v773, 0.0
      %v785 = vadd.f32 %v783, %v784
      %v786 = vsel %vm778, %v774, 0.0
      %v787 = vadd.f32 %v785, %v786
      %v788 = vsel %vm778, %v775, 0.0
      %v789 = vadd.f32 %v787, %v788
      %v790 = vsel %vm778, %v776, 0.0
      %v791 = vadd.f32 %v789, %v790
      %v792 = vsel %vm778, %v777, 0.0
      %v793 = vadd.f32 %v791, %v792
      %v794 = vrot.slane %v793, 4
      %v795 = vadd.f32 %v793, %v794
      %v796 = vrot.slane %v795, 2
      %v797 = vadd.f32 %v795, %v796
      %v798 = vrot.slane %v797, 1
      %v799 = vadd.f32 %v797, %v798
      %s800 = scalar_lea.vmem %s3, 64
      %v801 = vld [vmem:[%s800] sm:$0xff]
      %v802 = vld [vmem:[%s800 + $0x8] sm:$0xff]
      %v803 = vld [vmem:[%s800 + $0x10] sm:$0xff]
      %v804 = vld [vmem:[%s800 + $0x18] sm:$0xff]
      %v805 = vld [vmem:[%s800 + $0x20] sm:$0xff]
      %v806 = vld [vmem:[%s800 + $0x28] sm:$0xff]
      %v807 = vld [vmem:[%s800 + $0x30] sm:$0xff]
      %v808 = vld [vmem:[%s800 + $0x38] sm:$0xff]
      %v809 = vmul.f32 %v801, %v754
      %v810 = vmul.f32 %v802, %v755
      %v811 = vmul.f32 %v803, %v756
      %v812 = vmul.f32 %v804, %v757
      %v813 = vmul.f32 %v805, %v758
      %v814 = vmul.f32 %v806, %v759
      %v815 = vmul.f32 %v807, %v760
      %v816 = vmul.f32 %v808, %v761
      %v817 = vsel %vm778, %v809, 0.0
      %v818 = vsel %vm778, %v810, 0.0
      %v819 = vadd.f32 %v817, %v818
      %v820 = vsel %vm778, %v811, 0.0
      %v821 = vadd.f32 %v819, %v820
      %v822 = vsel %vm778, %v812, 0.0
      %v823 = vadd.f32 %v821, %v822
      %v824 = vsel %vm778, %v813, 0.0
      %v825 = vadd.f32 %v823, %v824
      %v826 = vsel %vm778, %v814, 0.0
      %v827 = vadd.f32 %v825, %v826
      %v828 = vsel %vm778, %v815, 0.0
      %v829 = vadd.f32 %v827, %v828
      %v830 = vsel %vm778, %v816, 0.0
      %v831 = vadd.f32 %v829, %v830
      %v832 = vrot.slane %v831, 4
      %v833 = vadd.f32 %v831, %v832
      %v834 = vrot.slane %v833, 2
      %v835 = vadd.f32 %v833, %v834
      %v836 = vrot.slane %v835, 1
      %v837 = vadd.f32 %v835, %v836
      %vm838 = vcmask 1040384
      %v839 = vsel %vm838, %v799, %v837
      %vm840 = vcmask 123904
      %v841 = vsel %vm840, %v839, 0.0
      %842 = vadd.xlane.f32.xlu0 %v841
      %v843 = vpop.xlane.xlu0 %842
      %v844 = vld [vmem:[%s4] sm:$0x3]
      %v845 = vadd.f32 %v843, %v844
      %v846 = vmax.f32 %v845, 0.0
      %vm847 = vcmask 1024
      %848 = vst.msk [vmem:[%s222] sm:$0x3] %vm847, %v846
      %p849 = scmp.lt.s32.totalorder %s16, 1
      %s850 = scalar_select %p849, %s16, 1
      %s851 = smul.addr %s850, 2
      %s852 = scalar_lea.vmem %s5, %s851
      // Predicated region
      $region41: #{_lambda_.9} parent=39 // pred_check
        %p853 = pneg %p144
      $region42: #{_lambda_.9} parent=39 // pred_check_branch
        %855 = sbr.rel (%p853) target = $region44
      $region43: #{_lambda_.9} parent=39 // pred_region
        _
      $region44: #{_lambda_.9} parent=39 // pred_fallthru
        _
    $region40: #{_lambda_.9} parent=5 // pred_fallthru
      _
    %p856 = scmp.le.s32.totalorder 2, %s11
    // Predicated region
    $region45: #{_lambda_.9} parent=5 // pred_check
      %p857 = pneg %p856
    $region46: #{_lambda_.9} parent=5 // pred_check_branch
      %859 = sbr.rel (%p857) target = $region48
    $region47: #{_lambda_.9} parent=5 // pred_region
      %s860 = ssub.s32 %s11, 2
      // Predicated region
      $region49: #{_lambda_.9} parent=47 // pred_check
        %p861 = pneg %p150
      $region50: #{_lambda_.9} parent=47 // pred_check_branch
        %863 = sbr.rel (%p861) target = $region52
      $region51: #{_lambda_.9} parent=47 // pred_region
        %p864 = scmp.lt.s32.totalorder %s17, 1
        %s865 = scalar_select %p864, %s17, 1
        %s866 = smul.addr %s865, 2
        %s867 = scalar_lea.vmem %s5, %s866
      $region52: #{_lambda_.9} parent=47 // pred_fallthru
        _
    $region48: #{_lambda_.9} parent=5 // pred_fallthru
      _
  $region6: #{_lambda_.9} parent=0 // loop_footer
    %s15 = sadd.s32 1, %s11
  $region7: #{_lambda_.9} parent=0 // loop_footer_branch
    %10 = sbr.rel target = $region3
  $region8: #{_lambda_.9} parent=0 // loop_exit
    _

</llo_original>
